<compile_context>
chip_gen: v7x
topology: tpu7x:2x2x1
jax: 0.10.0
libtpu: 0.0.40
codegen_flags: <defaults>
</compile_context>

<pallas_src>
import jax
import jax.numpy as jnp
from jax.experimental import pallas as pl
from jax.experimental.pallas import tpu as pltpu

# ---------------- synthetic BERT config (small, deterministic) -------------
VOCAB = 100
HIDDEN = 32
N_HEADS = 4
HEAD_DIM = HIDDEN // N_HEADS
INTERMEDIATE = 64
N_LAYERS = 2
CHUNK = 8            # cfg.chunk_size (tokens per chunk / per-chunk seq len)
MAX_POS = CHUNK
LN_EPS = 1e-12
INIT_RANGE = 0.02    # BERT initializer_range


# --------------------------- fused encoder kernel ---------------------------

def _encoder_kernel(x_ref, mask_ref, eg_ref, eb_ref,
                    wq_ref, bq_ref, wk_ref, bk_ref, wv_ref, bv_ref,
                    wo_ref, bo_ref, ln1g_ref, ln1b_ref,
                    w1_ref, b1_ref, w2_ref, b2_ref,
                    ln2g_ref, ln2b_ref, o_ref):
    """One grid step processes G chunks (G*S token rows) through all layers.

    x_ref    : [1, G*S, H] summed embeddings (bf16)
    mask_ref : [1, G, S]   additive attention mask (0 / -10000), f32
    weights  : stacked over a leading N_LAYERS axis, VMEM-resident
               (matmul weights bf16, LN params / biases f32)
    o_ref    : [1, G, H]   CLS hidden state per chunk (f32)
    """
    _, G, S = mask_ref.shape
    H = HIDDEN
    NH, HD = N_HEADS, HEAD_DIM
    scale = 1.0 / (HD ** 0.5)

    def layer_norm(v, g, b):                       # f32 throughout
        mu = jnp.mean(v, axis=-1, keepdims=True)
        var = jnp.mean(jnp.square(v - mu), axis=-1, keepdims=True)
        return (v - mu) * jax.lax.rsqrt(var + LN_EPS) * g + b

    # Embedding LayerNorm (upcast bf16 activations -> f32).
    h = layer_norm(x_ref[0].astype(jnp.float32), eg_ref[...], eb_ref[...])

    # Additive mask broadcast to the heads-folded batch: [NH*G, 1, S].
    mask_g = mask_ref[0][:, None, :]                              # [G, 1, S]
    mask_b = jnp.concatenate([mask_g] * NH, axis=0)               # [NH*G,1,S]

    def split_heads(t):
        """[G*S, H] -> [NH*G, S, HD]: heads folded into the batch axis."""
        t3 = t.reshape(G, S, H)
        return jnp.concatenate(
            [t3[:, :, hd * HD:(hd + 1) * HD] for hd in range(NH)], axis=0)

    for l in range(N_LAYERS):                      # static unroll (toy size)
        hb = h.astype(jnp.bfloat16)

        # ---- separate Q/K/V projections (bf16 MXU, f32 accumulation) ----
        q = jnp.dot(hb, wq_ref[l], preferred_element_type=jnp.float32) + bq_ref[l]
        k = jnp.dot(hb, wk_ref[l], preferred_element_type=jnp.float32) + bk_ref[l]
        v = jnp.dot(hb, wv_ref[l], preferred_element_type=jnp.float32) + bv_ref[l]

        # ---- heads-batched attention: one QK^T, one softmax, one PV ----
        qh = split_heads(q).astype(jnp.bfloat16)                  # [NH*G,S,HD]
        kh = split_heads(k).astype(jnp.bfloat16)
        vh = split_heads(v).astype(jnp.bfloat16)

        s = jnp.einsum('bqd,bkd->bqk', qh, kh,
                       preferred_element_type=jnp.float32)        # [NH*G,S,S]
        s = s * scale + mask_b
        s = s - jnp.max(s, axis=-1, keepdims=True)
        p = jnp.exp(s)                                            # f32 softmax
        p = p * pl.reciprocal(jnp.sum(p, axis=-1, keepdims=True), approx=True)
        ctx_h = jnp.einsum('bqk,bkd->bqd', p.astype(jnp.bfloat16), vh,
                           preferred_element_type=jnp.float32)    # [NH*G,S,HD]

        # heads back to lanes: [G, S, NH*HD] -> [G*S, H]
        ctx = jnp.concatenate(
            [ctx_h[hd * G:(hd + 1) * G] for hd in range(NH)], axis=-1
        ).reshape(G * S, H)

        # ---- attention output projection + residual + LayerNorm ----
        attn = jnp.dot(ctx.astype(jnp.bfloat16), wo_ref[l],
                       preferred_element_type=jnp.float32) + bo_ref[l]
        h = layer_norm(attn + h, ln1g_ref[l], ln1b_ref[l])

        # ---- feed-forward (GELU) + residual + LayerNorm ----
        inter = jnp.dot(h.astype(jnp.bfloat16), w1_ref[l],
                        preferred_element_type=jnp.float32) + b1_ref[l]
        # TODO(synk): HF BERT uses exact (erf) GELU; tanh approximation used
        # here for guaranteed Mosaic lowering (numerically near-identical).
        inter = jax.nn.gelu(inter, approximate=True)
        ffn = jnp.dot(inter.astype(jnp.bfloat16), w2_ref[l],
                      preferred_element_type=jnp.float32) + b2_ref[l]
        h = layer_norm(ffn + h, ln2g_ref[l], ln2b_ref[l])

    # CLS (token 0) per chunk written directly -> no full-slab writeback and
    # no wrapper-side strided gather.
    o_ref[0] = h.reshape(G, S, H)[:, 0, :].astype(o_ref.dtype)


def _pick_group(chunks_total, seq, max_rows=1024):
    """Chunks per grid step.

    Largest divisor G of chunks_total such that
      * G * seq <= max_rows            (per-step VMEM / block cap)
      * chunks_total // G >= 2         (when >1 chunk: lets the 'parallel'
                                        grid axis shard over v7x's 2 TCs)
    Falls back to G=1 (never exceeds max_rows unless a single chunk does).
    """
    best = 1
    for g in range(1, chunks_total + 1):
        if chunks_total % g:
            continue
        if g * seq > max_rows:
            continue
        if chunks_total > 1 and chunks_total // g < 2:
            continue
        best = g
    return best


def encoder(params, x_bcsh, mask_add):
    """Fused BERT encoder. x_bcsh: [BC, S, H] bf16; mask_add: [BC, S] f32.
    Returns the CLS hidden state per chunk: [BC, H] f32."""
    BC, S, H = x_bcsh.shape
    G = _pick_group(BC, S)
    assert BC % G == 0
    steps = BC // G

    x_steps = x_bcsh.reshape(steps, G * S, H)
    mask_steps = mask_add.reshape(steps, G, S)

    weight_args = (
        params["wq"], params["bq"], params["wk"], params["bk"],
        params["wv"], params["bv"], params["wo"], params["bo"],
        params["ln1_g"], params["ln1_b"], params["w1"], params["b1"],
        params["w2"], params["b2"], params["ln2_g"], params["ln2_b"],
    )
    # All stacked weights are whole-array blocks each step (VMEM-resident).
    weight_specs = [pl.BlockSpec(w.shape, lambda i: (0, 0, 0))
                    for w in weight_args]
    weight_bytes = sum(int(w.size) * w.dtype.itemsize for w in weight_args)
    weight_bytes += 4 * int(params["emb_ln_g"].size + params["emb_ln_b"].size)

    # Advisory cost estimate (weights re-fetched per grid step).
    M = BC * S
    flops_layer = (2 * M * H * H * 4                              # Q,K,V,O
                   + 2 * 2 * BC * N_HEADS * S * S * HEAD_DIM      # QK^T, PV
                   + 2 * 2 * M * H * INTERMEDIATE)                # FFN up+down
    cost = pl.CostEstimate(
        flops=int(N_LAYERS * flops_layer),
        transcendentals=int(N_LAYERS * (BC * N_HEADS * S * S + M * INTERMEDIATE)),
        bytes_accessed=int(2 * x_steps.size + 4 * mask_steps.size
                           + 4 * BC * H + steps * weight_bytes),
    )

    out = pl.pallas_call(
        _encoder_kernel,
        out_shape=jax.ShapeDtypeStruct((steps, G, H), jnp.float32),
        grid=(steps,),
        in_specs=[
            pl.BlockSpec((1, G * S, H), lambda i: (i, 0, 0)),   # activations
            pl.BlockSpec((1, G, S), lambda i: (i, 0, 0)),       # additive mask
            pl.BlockSpec((1, H), lambda i: (0, 0)),             # emb LN gamma
            pl.BlockSpec((1, H), lambda i: (0, 0)),             # emb LN beta
        ] + weight_specs,
        out_specs=pl.BlockSpec((1, G, H), lambda i: (i, 0, 0)), # CLS per chunk
        compiler_params=pltpu.CompilerParams(
            dimension_semantics=("parallel",)),                 # v7x: 2 TCs
        cost_estimate=cost,
    )(x_steps, mask_steps, params["emb_ln_g"], params["emb_ln_b"], *weight_args)

    return out.reshape(BC, H)


# ------------------------- parameter initialization -------------------------

def init_params(key):
    def normal(k, shape, dtype=jnp.float32):
        w = INIT_RANGE * jax.random.normal(k, shape, dtype=jnp.float32)
        return w.astype(dtype)

    bf16 = jnp.bfloat16
    keys = jax.random.split(key, 9)
    return {
        "word_emb": normal(keys[0], (VOCAB, HIDDEN)),
        "pos_emb": normal(keys[1], (MAX_POS, HIDDEN)),
        "type_emb": normal(keys[2], (2, HIDDEN)),
        "emb_ln_g": jnp.ones((1, HIDDEN), jnp.float32),
        "emb_ln_b": jnp.zeros((1, HIDDEN), jnp.float32),
        # Matmul weights pre-cast to bf16 once (MXU operands); LN / bias f32.
        "wq": normal(keys[3], (N_LAYERS, HIDDEN, HIDDEN), bf16),
        "wk": normal(keys[4], (N_LAYERS, HIDDEN, HIDDEN), bf16),
        "wv": normal(keys[5], (N_LAYERS, HIDDEN, HIDDEN), bf16),
        "bq": jnp.zeros((N_LAYERS, 1, HIDDEN), jnp.float32),
        "bk": jnp.zeros((N_LAYERS, 1, HIDDEN), jnp.float32),
        "bv": jnp.zeros((N_LAYERS, 1, HIDDEN), jnp.float32),
        "wo": normal(keys[6], (N_LAYERS, HIDDEN, HIDDEN), bf16),
        "bo": jnp.zeros((N_LAYERS, 1, HIDDEN), jnp.float32),
        "ln1_g": jnp.ones((N_LAYERS, 1, HIDDEN), jnp.float32),
        "ln1_b": jnp.zeros((N_LAYERS, 1, HIDDEN), jnp.float32),
        "w1": normal(keys[7], (N_LAYERS, HIDDEN, INTERMEDIATE), bf16),
        "b1": jnp.zeros((N_LAYERS, 1, INTERMEDIATE), jnp.float32),
        "w2": normal(keys[8], (N_LAYERS, INTERMEDIATE, HIDDEN), bf16),
        "b2": jnp.zeros((N_LAYERS, 1, HIDDEN), jnp.float32),
        "ln2_g": jnp.ones((N_LAYERS, 1, HIDDEN), jnp.float32),
        "ln2_b": jnp.zeros((N_LAYERS, 1, HIDDEN), jnp.float32),
    }


# --------------------------- ChunkBERT forward -------------------------------

def chunkbert_forward(params, input_ids, attention_mask):
    """apply_chunking_to_forward(forward_chunk, chunk_size, dim=1, ...)
    with all chunks folded into the batch dimension and run in one pass."""
    B, L = input_ids.shape
    assert L % CHUNK == 0
    n_chunks = L // CHUNK
    BC, S = B * n_chunks, CHUNK

    # [B, L] -> [B*n_chunks, S]: row b*n_chunks + c is chunk c of document b,
    # with positions reset to 0..S-1 per chunk (same as the per-chunk loop).
    ids = input_ids.reshape(BC, S)
    am = attention_mask.reshape(BC, S)

    # Embeddings (gather is plain-JAX glue; fused with the kernel under jit).
    tok = jnp.take(params["word_emb"], ids, axis=0)                  # [BC,S,H]
    pos = params["pos_emb"][:S][None, :, :]
    typ = params["type_emb"][0][None, None, :]                       # type id 0
    # Summed embeddings handed to the kernel in bf16 (halves activation DMA);
    # the kernel's LayerNorm upcasts back to f32.
    x = (tok + pos + typ).astype(jnp.bfloat16)                       # [BC,S,H]

    # Extended additive attention mask (0 keep / -10000 drop), per chunk.
    mask_add = (1.0 - am.astype(jnp.float32)) * -10000.0             # [BC, S]

    cls = encoder(params, x, mask_add)                               # [BC, H]

    # out[b, c*H:(c+1)*H] == CLS of chunk c of document b  (== torch.cat dim=1)
    return cls.reshape(B, n_chunks * HIDDEN)


chunkbert_forward_jit = jax.jit(chunkbert_forward)


# ------------------------------------ main -----------------------------------

if __name__ == "__main__":
    root = jax.random.PRNGKey(0)
    k_params, k_ids = jax.random.split(root)

    params = init_params(k_params)

    B = 2
    n_chunks = 2
    L = n_chunks * CHUNK                      # document length = 16 tokens
    input_ids = jax.random.randint(k_ids, (B, L), 0, VOCAB, dtype=jnp.int32)
    attention_mask = jnp.ones((B, L), dtype=jnp.int32)

    out = chunkbert_forward_jit(params, input_ids, attention_mask)
    jax.block_until_ready(out)
    assert out.shape == (B, n_chunks * HIDDEN)
    print("KERNEL_OK")
</pallas_src>

<mosaic_0001>
module attributes {stable_mosaic.version = 11 : i64} {
  func.func @_encoder_kernel(%arg0: i32, %arg1: memref<1x16x32xbf16, #tpu.memory_space<vmem>>, %arg2: memref<1x2x8xf32, #tpu.memory_space<vmem>>, %arg3: memref<1x32xf32, #tpu.memory_space<vmem>>, %arg4: memref<1x32xf32, #tpu.memory_space<vmem>>, %arg5: memref<2x32x32xbf16, #tpu.memory_space<vmem>>, %arg6: memref<2x1x32xf32, #tpu.memory_space<vmem>>, %arg7: memref<2x32x32xbf16, #tpu.memory_space<vmem>>, %arg8: memref<2x1x32xf32, #tpu.memory_space<vmem>>, %arg9: memref<2x32x32xbf16, #tpu.memory_space<vmem>>, %arg10: memref<2x1x32xf32, #tpu.memory_space<vmem>>, %arg11: memref<2x32x32xbf16, #tpu.memory_space<vmem>>, %arg12: memref<2x1x32xf32, #tpu.memory_space<vmem>>, %arg13: memref<2x1x32xf32, #tpu.memory_space<vmem>>, %arg14: memref<2x1x32xf32, #tpu.memory_space<vmem>>, %arg15: memref<2x32x64xbf16, #tpu.memory_space<vmem>>, %arg16: memref<2x1x64xf32, #tpu.memory_space<vmem>>, %arg17: memref<2x64x32xbf16, #tpu.memory_space<vmem>>, %arg18: memref<2x1x32xf32, #tpu.memory_space<vmem>>, %arg19: memref<2x1x32xf32, #tpu.memory_space<vmem>>, %arg20: memref<2x1x32xf32, #tpu.memory_space<vmem>>, %arg21: memref<1x2x32xf32, #tpu.memory_space<vmem>>) attributes {dimension_semantics = [#tpu.dimension_semantics<parallel>], iteration_bounds = array<i64: 2>, scalar_prefetch = 0 : i64, scratch_operands = 0 : i64, tpu.core_type = #tpu.core_type<tc>, window_params = [{transform_indices = @transform_0, window_bounds = array<i64: 1, 16, 32>}, {transform_indices = @transform_1, window_bounds = array<i64: 1, 2, 8>}, {pipeline_mode = #tpu.pipeline_mode<synchronous>, transform_indices = @transform_2, window_bounds = array<i64: 1, 32>}, {pipeline_mode = #tpu.pipeline_mode<synchronous>, transform_indices = @transform_3, window_bounds = array<i64: 1, 32>}, {pipeline_mode = #tpu.pipeline_mode<synchronous>, transform_indices = @transform_4, window_bounds = array<i64: 2, 32, 32>}, {pipeline_mode = #tpu.pipeline_mode<synchronous>, transform_indices = @transform_5, window_bounds = array<i64: 2, 1, 32>}, {pipeline_mode = #tpu.pipeline_mode<synchronous>, transform_indices = @transform_6, window_bounds = array<i64: 2, 32, 32>}, {pipeline_mode = #tpu.pipeline_mode<synchronous>, transform_indices = @transform_7, window_bounds = array<i64: 2, 1, 32>}, {pipeline_mode = #tpu.pipeline_mode<synchronous>, transform_indices = @transform_8, window_bounds = array<i64: 2, 32, 32>}, {pipeline_mode = #tpu.pipeline_mode<synchronous>, transform_indices = @transform_9, window_bounds = array<i64: 2, 1, 32>}, {pipeline_mode = #tpu.pipeline_mode<synchronous>, transform_indices = @transform_10, window_bounds = array<i64: 2, 32, 32>}, {pipeline_mode = #tpu.pipeline_mode<synchronous>, transform_indices = @transform_11, window_bounds = array<i64: 2, 1, 32>}, {pipeline_mode = #tpu.pipeline_mode<synchronous>, transform_indices = @transform_12, window_bounds = array<i64: 2, 1, 32>}, {pipeline_mode = #tpu.pipeline_mode<synchronous>, transform_indices = @transform_13, window_bounds = array<i64: 2, 1, 32>}, {pipeline_mode = #tpu.pipeline_mode<synchronous>, transform_indices = @transform_14, window_bounds = array<i64: 2, 32, 64>}, {pipeline_mode = #tpu.pipeline_mode<synchronous>, transform_indices = @transform_15, window_bounds = array<i64: 2, 1, 64>}, {pipeline_mode = #tpu.pipeline_mode<synchronous>, transform_indices = @transform_16, window_bounds = array<i64: 2, 64, 32>}, {pipeline_mode = #tpu.pipeline_mode<synchronous>, transform_indices = @transform_17, window_bounds = array<i64: 2, 1, 32>}, {pipeline_mode = #tpu.pipeline_mode<synchronous>, transform_indices = @transform_18, window_bounds = array<i64: 2, 1, 32>}, {pipeline_mode = #tpu.pipeline_mode<synchronous>, transform_indices = @transform_19, window_bounds = array<i64: 2, 1, 32>}, {transform_indices = @transform_20, window_bounds = array<i64: 1, 2, 32>}]} {
    %c0 = arith.constant 0 : index
    %c0_0 = arith.constant 0 : index
    %c0_1 = arith.constant 0 : index
    %0 = vector.load %arg1[%c0, %c0_0, %c0_1] : memref<1x16x32xbf16, #tpu.memory_space<vmem>>, vector<1x16x32xbf16>
    %1 = vector.shape_cast %0 : vector<1x16x32xbf16> to vector<16x32xbf16>
    %2 = arith.extf %1 : vector<16x32xbf16> to vector<16x32xf32>
    %c0_2 = arith.constant 0 : index
    %c0_3 = arith.constant 0 : index
    %3 = vector.load %arg3[%c0_2, %c0_3] : memref<1x32xf32, #tpu.memory_space<vmem>>, vector<1x32xf32>
    %c0_4 = arith.constant 0 : index
    %c0_5 = arith.constant 0 : index
    %4 = vector.load %arg4[%c0_4, %c0_5] : memref<1x32xf32, #tpu.memory_space<vmem>>, vector<1x32xf32>
    %cst = arith.constant dense<0.000000e+00> : vector<16xf32>
    %5 = vector.multi_reduction <add>, %2, %cst [1] : vector<16x32xf32> to vector<16xf32>
    %6 = vector.shape_cast %5 : vector<16xf32> to vector<16x1xf32>
    %cst_6 = arith.constant 3.200000e+01 : f32
    %7 = vector.broadcast %cst_6 : f32 to vector<16x1xf32>
    %8 = arith.divf %6, %7 : vector<16x1xf32>
    %9 = vector.broadcast %8 : vector<16x1xf32> to vector<16x32xf32>
    %10 = arith.subf %2, %9 : vector<16x32xf32>
    %11 = arith.mulf %10, %10 : vector<16x32xf32>
    %cst_7 = arith.constant dense<0.000000e+00> : vector<16xf32>
    %12 = vector.multi_reduction <add>, %11, %cst_7 [1] : vector<16x32xf32> to vector<16xf32>
    %13 = vector.shape_cast %12 : vector<16xf32> to vector<16x1xf32>
    %cst_8 = arith.constant 3.200000e+01 : f32
    %14 = vector.broadcast %cst_8 : f32 to vector<16x1xf32>
    %15 = arith.divf %13, %14 : vector<16x1xf32>
    %16 = vector.broadcast %8 : vector<16x1xf32> to vector<16x32xf32>
    %17 = arith.subf %2, %16 : vector<16x32xf32>
    %cst_9 = arith.constant 9.99999996E-13 : f32
    %18 = vector.broadcast %cst_9 : f32 to vector<16x1xf32>
    %19 = arith.addf %15, %18 : vector<16x1xf32>
    %20 = math.rsqrt %19 : vector<16x1xf32>
    %21 = vector.broadcast %20 : vector<16x1xf32> to vector<16x32xf32>
    %22 = arith.mulf %17, %21 : vector<16x32xf32>
    %23 = vector.broadcast %3 : vector<1x32xf32> to vector<16x32xf32>
    %24 = arith.mulf %22, %23 : vector<16x32xf32>
    %25 = vector.broadcast %4 : vector<1x32xf32> to vector<16x32xf32>
    %26 = arith.addf %24, %25 : vector<16x32xf32>
    %c0_10 = arith.constant 0 : index
    %c0_11 = arith.constant 0 : index
    %c0_12 = arith.constant 0 : index
    %27 = vector.load %arg2[%c0_10, %c0_11, %c0_12] : memref<1x2x8xf32, #tpu.memory_space<vmem>>, vector<1x2x8xf32>
    %28 = vector.shape_cast %27 : vector<1x2x8xf32> to vector<2x8xf32>
    %29 = vector.shape_cast %28 : vector<2x8xf32> to vector<2x1x8xf32>
    %30 = tpu.concatenate %29, %29, %29, %29 in 0 : vector<2x1x8xf32>, vector<2x1x8xf32>, vector<2x1x8xf32>, vector<2x1x8xf32> -> vector<8x1x8xf32>
    %31 = arith.truncf %26 : vector<16x32xf32> to vector<16x32xbf16>
    %c0_13 = arith.constant 0 : index
    %c0_14 = arith.constant 0 : index
    %c0_15 = arith.constant 0 : index
    %32 = vector.load %arg5[%c0_13, %c0_14, %c0_15] : memref<2x32x32xbf16, #tpu.memory_space<vmem>>, vector<1x32x32xbf16>
    %33 = vector.shape_cast %32 : vector<1x32x32xbf16> to vector<32x32xbf16>
    %cst_16 = arith.constant dense<0.000000e+00> : vector<16x32xf32>
    %34 = tpu.matmul %31, %33, %cst_16 {dimension_numbers = #tpu.dot_dimension_numbers<[1], [0], [0], [1], [0, 0, 1, 1], [], []>} : vector<16x32xbf16>, vector<32x32xbf16>, vector<16x32xf32> -> vector<16x32xf32>
    %c0_17 = arith.constant 0 : index
    %c0_18 = arith.constant 0 : index
    %c0_19 = arith.constant 0 : index
    %35 = vector.load %arg6[%c0_17, %c0_18, %c0_19] : memref<2x1x32xf32, #tpu.memory_space<vmem>>, vector<1x1x32xf32>
    %36 = vector.shape_cast %35 : vector<1x1x32xf32> to vector<1x32xf32>
    %37 = vector.broadcast %36 : vector<1x32xf32> to vector<16x32xf32>
    %38 = arith.addf %34, %37 : vector<16x32xf32>
    %c0_20 = arith.constant 0 : index
    %c0_21 = arith.constant 0 : index
    %c0_22 = arith.constant 0 : index
    %39 = vector.load %arg7[%c0_20, %c0_21, %c0_22] : memref<2x32x32xbf16, #tpu.memory_space<vmem>>, vector<1x32x32xbf16>
    %40 = vector.shape_cast %39 : vector<1x32x32xbf16> to vector<32x32xbf16>
    %cst_23 = arith.constant dense<0.000000e+00> : vector<16x32xf32>
    %41 = tpu.matmul %31, %40, %cst_23 {dimension_numbers = #tpu.dot_dimension_numbers<[1], [0], [0], [1], [0, 0, 1, 1], [], []>} : vector<16x32xbf16>, vector<32x32xbf16>, vector<16x32xf32> -> vector<16x32xf32>
    %c0_24 = arith.constant 0 : index
    %c0_25 = arith.constant 0 : index
    %c0_26 = arith.constant 0 : index
    %42 = vector.load %arg8[%c0_24, %c0_25, %c0_26] : memref<2x1x32xf32, #tpu.memory_space<vmem>>, vector<1x1x32xf32>
    %43 = vector.shape_cast %42 : vector<1x1x32xf32> to vector<1x32xf32>
    %44 = vector.broadcast %43 : vector<1x32xf32> to vector<16x32xf32>
    %45 = arith.addf %41, %44 : vector<16x32xf32>
    %c0_27 = arith.constant 0 : index
    %c0_28 = arith.constant 0 : index
    %c0_29 = arith.constant 0 : index
    %46 = vector.load %arg9[%c0_27, %c0_28, %c0_29] : memref<2x32x32xbf16, #tpu.memory_space<vmem>>, vector<1x32x32xbf16>
    %47 = vector.shape_cast %46 : vector<1x32x32xbf16> to vector<32x32xbf16>
    %cst_30 = arith.constant dense<0.000000e+00> : vector<16x32xf32>
    %48 = tpu.matmul %31, %47, %cst_30 {dimension_numbers = #tpu.dot_dimension_numbers<[1], [0], [0], [1], [0, 0, 1, 1], [], []>} : vector<16x32xbf16>, vector<32x32xbf16>, vector<16x32xf32> -> vector<16x32xf32>
    %c0_31 = arith.constant 0 : index
    %c0_32 = arith.constant 0 : index
    %c0_33 = arith.constant 0 : index
    %49 = vector.load %arg10[%c0_31, %c0_32, %c0_33] : memref<2x1x32xf32, #tpu.memory_space<vmem>>, vector<1x1x32xf32>
    %50 = vector.shape_cast %49 : vector<1x1x32xf32> to vector<1x32xf32>
    %51 = vector.broadcast %50 : vector<1x32xf32> to vector<16x32xf32>
    %52 = arith.addf %48, %51 : vector<16x32xf32>
    %53 = vector.shape_cast %38 : vector<16x32xf32> to vector<2x8x32xf32>
    %54 = vector.extract_strided_slice %53 {offsets = [0, 0, 0], sizes = [2, 8, 8], strides = [1, 1, 1]} : vector<2x8x32xf32> to vector<2x8x8xf32>
    %55 = vector.extract_strided_slice %53 {offsets = [0, 0, 8], sizes = [2, 8, 8], strides = [1, 1, 1]} : vector<2x8x32xf32> to vector<2x8x8xf32>
    %56 = vector.extract_strided_slice %53 {offsets = [0, 0, 16], sizes = [2, 8, 8], strides = [1, 1, 1]} : vector<2x8x32xf32> to vector<2x8x8xf32>
    %57 = vector.extract_strided_slice %53 {offsets = [0, 0, 24], sizes = [2, 8, 8], strides = [1, 1, 1]} : vector<2x8x32xf32> to vector<2x8x8xf32>
    %58 = tpu.concatenate %54, %55, %56, %57 in 0 : vector<2x8x8xf32>, vector<2x8x8xf32>, vector<2x8x8xf32>, vector<2x8x8xf32> -> vector<8x8x8xf32>
    %59 = arith.truncf %58 : vector<8x8x8xf32> to vector<8x8x8xbf16>
    %60 = vector.shape_cast %45 : vector<16x32xf32> to vector<2x8x32xf32>
    %61 = vector.extract_strided_slice %60 {offsets = [0, 0, 0], sizes = [2, 8, 8], strides = [1, 1, 1]} : vector<2x8x32xf32> to vector<2x8x8xf32>
    %62 = vector.extract_strided_slice %60 {offsets = [0, 0, 8], sizes = [2, 8, 8], strides = [1, 1, 1]} : vector<2x8x32xf32> to vector<2x8x8xf32>
    %63 = vector.extract_strided_slice %60 {offsets = [0, 0, 16], sizes = [2, 8, 8], strides = [1, 1, 1]} : vector<2x8x32xf32> to vector<2x8x8xf32>
    %64 = vector.extract_strided_slice %60 {offsets = [0, 0, 24], sizes = [2, 8, 8], strides = [1, 1, 1]} : vector<2x8x32xf32> to vector<2x8x8xf32>
    %65 = tpu.concatenate %61, %62, %63, %64 in 0 : vector<2x8x8xf32>, vector<2x8x8xf32>, vector<2x8x8xf32>, vector<2x8x8xf32> -> vector<8x8x8xf32>
    %66 = arith.truncf %65 : vector<8x8x8xf32> to vector<8x8x8xbf16>
    %67 = vector.shape_cast %52 : vector<16x32xf32> to vector<2x8x32xf32>
    %68 = vector.extract_strided_slice %67 {offsets = [0, 0, 0], sizes = [2, 8, 8], strides = [1, 1, 1]} : vector<2x8x32xf32> to vector<2x8x8xf32>
    %69 = vector.extract_strided_slice %67 {offsets = [0, 0, 8], sizes = [2, 8, 8], strides = [1, 1, 1]} : vector<2x8x32xf32> to vector<2x8x8xf32>
    %70 = vector.extract_strided_slice %67 {offsets = [0, 0, 16], sizes = [2, 8, 8], strides = [1, 1, 1]} : vector<2x8x32xf32> to vector<2x8x8xf32>
    %71 = vector.extract_strided_slice %67 {offsets = [0, 0, 24], sizes = [2, 8, 8], strides = [1, 1, 1]} : vector<2x8x32xf32> to vector<2x8x8xf32>
    %72 = tpu.concatenate %68, %69, %70, %71 in 0 : vector<2x8x8xf32>, vector<2x8x8xf32>, vector<2x8x8xf32>, vector<2x8x8xf32> -> vector<8x8x8xf32>
    %73 = arith.truncf %72 : vector<8x8x8xf32> to vector<8x8x8xbf16>
    "tpu.trace_start"() <{level = 10 : i32, message = "bqd,bkd->bqk"}> : () -> ()
    %cst_34 = arith.constant dense<0.000000e+00> : vector<8x8x8xf32>
    %74 = tpu.matmul %59, %66, %cst_34 {dimension_numbers = #tpu.dot_dimension_numbers<[2], [2], [1], [1], [0, 0, 0, 1, 1, 1], [0], [0]>} : vector<8x8x8xbf16>, vector<8x8x8xbf16>, vector<8x8x8xf32> -> vector<8x8x8xf32>
    "tpu.trace_stop"() : () -> ()
    %cst_35 = arith.constant 0.353553385 : f32
    %75 = vector.broadcast %cst_35 : f32 to vector<8x8x8xf32>
    %76 = arith.mulf %74, %75 : vector<8x8x8xf32>
    %77 = vector.broadcast %30 : vector<8x1x8xf32> to vector<8x8x8xf32>
    %78 = arith.addf %76, %77 : vector<8x8x8xf32>
    %cst_36 = arith.constant dense<0xFF800000> : vector<8x8xf32>
    %79 = vector.multi_reduction <maximumf>, %78, %cst_36 [2] : vector<8x8x8xf32> to vector<8x8xf32>
    %80 = vector.shape_cast %79 : vector<8x8xf32> to vector<8x8x1xf32>
    %81 = vector.broadcast %80 : vector<8x8x1xf32> to vector<8x8x8xf32>
    %82 = arith.subf %78, %81 : vector<8x8x8xf32>
    %83 = math.exp %82 : vector<8x8x8xf32>
    %cst_37 = arith.constant dense<0.000000e+00> : vector<8x8xf32>
    %84 = vector.multi_reduction <add>, %83, %cst_37 [2] : vector<8x8x8xf32> to vector<8x8xf32>
    %85 = vector.shape_cast %84 : vector<8x8xf32> to vector<8x8x1xf32>
    %86 = tpu.reciprocal %85 {approx = true} : vector<8x8x1xf32> -> vector<8x8x1xf32>
    %87 = vector.broadcast %86 : vector<8x8x1xf32> to vector<8x8x8xf32>
    %88 = arith.mulf %83, %87 : vector<8x8x8xf32>
    %89 = arith.truncf %88 : vector<8x8x8xf32> to vector<8x8x8xbf16>
    "tpu.trace_start"() <{level = 10 : i32, message = "bqk,bkd->bqd"}> : () -> ()
    %cst_38 = arith.constant dense<0.000000e+00> : vector<8x8x8xf32>
    %90 = tpu.matmul %89, %73, %cst_38 {dimension_numbers = #tpu.dot_dimension_numbers<[2], [1], [1], [2], [0, 0, 0, 1, 1, 2], [0], [0]>} : vector<8x8x8xbf16>, vector<8x8x8xbf16>, vector<8x8x8xf32> -> vector<8x8x8xf32>
    "tpu.trace_stop"() : () -> ()
    %91 = vector.extract_strided_slice %90 {offsets = [0, 0, 0], sizes = [2, 8, 8], strides = [1, 1, 1]} : vector<8x8x8xf32> to vector<2x8x8xf32>
    %92 = vector.extract_strided_slice %90 {offsets = [2, 0, 0], sizes = [2, 8, 8], strides = [1, 1, 1]} : vector<8x8x8xf32> to vector<2x8x8xf32>
    %93 = vector.extract_strided_slice %90 {offsets = [4, 0, 0], sizes = [2, 8, 8], strides = [1, 1, 1]} : vector<8x8x8xf32> to vector<2x8x8xf32>
    %94 = vector.extract_strided_slice %90 {offsets = [6, 0, 0], sizes = [2, 8, 8], strides = [1, 1, 1]} : vector<8x8x8xf32> to vector<2x8x8xf32>
    %95 = tpu.concatenate %91, %92, %93, %94 in 2 : vector<2x8x8xf32>, vector<2x8x8xf32>, vector<2x8x8xf32>, vector<2x8x8xf32> -> vector<2x8x32xf32>
    %96 = vector.shape_cast %95 : vector<2x8x32xf32> to vector<16x32xf32>
    %97 = arith.truncf %96 : vector<16x32xf32> to vector<16x32xbf16>
    %c0_39 = arith.constant 0 : index
    %c0_40 = arith.constant 0 : index
    %c0_41 = arith.constant 0 : index
    %98 = vector.load %arg11[%c0_39, %c0_40, %c0_41] : memref<2x32x32xbf16, #tpu.memory_space<vmem>>, vector<1x32x32xbf16>
    %99 = vector.shape_cast %98 : vector<1x32x32xbf16> to vector<32x32xbf16>
    %cst_42 = arith.constant dense<0.000000e+00> : vector<16x32xf32>
    %100 = tpu.matmul %97, %99, %cst_42 {dimension_numbers = #tpu.dot_dimension_numbers<[1], [0], [0], [1], [0, 0, 1, 1], [], []>} : vector<16x32xbf16>, vector<32x32xbf16>, vector<16x32xf32> -> vector<16x32xf32>
    %c0_43 = arith.constant 0 : index
    %c0_44 = arith.constant 0 : index
    %c0_45 = arith.constant 0 : index
    %101 = vector.load %arg12[%c0_43, %c0_44, %c0_45] : memref<2x1x32xf32, #tpu.memory_space<vmem>>, vector<1x1x32xf32>
    %102 = vector.shape_cast %101 : vector<1x1x32xf32> to vector<1x32xf32>
    %103 = vector.broadcast %102 : vector<1x32xf32> to vector<16x32xf32>
    %104 = arith.addf %100, %103 : vector<16x32xf32>
    %105 = arith.addf %104, %26 : vector<16x32xf32>
    %c0_46 = arith.constant 0 : index
    %c0_47 = arith.constant 0 : index
    %c0_48 = arith.constant 0 : index
    %106 = vector.load %arg13[%c0_46, %c0_47, %c0_48] : memref<2x1x32xf32, #tpu.memory_space<vmem>>, vector<1x1x32xf32>
    %107 = vector.shape_cast %106 : vector<1x1x32xf32> to vector<1x32xf32>
    %c0_49 = arith.constant 0 : index
    %c0_50 = arith.constant 0 : index
    %c0_51 = arith.constant 0 : index
    %108 = vector.load %arg14[%c0_49, %c0_50, %c0_51] : memref<2x1x32xf32, #tpu.memory_space<vmem>>, vector<1x1x32xf32>
    %109 = vector.shape_cast %108 : vector<1x1x32xf32> to vector<1x32xf32>
    %cst_52 = arith.constant dense<0.000000e+00> : vector<16xf32>
    %110 = vector.multi_reduction <add>, %105, %cst_52 [1] : vector<16x32xf32> to vector<16xf32>
    %111 = vector.shape_cast %110 : vector<16xf32> to vector<16x1xf32>
    %cst_53 = arith.constant 3.200000e+01 : f32
    %112 = vector.broadcast %cst_53 : f32 to vector<16x1xf32>
    %113 = arith.divf %111, %112 : vector<16x1xf32>
    %114 = vector.broadcast %113 : vector<16x1xf32> to vector<16x32xf32>
    %115 = arith.subf %105, %114 : vector<16x32xf32>
    %116 = arith.mulf %115, %115 : vector<16x32xf32>
    %cst_54 = arith.constant dense<0.000000e+00> : vector<16xf32>
    %117 = vector.multi_reduction <add>, %116, %cst_54 [1] : vector<16x32xf32> to vector<16xf32>
    %118 = vector.shape_cast %117 : vector<16xf32> to vector<16x1xf32>
    %cst_55 = arith.constant 3.200000e+01 : f32
    %119 = vector.broadcast %cst_55 : f32 to vector<16x1xf32>
    %120 = arith.divf %118, %119 : vector<16x1xf32>
    %121 = vector.broadcast %113 : vector<16x1xf32> to vector<16x32xf32>
    %122 = arith.subf %105, %121 : vector<16x32xf32>
    %cst_56 = arith.constant 9.99999996E-13 : f32
    %123 = vector.broadcast %cst_56 : f32 to vector<16x1xf32>
    %124 = arith.addf %120, %123 : vector<16x1xf32>
    %125 = math.rsqrt %124 : vector<16x1xf32>
    %126 = vector.broadcast %125 : vector<16x1xf32> to vector<16x32xf32>
    %127 = arith.mulf %122, %126 : vector<16x32xf32>
    %128 = vector.broadcast %107 : vector<1x32xf32> to vector<16x32xf32>
    %129 = arith.mulf %127, %128 : vector<16x32xf32>
    %130 = vector.broadcast %109 : vector<1x32xf32> to vector<16x32xf32>
    %131 = arith.addf %129, %130 : vector<16x32xf32>
    %132 = arith.truncf %131 : vector<16x32xf32> to vector<16x32xbf16>
    %c0_57 = arith.constant 0 : index
    %c0_58 = arith.constant 0 : index
    %c0_59 = arith.constant 0 : index
    %133 = vector.load %arg15[%c0_57, %c0_58, %c0_59] : memref<2x32x64xbf16, #tpu.memory_space<vmem>>, vector<1x32x64xbf16>
    %134 = vector.shape_cast %133 : vector<1x32x64xbf16> to vector<32x64xbf16>
    %cst_60 = arith.constant dense<0.000000e+00> : vector<16x64xf32>
    %135 = tpu.matmul %132, %134, %cst_60 {dimension_numbers = #tpu.dot_dimension_numbers<[1], [0], [0], [1], [0, 0, 1, 1], [], []>} : vector<16x32xbf16>, vector<32x64xbf16>, vector<16x64xf32> -> vector<16x64xf32>
    %c0_61 = arith.constant 0 : index
    %c0_62 = arith.constant 0 : index
    %c0_63 = arith.constant 0 : index
    %136 = vector.load %arg16[%c0_61, %c0_62, %c0_63] : memref<2x1x64xf32, #tpu.memory_space<vmem>>, vector<1x1x64xf32>
    %137 = vector.shape_cast %136 : vector<1x1x64xf32> to vector<1x64xf32>
    %138 = vector.broadcast %137 : vector<1x64xf32> to vector<16x64xf32>
    %139 = arith.addf %135, %138 : vector<16x64xf32>
    %140 = arith.mulf %139, %139 : vector<16x64xf32>
    %141 = arith.mulf %139, %140 : vector<16x64xf32>
    %cst_64 = arith.constant 4.471500e-02 : f32
    %142 = vector.broadcast %cst_64 : f32 to vector<16x64xf32>
    %143 = arith.mulf %142, %141 : vector<16x64xf32>
    %144 = arith.addf %139, %143 : vector<16x64xf32>
    %cst_65 = arith.constant 0.797884583 : f32
    %145 = vector.broadcast %cst_65 : f32 to vector<16x64xf32>
    %146 = arith.mulf %145, %144 : vector<16x64xf32>
    %147 = math.tanh %146 : vector<16x64xf32>
    %cst_66 = arith.constant 1.000000e+00 : f32
    %148 = vector.broadcast %cst_66 : f32 to vector<16x64xf32>
    %149 = arith.addf %148, %147 : vector<16x64xf32>
    %cst_67 = arith.constant 5.000000e-01 : f32
    %150 = vector.broadcast %cst_67 : f32 to vector<16x64xf32>
    %151 = arith.mulf %150, %149 : vector<16x64xf32>
    %152 = arith.mulf %139, %151 : vector<16x64xf32>
    %153 = arith.truncf %152 : vector<16x64xf32> to vector<16x64xbf16>
    %c0_68 = arith.constant 0 : index
    %c0_69 = arith.constant 0 : index
    %c0_70 = arith.constant 0 : index
    %154 = vector.load %arg17[%c0_68, %c0_69, %c0_70] : memref<2x64x32xbf16, #tpu.memory_space<vmem>>, vector<1x64x32xbf16>
    %155 = vector.shape_cast %154 : vector<1x64x32xbf16> to vector<64x32xbf16>
    %cst_71 = arith.constant dense<0.000000e+00> : vector<16x32xf32>
    %156 = tpu.matmul %153, %155, %cst_71 {dimension_numbers = #tpu.dot_dimension_numbers<[1], [0], [0], [1], [0, 0, 1, 1], [], []>} : vector<16x64xbf16>, vector<64x32xbf16>, vector<16x32xf32> -> vector<16x32xf32>
    %c0_72 = arith.constant 0 : index
    %c0_73 = arith.constant 0 : index
    %c0_74 = arith.constant 0 : index
    %157 = vector.load %arg18[%c0_72, %c0_73, %c0_74] : memref<2x1x32xf32, #tpu.memory_space<vmem>>, vector<1x1x32xf32>
    %158 = vector.shape_cast %157 : vector<1x1x32xf32> to vector<1x32xf32>
    %159 = vector.broadcast %158 : vector<1x32xf32> to vector<16x32xf32>
    %160 = arith.addf %156, %159 : vector<16x32xf32>
    %161 = arith.addf %160, %131 : vector<16x32xf32>
    %c0_75 = arith.constant 0 : index
    %c0_76 = arith.constant 0 : index
    %c0_77 = arith.constant 0 : index
    %162 = vector.load %arg19[%c0_75, %c0_76, %c0_77] : memref<2x1x32xf32, #tpu.memory_space<vmem>>, vector<1x1x32xf32>
    %163 = vector.shape_cast %162 : vector<1x1x32xf32> to vector<1x32xf32>
    %c0_78 = arith.constant 0 : index
    %c0_79 = arith.constant 0 : index
    %c0_80 = arith.constant 0 : index
    %164 = vector.load %arg20[%c0_78, %c0_79, %c0_80] : memref<2x1x32xf32, #tpu.memory_space<vmem>>, vector<1x1x32xf32>
    %165 = vector.shape_cast %164 : vector<1x1x32xf32> to vector<1x32xf32>
    %cst_81 = arith.constant dense<0.000000e+00> : vector<16xf32>
    %166 = vector.multi_reduction <add>, %161, %cst_81 [1] : vector<16x32xf32> to vector<16xf32>
    %167 = vector.shape_cast %166 : vector<16xf32> to vector<16x1xf32>
    %cst_82 = arith.constant 3.200000e+01 : f32
    %168 = vector.broadcast %cst_82 : f32 to vector<16x1xf32>
    %169 = arith.divf %167, %168 : vector<16x1xf32>
    %170 = vector.broadcast %169 : vector<16x1xf32> to vector<16x32xf32>
    %171 = arith.subf %161, %170 : vector<16x32xf32>
    %172 = arith.mulf %171, %171 : vector<16x32xf32>
    %cst_83 = arith.constant dense<0.000000e+00> : vector<16xf32>
    %173 = vector.multi_reduction <add>, %172, %cst_83 [1] : vector<16x32xf32> to vector<16xf32>
    %174 = vector.shape_cast %173 : vector<16xf32> to vector<16x1xf32>
    %cst_84 = arith.constant 3.200000e+01 : f32
    %175 = vector.broadcast %cst_84 : f32 to vector<16x1xf32>
    %176 = arith.divf %174, %175 : vector<16x1xf32>
    %177 = vector.broadcast %169 : vector<16x1xf32> to vector<16x32xf32>
    %178 = arith.subf %161, %177 : vector<16x32xf32>
    %cst_85 = arith.constant 9.99999996E-13 : f32
    %179 = vector.broadcast %cst_85 : f32 to vector<16x1xf32>
    %180 = arith.addf %176, %179 : vector<16x1xf32>
    %181 = math.rsqrt %180 : vector<16x1xf32>
    %182 = vector.broadcast %181 : vector<16x1xf32> to vector<16x32xf32>
    %183 = arith.mulf %178, %182 : vector<16x32xf32>
    %184 = vector.broadcast %163 : vector<1x32xf32> to vector<16x32xf32>
    %185 = arith.mulf %183, %184 : vector<16x32xf32>
    %186 = vector.broadcast %165 : vector<1x32xf32> to vector<16x32xf32>
    %187 = arith.addf %185, %186 : vector<16x32xf32>
    %188 = arith.truncf %187 : vector<16x32xf32> to vector<16x32xbf16>
    %c1 = arith.constant 1 : index
    %c0_86 = arith.constant 0 : index
    %c0_87 = arith.constant 0 : index
    %189 = vector.load %arg5[%c1, %c0_86, %c0_87] : memref<2x32x32xbf16, #tpu.memory_space<vmem>>, vector<1x32x32xbf16>
    %190 = vector.shape_cast %189 : vector<1x32x32xbf16> to vector<32x32xbf16>
    %cst_88 = arith.constant dense<0.000000e+00> : vector<16x32xf32>
    %191 = tpu.matmul %188, %190, %cst_88 {dimension_numbers = #tpu.dot_dimension_numbers<[1], [0], [0], [1], [0, 0, 1, 1], [], []>} : vector<16x32xbf16>, vector<32x32xbf16>, vector<16x32xf32> -> vector<16x32xf32>
    %c1_89 = arith.constant 1 : index
    %c0_90 = arith.constant 0 : index
    %c0_91 = arith.constant 0 : index
    %192 = vector.load %arg6[%c1_89, %c0_90, %c0_91] : memref<2x1x32xf32, #tpu.memory_space<vmem>>, vector<1x1x32xf32>
    %193 = vector.shape_cast %192 : vector<1x1x32xf32> to vector<1x32xf32>
    %194 = vector.broadcast %193 : vector<1x32xf32> to vector<16x32xf32>
    %195 = arith.addf %191, %194 : vector<16x32xf32>
    %c1_92 = arith.constant 1 : index
    %c0_93 = arith.constant 0 : index
    %c0_94 = arith.constant 0 : index
    %196 = vector.load %arg7[%c1_92, %c0_93, %c0_94] : memref<2x32x32xbf16, #tpu.memory_space<vmem>>, vector<1x32x32xbf16>
    %197 = vector.shape_cast %196 : vector<1x32x32xbf16> to vector<32x32xbf16>
    %cst_95 = arith.constant dense<0.000000e+00> : vector<16x32xf32>
    %198 = tpu.matmul %188, %197, %cst_95 {dimension_numbers = #tpu.dot_dimension_numbers<[1], [0], [0], [1], [0, 0, 1, 1], [], []>} : vector<16x32xbf16>, vector<32x32xbf16>, vector<16x32xf32> -> vector<16x32xf32>
    %c1_96 = arith.constant 1 : index
    %c0_97 = arith.constant 0 : index
    %c0_98 = arith.constant 0 : index
    %199 = vector.load %arg8[%c1_96, %c0_97, %c0_98] : memref<2x1x32xf32, #tpu.memory_space<vmem>>, vector<1x1x32xf32>
    %200 = vector.shape_cast %199 : vector<1x1x32xf32> to vector<1x32xf32>
    %201 = vector.broadcast %200 : vector<1x32xf32> to vector<16x32xf32>
    %202 = arith.addf %198, %201 : vector<16x32xf32>
    %c1_99 = arith.constant 1 : index
    %c0_100 = arith.constant 0 : index
    %c0_101 = arith.constant 0 : index
    %203 = vector.load %arg9[%c1_99, %c0_100, %c0_101] : memref<2x32x32xbf16, #tpu.memory_space<vmem>>, vector<1x32x32xbf16>
    %204 = vector.shape_cast %203 : vector<1x32x32xbf16> to vector<32x32xbf16>
    %cst_102 = arith.constant dense<0.000000e+00> : vector<16x32xf32>
    %205 = tpu.matmul %188, %204, %cst_102 {dimension_numbers = #tpu.dot_dimension_numbers<[1], [0], [0], [1], [0, 0, 1, 1], [], []>} : vector<16x32xbf16>, vector<32x32xbf16>, vector<16x32xf32> -> vector<16x32xf32>
    %c1_103 = arith.constant 1 : index
    %c0_104 = arith.constant 0 : index
    %c0_105 = arith.constant 0 : index
    %206 = vector.load %arg10[%c1_103, %c0_104, %c0_105] : memref<2x1x32xf32, #tpu.memory_space<vmem>>, vector<1x1x32xf32>
    %207 = vector.shape_cast %206 : vector<1x1x32xf32> to vector<1x32xf32>
    %208 = vector.broadcast %207 : vector<1x32xf32> to vector<16x32xf32>
    %209 = arith.addf %205, %208 : vector<16x32xf32>
    %210 = vector.shape_cast %195 : vector<16x32xf32> to vector<2x8x32xf32>
    %211 = vector.extract_strided_slice %210 {offsets = [0, 0, 0], sizes = [2, 8, 8], strides = [1, 1, 1]} : vector<2x8x32xf32> to vector<2x8x8xf32>
    %212 = vector.extract_strided_slice %210 {offsets = [0, 0, 8], sizes = [2, 8, 8], strides = [1, 1, 1]} : vector<2x8x32xf32> to vector<2x8x8xf32>
    %213 = vector.extract_strided_slice %210 {offsets = [0, 0, 16], sizes = [2, 8, 8], strides = [1, 1, 1]} : vector<2x8x32xf32> to vector<2x8x8xf32>
    %214 = vector.extract_strided_slice %210 {offsets = [0, 0, 24], sizes = [2, 8, 8], strides = [1, 1, 1]} : vector<2x8x32xf32> to vector<2x8x8xf32>
    %215 = tpu.concatenate %211, %212, %213, %214 in 0 : vector<2x8x8xf32>, vector<2x8x8xf32>, vector<2x8x8xf32>, vector<2x8x8xf32> -> vector<8x8x8xf32>
    %216 = arith.truncf %215 : vector<8x8x8xf32> to vector<8x8x8xbf16>
    %217 = vector.shape_cast %202 : vector<16x32xf32> to vector<2x8x32xf32>
    %218 = vector.extract_strided_slice %217 {offsets = [0, 0, 0], sizes = [2, 8, 8], strides = [1, 1, 1]} : vector<2x8x32xf32> to vector<2x8x8xf32>
    %219 = vector.extract_strided_slice %217 {offsets = [0, 0, 8], sizes = [2, 8, 8], strides = [1, 1, 1]} : vector<2x8x32xf32> to vector<2x8x8xf32>
    %220 = vector.extract_strided_slice %217 {offsets = [0, 0, 16], sizes = [2, 8, 8], strides = [1, 1, 1]} : vector<2x8x32xf32> to vector<2x8x8xf32>
    %221 = vector.extract_strided_slice %217 {offsets = [0, 0, 24], sizes = [2, 8, 8], strides = [1, 1, 1]} : vector<2x8x32xf32> to vector<2x8x8xf32>
    %222 = tpu.concatenate %218, %219, %220, %221 in 0 : vector<2x8x8xf32>, vector<2x8x8xf32>, vector<2x8x8xf32>, vector<2x8x8xf32> -> vector<8x8x8xf32>
    %223 = arith.truncf %222 : vector<8x8x8xf32> to vector<8x8x8xbf16>
    %224 = vector.shape_cast %209 : vector<16x32xf32> to vector<2x8x32xf32>
    %225 = vector.extract_strided_slice %224 {offsets = [0, 0, 0], sizes = [2, 8, 8], strides = [1, 1, 1]} : vector<2x8x32xf32> to vector<2x8x8xf32>
    %226 = vector.extract_strided_slice %224 {offsets = [0, 0, 8], sizes = [2, 8, 8], strides = [1, 1, 1]} : vector<2x8x32xf32> to vector<2x8x8xf32>
    %227 = vector.extract_strided_slice %224 {offsets = [0, 0, 16], sizes = [2, 8, 8], strides = [1, 1, 1]} : vector<2x8x32xf32> to vector<2x8x8xf32>
    %228 = vector.extract_strided_slice %224 {offsets = [0, 0, 24], sizes = [2, 8, 8], strides = [1, 1, 1]} : vector<2x8x32xf32> to vector<2x8x8xf32>
    %229 = tpu.concatenate %225, %226, %227, %228 in 0 : vector<2x8x8xf32>, vector<2x8x8xf32>, vector<2x8x8xf32>, vector<2x8x8xf32> -> vector<8x8x8xf32>
    %230 = arith.truncf %229 : vector<8x8x8xf32> to vector<8x8x8xbf16>
    "tpu.trace_start"() <{level = 10 : i32, message = "bqd,bkd->bqk"}> : () -> ()
    %cst_106 = arith.constant dense<0.000000e+00> : vector<8x8x8xf32>
    %231 = tpu.matmul %216, %223, %cst_106 {dimension_numbers = #tpu.dot_dimension_numbers<[2], [2], [1], [1], [0, 0, 0, 1, 1, 1], [0], [0]>} : vector<8x8x8xbf16>, vector<8x8x8xbf16>, vector<8x8x8xf32> -> vector<8x8x8xf32>
    "tpu.trace_stop"() : () -> ()
    %cst_107 = arith.constant 0.353553385 : f32
    %232 = vector.broadcast %cst_107 : f32 to vector<8x8x8xf32>
    %233 = arith.mulf %231, %232 : vector<8x8x8xf32>
    %234 = vector.broadcast %30 : vector<8x1x8xf32> to vector<8x8x8xf32>
    %235 = arith.addf %233, %234 : vector<8x8x8xf32>
    %cst_108 = arith.constant dense<0xFF800000> : vector<8x8xf32>
    %236 = vector.multi_reduction <maximumf>, %235, %cst_108 [2] : vector<8x8x8xf32> to vector<8x8xf32>
    %237 = vector.shape_cast %236 : vector<8x8xf32> to vector<8x8x1xf32>
    %238 = vector.broadcast %237 : vector<8x8x1xf32> to vector<8x8x8xf32>
    %239 = arith.subf %235, %238 : vector<8x8x8xf32>
    %240 = math.exp %239 : vector<8x8x8xf32>
    %cst_109 = arith.constant dense<0.000000e+00> : vector<8x8xf32>
    %241 = vector.multi_reduction <add>, %240, %cst_109 [2] : vector<8x8x8xf32> to vector<8x8xf32>
    %242 = vector.shape_cast %241 : vector<8x8xf32> to vector<8x8x1xf32>
    %243 = tpu.reciprocal %242 {approx = true} : vector<8x8x1xf32> -> vector<8x8x1xf32>
    %244 = vector.broadcast %243 : vector<8x8x1xf32> to vector<8x8x8xf32>
    %245 = arith.mulf %240, %244 : vector<8x8x8xf32>
    %246 = arith.truncf %245 : vector<8x8x8xf32> to vector<8x8x8xbf16>
    "tpu.trace_start"() <{level = 10 : i32, message = "bqk,bkd->bqd"}> : () -> ()
    %cst_110 = arith.constant dense<0.000000e+00> : vector<8x8x8xf32>
    %247 = tpu.matmul %246, %230, %cst_110 {dimension_numbers = #tpu.dot_dimension_numbers<[2], [1], [1], [2], [0, 0, 0, 1, 1, 2], [0], [0]>} : vector<8x8x8xbf16>, vector<8x8x8xbf16>, vector<8x8x8xf32> -> vector<8x8x8xf32>
    "tpu.trace_stop"() : () -> ()
    %248 = vector.extract_strided_slice %247 {offsets = [0, 0, 0], sizes = [2, 8, 8], strides = [1, 1, 1]} : vector<8x8x8xf32> to vector<2x8x8xf32>
    %249 = vector.extract_strided_slice %247 {offsets = [2, 0, 0], sizes = [2, 8, 8], strides = [1, 1, 1]} : vector<8x8x8xf32> to vector<2x8x8xf32>
    %250 = vector.extract_strided_slice %247 {offsets = [4, 0, 0], sizes = [2, 8, 8], strides = [1, 1, 1]} : vector<8x8x8xf32> to vector<2x8x8xf32>
    %251 = vector.extract_strided_slice %247 {offsets = [6, 0, 0], sizes = [2, 8, 8], strides = [1, 1, 1]} : vector<8x8x8xf32> to vector<2x8x8xf32>
    %252 = tpu.concatenate %248, %249, %250, %251 in 2 : vector<2x8x8xf32>, vector<2x8x8xf32>, vector<2x8x8xf32>, vector<2x8x8xf32> -> vector<2x8x32xf32>
    %253 = vector.shape_cast %252 : vector<2x8x32xf32> to vector<16x32xf32>
    %254 = arith.truncf %253 : vector<16x32xf32> to vector<16x32xbf16>
    %c1_111 = arith.constant 1 : index
    %c0_112 = arith.constant 0 : index
    %c0_113 = arith.constant 0 : index
    %255 = vector.load %arg11[%c1_111, %c0_112, %c0_113] : memref<2x32x32xbf16, #tpu.memory_space<vmem>>, vector<1x32x32xbf16>
    %256 = vector.shape_cast %255 : vector<1x32x32xbf16> to vector<32x32xbf16>
    %cst_114 = arith.constant dense<0.000000e+00> : vector<16x32xf32>
    %257 = tpu.matmul %254, %256, %cst_114 {dimension_numbers = #tpu.dot_dimension_numbers<[1], [0], [0], [1], [0, 0, 1, 1], [], []>} : vector<16x32xbf16>, vector<32x32xbf16>, vector<16x32xf32> -> vector<16x32xf32>
    %c1_115 = arith.constant 1 : index
    %c0_116 = arith.constant 0 : index
    %c0_117 = arith.constant 0 : index
    %258 = vector.load %arg12[%c1_115, %c0_116, %c0_117] : memref<2x1x32xf32, #tpu.memory_space<vmem>>, vector<1x1x32xf32>
    %259 = vector.shape_cast %258 : vector<1x1x32xf32> to vector<1x32xf32>
    %260 = vector.broadcast %259 : vector<1x32xf32> to vector<16x32xf32>
    %261 = arith.addf %257, %260 : vector<16x32xf32>
    %262 = arith.addf %261, %187 : vector<16x32xf32>
    %c1_118 = arith.constant 1 : index
    %c0_119 = arith.constant 0 : index
    %c0_120 = arith.constant 0 : index
    %263 = vector.load %arg13[%c1_118, %c0_119, %c0_120] : memref<2x1x32xf32, #tpu.memory_space<vmem>>, vector<1x1x32xf32>
    %264 = vector.shape_cast %263 : vector<1x1x32xf32> to vector<1x32xf32>
    %c1_121 = arith.constant 1 : index
    %c0_122 = arith.constant 0 : index
    %c0_123 = arith.constant 0 : index
    %265 = vector.load %arg14[%c1_121, %c0_122, %c0_123] : memref<2x1x32xf32, #tpu.memory_space<vmem>>, vector<1x1x32xf32>
    %266 = vector.shape_cast %265 : vector<1x1x32xf32> to vector<1x32xf32>
    %cst_124 = arith.constant dense<0.000000e+00> : vector<16xf32>
    %267 = vector.multi_reduction <add>, %262, %cst_124 [1] : vector<16x32xf32> to vector<16xf32>
    %268 = vector.shape_cast %267 : vector<16xf32> to vector<16x1xf32>
    %cst_125 = arith.constant 3.200000e+01 : f32
    %269 = vector.broadcast %cst_125 : f32 to vector<16x1xf32>
    %270 = arith.divf %268, %269 : vector<16x1xf32>
    %271 = vector.broadcast %270 : vector<16x1xf32> to vector<16x32xf32>
    %272 = arith.subf %262, %271 : vector<16x32xf32>
    %273 = arith.mulf %272, %272 : vector<16x32xf32>
    %cst_126 = arith.constant dense<0.000000e+00> : vector<16xf32>
    %274 = vector.multi_reduction <add>, %273, %cst_126 [1] : vector<16x32xf32> to vector<16xf32>
    %275 = vector.shape_cast %274 : vector<16xf32> to vector<16x1xf32>
    %cst_127 = arith.constant 3.200000e+01 : f32
    %276 = vector.broadcast %cst_127 : f32 to vector<16x1xf32>
    %277 = arith.divf %275, %276 : vector<16x1xf32>
    %278 = vector.broadcast %270 : vector<16x1xf32> to vector<16x32xf32>
    %279 = arith.subf %262, %278 : vector<16x32xf32>
    %cst_128 = arith.constant 9.99999996E-13 : f32
    %280 = vector.broadcast %cst_128 : f32 to vector<16x1xf32>
    %281 = arith.addf %277, %280 : vector<16x1xf32>
    %282 = math.rsqrt %281 : vector<16x1xf32>
    %283 = vector.broadcast %282 : vector<16x1xf32> to vector<16x32xf32>
    %284 = arith.mulf %279, %283 : vector<16x32xf32>
    %285 = vector.broadcast %264 : vector<1x32xf32> to vector<16x32xf32>
    %286 = arith.mulf %284, %285 : vector<16x32xf32>
    %287 = vector.broadcast %266 : vector<1x32xf32> to vector<16x32xf32>
    %288 = arith.addf %286, %287 : vector<16x32xf32>
    %289 = arith.truncf %288 : vector<16x32xf32> to vector<16x32xbf16>
    %c1_129 = arith.constant 1 : index
    %c0_130 = arith.constant 0 : index
    %c0_131 = arith.constant 0 : index
    %290 = vector.load %arg15[%c1_129, %c0_130, %c0_131] : memref<2x32x64xbf16, #tpu.memory_space<vmem>>, vector<1x32x64xbf16>
    %291 = vector.shape_cast %290 : vector<1x32x64xbf16> to vector<32x64xbf16>
    %cst_132 = arith.constant dense<0.000000e+00> : vector<16x64xf32>
    %292 = tpu.matmul %289, %291, %cst_132 {dimension_numbers = #tpu.dot_dimension_numbers<[1], [0], [0], [1], [0, 0, 1, 1], [], []>} : vector<16x32xbf16>, vector<32x64xbf16>, vector<16x64xf32> -> vector<16x64xf32>
    %c1_133 = arith.constant 1 : index
    %c0_134 = arith.constant 0 : index
    %c0_135 = arith.constant 0 : index
    %293 = vector.load %arg16[%c1_133, %c0_134, %c0_135] : memref<2x1x64xf32, #tpu.memory_space<vmem>>, vector<1x1x64xf32>
    %294 = vector.shape_cast %293 : vector<1x1x64xf32> to vector<1x64xf32>
    %295 = vector.broadcast %294 : vector<1x64xf32> to vector<16x64xf32>
    %296 = arith.addf %292, %295 : vector<16x64xf32>
    %297 = arith.mulf %296, %296 : vector<16x64xf32>
    %298 = arith.mulf %296, %297 : vector<16x64xf32>
    %cst_136 = arith.constant 4.471500e-02 : f32
    %299 = vector.broadcast %cst_136 : f32 to vector<16x64xf32>
    %300 = arith.mulf %299, %298 : vector<16x64xf32>
    %301 = arith.addf %296, %300 : vector<16x64xf32>
    %cst_137 = arith.constant 0.797884583 : f32
    %302 = vector.broadcast %cst_137 : f32 to vector<16x64xf32>
    %303 = arith.mulf %302, %301 : vector<16x64xf32>
    %304 = math.tanh %303 : vector<16x64xf32>
    %cst_138 = arith.constant 1.000000e+00 : f32
    %305 = vector.broadcast %cst_138 : f32 to vector<16x64xf32>
    %306 = arith.addf %305, %304 : vector<16x64xf32>
    %cst_139 = arith.constant 5.000000e-01 : f32
    %307 = vector.broadcast %cst_139 : f32 to vector<16x64xf32>
    %308 = arith.mulf %307, %306 : vector<16x64xf32>
    %309 = arith.mulf %296, %308 : vector<16x64xf32>
    %310 = arith.truncf %309 : vector<16x64xf32> to vector<16x64xbf16>
    %c1_140 = arith.constant 1 : index
    %c0_141 = arith.constant 0 : index
    %c0_142 = arith.constant 0 : index
    %311 = vector.load %arg17[%c1_140, %c0_141, %c0_142] : memref<2x64x32xbf16, #tpu.memory_space<vmem>>, vector<1x64x32xbf16>
    %312 = vector.shape_cast %311 : vector<1x64x32xbf16> to vector<64x32xbf16>
    %cst_143 = arith.constant dense<0.000000e+00> : vector<16x32xf32>
    %313 = tpu.matmul %310, %312, %cst_143 {dimension_numbers = #tpu.dot_dimension_numbers<[1], [0], [0], [1], [0, 0, 1, 1], [], []>} : vector<16x64xbf16>, vector<64x32xbf16>, vector<16x32xf32> -> vector<16x32xf32>
    %c1_144 = arith.constant 1 : index
    %c0_145 = arith.constant 0 : index
    %c0_146 = arith.constant 0 : index
    %314 = vector.load %arg18[%c1_144, %c0_145, %c0_146] : memref<2x1x32xf32, #tpu.memory_space<vmem>>, vector<1x1x32xf32>
    %315 = vector.shape_cast %314 : vector<1x1x32xf32> to vector<1x32xf32>
    %316 = vector.broadcast %315 : vector<1x32xf32> to vector<16x32xf32>
    %317 = arith.addf %313, %316 : vector<16x32xf32>
    %318 = arith.addf %317, %288 : vector<16x32xf32>
    %c1_147 = arith.constant 1 : index
    %c0_148 = arith.constant 0 : index
    %c0_149 = arith.constant 0 : index
    %319 = vector.load %arg19[%c1_147, %c0_148, %c0_149] : memref<2x1x32xf32, #tpu.memory_space<vmem>>, vector<1x1x32xf32>
    %320 = vector.shape_cast %319 : vector<1x1x32xf32> to vector<1x32xf32>
    %c1_150 = arith.constant 1 : index
    %c0_151 = arith.constant 0 : index
    %c0_152 = arith.constant 0 : index
    %321 = vector.load %arg20[%c1_150, %c0_151, %c0_152] : memref<2x1x32xf32, #tpu.memory_space<vmem>>, vector<1x1x32xf32>
    %322 = vector.shape_cast %321 : vector<1x1x32xf32> to vector<1x32xf32>
    %cst_153 = arith.constant dense<0.000000e+00> : vector<16xf32>
    %323 = vector.multi_reduction <add>, %318, %cst_153 [1] : vector<16x32xf32> to vector<16xf32>
    %324 = vector.shape_cast %323 : vector<16xf32> to vector<16x1xf32>
    %cst_154 = arith.constant 3.200000e+01 : f32
    %325 = vector.broadcast %cst_154 : f32 to vector<16x1xf32>
    %326 = arith.divf %324, %325 : vector<16x1xf32>
    %327 = vector.broadcast %326 : vector<16x1xf32> to vector<16x32xf32>
    %328 = arith.subf %318, %327 : vector<16x32xf32>
    %329 = arith.mulf %328, %328 : vector<16x32xf32>
    %cst_155 = arith.constant dense<0.000000e+00> : vector<16xf32>
    %330 = vector.multi_reduction <add>, %329, %cst_155 [1] : vector<16x32xf32> to vector<16xf32>
    %331 = vector.shape_cast %330 : vector<16xf32> to vector<16x1xf32>
    %cst_156 = arith.constant 3.200000e+01 : f32
    %332 = vector.broadcast %cst_156 : f32 to vector<16x1xf32>
    %333 = arith.divf %331, %332 : vector<16x1xf32>
    %334 = vector.broadcast %326 : vector<16x1xf32> to vector<16x32xf32>
    %335 = arith.subf %318, %334 : vector<16x32xf32>
    %cst_157 = arith.constant 9.99999996E-13 : f32
    %336 = vector.broadcast %cst_157 : f32 to vector<16x1xf32>
    %337 = arith.addf %333, %336 : vector<16x1xf32>
    %338 = math.rsqrt %337 : vector<16x1xf32>
    %339 = vector.broadcast %338 : vector<16x1xf32> to vector<16x32xf32>
    %340 = arith.mulf %335, %339 : vector<16x32xf32>
    %341 = vector.broadcast %320 : vector<1x32xf32> to vector<16x32xf32>
    %342 = arith.mulf %340, %341 : vector<16x32xf32>
    %343 = vector.broadcast %322 : vector<1x32xf32> to vector<16x32xf32>
    %344 = arith.addf %342, %343 : vector<16x32xf32>
    %345 = vector.shape_cast %344 : vector<16x32xf32> to vector<2x8x32xf32>
    %346 = vector.extract_strided_slice %345 {offsets = [0, 0, 0], sizes = [2, 1, 32], strides = [1, 1, 1]} : vector<2x8x32xf32> to vector<2x1x32xf32>
    %347 = vector.shape_cast %346 : vector<2x1x32xf32> to vector<2x32xf32>
    %c0_158 = arith.constant 0 : index
    %c0_159 = arith.constant 0 : index
    %c0_160 = arith.constant 0 : index
    %348 = vector.load %arg21[%c0_158, %c0_159, %c0_160] : memref<1x2x32xf32, #tpu.memory_space<vmem>>, vector<1x2x32xf32>
    %349 = vector.shape_cast %348 : vector<1x2x32xf32> to vector<2x32xf32>
    %350 = vector.shape_cast %347 : vector<2x32xf32> to vector<1x2x32xf32>
    tpu.vector_store %arg21[%c0_158, %c0_159, %c0_160], %350 {strides = array<i32>} : memref<1x2x32xf32, #tpu.memory_space<vmem>>, vector<1x2x32xf32>,
    return
  }
  func.func @transform_0(%arg0: i32) -> (i32, i32, i32) {
    %c0_i32 = arith.constant 0 : i32
    %c0_i32_0 = arith.constant 0 : i32
    %c0_i32_1 = arith.constant 0 : i32
    return %arg0, %c0_i32, %c0_i32_0 : i32, i32, i32
  }
  func.func @transform_1(%arg0: i32) -> (i32, i32, i32) {
    %c0_i32 = arith.constant 0 : i32
    %c0_i32_0 = arith.constant 0 : i32
    %c0_i32_1 = arith.constant 0 : i32
    return %arg0, %c0_i32, %c0_i32_0 : i32, i32, i32
  }
  func.func @transform_2(%arg0: i32) -> (i32, i32) {
    %c0_i32 = arith.constant 0 : i32
    %c0_i32_0 = arith.constant 0 : i32
    %c0_i32_1 = arith.constant 0 : i32
    return %c0_i32, %c0_i32_0 : i32, i32
  }
  func.func @transform_3(%arg0: i32) -> (i32, i32) {
    %c0_i32 = arith.constant 0 : i32
    %c0_i32_0 = arith.constant 0 : i32
    %c0_i32_1 = arith.constant 0 : i32
    return %c0_i32, %c0_i32_0 : i32, i32
  }
  func.func @transform_4(%arg0: i32) -> (i32, i32, i32) {
    %c0_i32 = arith.constant 0 : i32
    %c0_i32_0 = arith.constant 0 : i32
    %c0_i32_1 = arith.constant 0 : i32
    %c0_i32_2 = arith.constant 0 : i32
    return %c0_i32, %c0_i32_0, %c0_i32_1 : i32, i32, i32
  }
  func.func @transform_5(%arg0: i32) -> (i32, i32, i32) {
    %c0_i32 = arith.constant 0 : i32
    %c0_i32_0 = arith.constant 0 : i32
    %c0_i32_1 = arith.constant 0 : i32
    %c0_i32_2 = arith.constant 0 : i32
    return %c0_i32, %c0_i32_0, %c0_i32_1 : i32, i32, i32
  }
  func.func @transform_6(%arg0: i32) -> (i32, i32, i32) {
    %c0_i32 = arith.constant 0 : i32
    %c0_i32_0 = arith.constant 0 : i32
    %c0_i32_1 = arith.constant 0 : i32
    %c0_i32_2 = arith.constant 0 : i32
    return %c0_i32, %c0_i32_0, %c0_i32_1 : i32, i32, i32
  }
  func.func @transform_7(%arg0: i32) -> (i32, i32, i32) {
    %c0_i32 = arith.constant 0 : i32
    %c0_i32_0 = arith.constant 0 : i32
    %c0_i32_1 = arith.constant 0 : i32
    %c0_i32_2 = arith.constant 0 : i32
    return %c0_i32, %c0_i32_0, %c0_i32_1 : i32, i32, i32
  }
  func.func @transform_8(%arg0: i32) -> (i32, i32, i32) {
    %c0_i32 = arith.constant 0 : i32
    %c0_i32_0 = arith.constant 0 : i32
    %c0_i32_1 = arith.constant 0 : i32
    %c0_i32_2 = arith.constant 0 : i32
    return %c0_i32, %c0_i32_0, %c0_i32_1 : i32, i32, i32
  }
  func.func @transform_9(%arg0: i32) -> (i32, i32, i32) {
    %c0_i32 = arith.constant 0 : i32
    %c0_i32_0 = arith.constant 0 : i32
    %c0_i32_1 = arith.constant 0 : i32
    %c0_i32_2 = arith.constant 0 : i32
    return %c0_i32, %c0_i32_0, %c0_i32_1 : i32, i32, i32
  }
  func.func @transform_10(%arg0: i32) -> (i32, i32, i32) {
    %c0_i32 = arith.constant 0 : i32
    %c0_i32_0 = arith.constant 0 : i32
    %c0_i32_1 = arith.constant 0 : i32
    %c0_i32_2 = arith.constant 0 : i32
    return %c0_i32, %c0_i32_0, %c0_i32_1 : i32, i32, i32
  }
  func.func @transform_11(%arg0: i32) -> (i32, i32, i32) {
    %c0_i32 = arith.constant 0 : i32
    %c0_i32_0 = arith.constant 0 : i32
    %c0_i32_1 = arith.constant 0 : i32
    %c0_i32_2 = arith.constant 0 : i32
    return %c0_i32, %c0_i32_0, %c0_i32_1 : i32, i32, i32
  }
  func.func @transform_12(%arg0: i32) -> (i32, i32, i32) {
    %c0_i32 = arith.constant 0 : i32
    %c0_i32_0 = arith.constant 0 : i32
    %c0_i32_1 = arith.constant 0 : i32
    %c0_i32_2 = arith.constant 0 : i32
    return %c0_i32, %c0_i32_0, %c0_i32_1 : i32, i32, i32
  }
  func.func @transform_13(%arg0: i32) -> (i32, i32, i32) {
    %c0_i32 = arith.constant 0 : i32
    %c0_i32_0 = arith.constant 0 : i32
    %c0_i32_1 = arith.constant 0 : i32
    %c0_i32_2 = arith.constant 0 : i32
    return %c0_i32, %c0_i32_0, %c0_i32_1 : i32, i32, i32
  }
  func.func @transform_14(%arg0: i32) -> (i32, i32, i32) {
    %c0_i32 = arith.constant 0 : i32
    %c0_i32_0 = arith.constant 0 : i32
    %c0_i32_1 = arith.constant 0 : i32
    %c0_i32_2 = arith.constant 0 : i32
    return %c0_i32, %c0_i32_0, %c0_i32_1 : i32, i32, i32
  }
  func.func @transform_15(%arg0: i32) -> (i32, i32, i32) {
    %c0_i32 = arith.constant 0 : i32
    %c0_i32_0 = arith.constant 0 : i32
    %c0_i32_1 = arith.constant 0 : i32
    %c0_i32_2 = arith.constant 0 : i32
    return %c0_i32, %c0_i32_0, %c0_i32_1 : i32, i32, i32
  }
  func.func @transform_16(%arg0: i32) -> (i32, i32, i32) {
    %c0_i32 = arith.constant 0 : i32
    %c0_i32_0 = arith.constant 0 : i32
    %c0_i32_1 = arith.constant 0 : i32
    %c0_i32_2 = arith.constant 0 : i32
    return %c0_i32, %c0_i32_0, %c0_i32_1 : i32, i32, i32
  }
  func.func @transform_17(%arg0: i32) -> (i32, i32, i32) {
    %c0_i32 = arith.constant 0 : i32
    %c0_i32_0 = arith.constant 0 : i32
    %c0_i32_1 = arith.constant 0 : i32
    %c0_i32_2 = arith.constant 0 : i32
    return %c0_i32, %c0_i32_0, %c0_i32_1 : i32, i32, i32
  }
  func.func @transform_18(%arg0: i32) -> (i32, i32, i32) {
    %c0_i32 = arith.constant 0 : i32
    %c0_i32_0 = arith.constant 0 : i32
    %c0_i32_1 = arith.constant 0 : i32
    %c0_i32_2 = arith.constant 0 : i32
    return %c0_i32, %c0_i32_0, %c0_i32_1 : i32, i32, i32
  }
  func.func @transform_19(%arg0: i32) -> (i32, i32, i32) {
    %c0_i32 = arith.constant 0 : i32
    %c0_i32_0 = arith.constant 0 : i32
    %c0_i32_1 = arith.constant 0 : i32
    %c0_i32_2 = arith.constant 0 : i32
    return %c0_i32, %c0_i32_0, %c0_i32_1 : i32, i32, i32
  }
  func.func @transform_20(%arg0: i32) -> (i32, i32, i32) {
    %c0_i32 = arith.constant 0 : i32
    %c0_i32_0 = arith.constant 0 : i32
    %c0_i32_1 = arith.constant 0 : i32
    return %arg0, %c0_i32, %c0_i32_0 : i32, i32, i32
  }
}

</mosaic_0001>

<llo_original>
// kernel: chunkbert_forward.1
$region0: #{chunkbert_forward.1}
  #allocation0 [shape = 'u32[]', space=smem, size = 0x4, offset = 0x4, fixed_abs, tag = 'smem constant byte address 0x4 - core index']
  #allocation1 [shape = 'u32[144,128]{1,0:T(1,128)}', space=vmem, size = 0x12000, scoped, tag = 'internal scratch']
  %s0 = inlined_call_operand.vmem [shape: bf16[2,16,32], index: 0, kind: input, shape index: {}]
  %s1 = inlined_call_operand.vmem [shape: f32[2,2,8], index: 1, kind: input, shape index: {}]
  %s2 = inlined_call_operand.vmem [shape: f32[1,32], index: 2, kind: input, shape index: {}]
  %s3 = inlined_call_operand.vmem [shape: f32[1,32], index: 3, kind: input, shape index: {}]
  %s4 = inlined_call_operand.vmem [shape: bf16[2,32,32], index: 4, kind: input, shape index: {}]
  %s5 = inlined_call_operand.vmem [shape: f32[2,1,32], index: 5, kind: input, shape index: {}]
  %s6 = inlined_call_operand.vmem [shape: bf16[2,32,32], index: 6, kind: input, shape index: {}]
  %s7 = inlined_call_operand.vmem [shape: f32[2,1,32], index: 7, kind: input, shape index: {}]
  %s8 = inlined_call_operand.vmem [shape: bf16[2,32,32], index: 8, kind: input, shape index: {}]
  %s9 = inlined_call_operand.vmem [shape: f32[2,1,32], index: 9, kind: input, shape index: {}]
  %s10 = inlined_call_operand.vmem [shape: bf16[2,32,32], index: 10, kind: input, shape index: {}]
  %s11 = inlined_call_operand.vmem [shape: f32[2,1,32], index: 11, kind: input, shape index: {}]
  %s12 = inlined_call_operand.vmem [shape: f32[2,1,32], index: 12, kind: input, shape index: {}]
  %s13 = inlined_call_operand.vmem [shape: f32[2,1,32], index: 13, kind: input, shape index: {}]
  %s14 = inlined_call_operand.vmem [shape: bf16[2,32,64], index: 14, kind: input, shape index: {}]
  %s15 = inlined_call_operand.vmem [shape: f32[2,1,64], index: 15, kind: input, shape index: {}]
  %s16 = inlined_call_operand.vmem [shape: bf16[2,64,32], index: 16, kind: input, shape index: {}]
  %s17 = inlined_call_operand.vmem [shape: f32[2,1,32], index: 17, kind: input, shape index: {}]
  %s18 = inlined_call_operand.vmem [shape: f32[2,1,32], index: 18, kind: input, shape index: {}]
  %s19 = inlined_call_operand.vmem [shape: f32[2,1,32], index: 19, kind: input, shape index: {}]
  %s20 = inlined_call_operand.vmem [shape: f32[2,2,32], index: 20, kind: output, shape index: {}]
  %s21 = sld [smem:[#allocation0]]
  $region113: #{chunkbert_forward.1} parent=0
    _
  %s23 = ssub.s32 1, %s21
  %s24 = scalar_select 0, %s23, %s21
  loop: start=0, step=1, limit=4
  $region2: #{chunkbert_forward.1} parent=0 // loop_pre_header
    _
  $region3: #{chunkbert_forward.1} parent=0 // loop_header
    %s26 = sphi 0, %s30
    %p27 = scmp.ge.s32.totalorder %s26, 4
    %s36 = sphi 0, %s38
    %s39 = sphi 0, %s36
    %s40 = sphi 0, %s39
    %s56 = sphi 0, %s40
    %s62 = sphi 0, %s64
    %s65 = sphi 0, %s62
    %s66 = sphi 0, %s65
    %s82 = sphi 0, %s66
    %s86 = sphi 0, %s86
    %s88 = sphi 0, %s86
    %s89 = sphi 0, %s88
    %s103 = sphi 0, %s89
    %s107 = sphi 0, %s107
    %s109 = sphi 0, %s107
    %s110 = sphi 0, %s109
    %s124 = sphi 0, %s110
    %s128 = sphi 0, %s128
    %s130 = sphi 0, %s128
    %s131 = sphi 0, %s130
    %s145 = sphi 0, %s131
    %s149 = sphi 0, %s149
    %s151 = sphi 0, %s149
    %s152 = sphi 0, %s151
    %s166 = sphi 0, %s152
    %s170 = sphi 0, %s170
    %s172 = sphi 0, %s170
    %s173 = sphi 0, %s172
    %s187 = sphi 0, %s173
    %s191 = sphi 0, %s191
    %s193 = sphi 0, %s191
    %s194 = sphi 0, %s193
    %s208 = sphi 0, %s194
    %s212 = sphi 0, %s212
    %s214 = sphi 0, %s212
    %s215 = sphi 0, %s214
    %s229 = sphi 0, %s215
    %s233 = sphi 0, %s233
    %s235 = sphi 0, %s233
    %s236 = sphi 0, %s235
    %s250 = sphi 0, %s236
    %s254 = sphi 0, %s254
    %s256 = sphi 0, %s254
    %s257 = sphi 0, %s256
    %s271 = sphi 0, %s257
    %s275 = sphi 0, %s275
    %s277 = sphi 0, %s275
    %s278 = sphi 0, %s277
    %s292 = sphi 0, %s278
    %s296 = sphi 0, %s296
    %s298 = sphi 0, %s296
    %s299 = sphi 0, %s298
    %s313 = sphi 0, %s299
    %s317 = sphi 0, %s317
    %s319 = sphi 0, %s317
    %s320 = sphi 0, %s319
    %s334 = sphi 0, %s320
    %s338 = sphi 0, %s338
    %s340 = sphi 0, %s338
    %s341 = sphi 0, %s340
    %s355 = sphi 0, %s341
    %s359 = sphi 0, %s359
    %s361 = sphi 0, %s359
    %s362 = sphi 0, %s361
    %s376 = sphi 0, %s362
    %s380 = sphi 0, %s380
    %s382 = sphi 0, %s380
    %s383 = sphi 0, %s382
    %s397 = sphi 0, %s383
    %s401 = sphi 0, %s401
    %s403 = sphi 0, %s401
    %s404 = sphi 0, %s403
    %s418 = sphi 0, %s404
    %s422 = sphi 0, %s422
    %s424 = sphi 0, %s422
    %s425 = sphi 0, %s424
    %s439 = sphi 0, %s425
    %s443 = sphi 0, %s443
    %s445 = sphi 0, %s443
    %s446 = sphi 0, %s445
    %s460 = sphi 0, %s446
    %s466 = sphi 0, %s468
    %s469 = sphi 0, %s466
    %s470 = sphi 0, %s469
    %s486 = sphi 0, %s470
  $region4: #{chunkbert_forward.1} parent=0 // loop_header_branch
    %29 = sbr.rel (%p27) target = $region8
  $region5: #{chunkbert_forward.1} parent=0 // loop_body
    %s31 = ssub.s32 %s26, 1
    %s32 = ssub.s32 %s26, 2
    %s33 = sadd.s32 %s26, 1
    %s34 = ssub.s32 %s26, %s33
    %p35 = scmp.eq.s32.totalorder %s34, 0
    %s37 = sadd.s32 %s36, 1
    %s38 = scalar_select %p35, %s36, %s37
    %p41 = pneg %p35
    %p42 = scmp.eq.s32.totalorder %s26, 1
    %p43 = por %p41, %p42
    %p44 = scmp.ne.s32.totalorder %s36, %s39
    %p45 = scmp.eq.s32.totalorder %s26, 0
    %p46 = por %p44, %p45
    %p47 = scmp.ne.s32.totalorder %s36, %s39
    %p48 = scmp.eq.s32.totalorder %s31, 1
    %p49 = por %p47, %p48
    %p50 = scmp.ne.s32.totalorder %s39, %s40
    %p51 = scmp.eq.s32.totalorder %s31, 0
    %p52 = por %p50, %p51
    %p53 = scmp.ne.s32.totalorder %s39, %s40
    %p54 = scmp.eq.s32.totalorder %s32, 1
    %p55 = por %p53, %p54
    %p57 = scmp.ne.s32.totalorder %s40, %s56
    %p58 = scmp.eq.s32.totalorder %s32, 0
    %p59 = por %p57, %p58
    %s60 = ssub.s32 %s26, %s33
    %p61 = scmp.eq.s32.totalorder %s60, 0
    %s63 = sadd.s32 %s62, 1
    %s64 = scalar_select %p61, %s62, %s63
    %p67 = pneg %p61
    %p68 = scmp.eq.s32.totalorder %s26, 1
    %p69 = por %p67, %p68
    %p70 = scmp.ne.s32.totalorder %s62, %s65
    %p71 = scmp.eq.s32.totalorder %s26, 0
    %p72 = por %p70, %p71
    %p73 = scmp.ne.s32.totalorder %s62, %s65
    %p74 = scmp.eq.s32.totalorder %s31, 1
    %p75 = por %p73, %p74
    %p76 = scmp.ne.s32.totalorder %s65, %s66
    %p77 = scmp.eq.s32.totalorder %s31, 0
    %p78 = por %p76, %p77
    %p79 = scmp.ne.s32.totalorder %s65, %s66
    %p80 = scmp.eq.s32.totalorder %s32, 1
    %p81 = por %p79, %p80
    %p83 = scmp.ne.s32.totalorder %s66, %s82
    %p84 = scmp.eq.s32.totalorder %s32, 0
    %p85 = por %p83, %p84
    %s87 = sadd.s32 %s86, 1
    %p90 = scmp.eq.s32.totalorder %s26, 1
    %p91 = scmp.ne.s32.totalorder %s86, %s88
    %p92 = scmp.eq.s32.totalorder %s26, 0
    %p93 = por %p91, %p92
    %p94 = scmp.ne.s32.totalorder %s86, %s88
    %p95 = scmp.eq.s32.totalorder %s31, 1
    %p96 = por %p94, %p95
    %p97 = scmp.ne.s32.totalorder %s88, %s89
    %p98 = scmp.eq.s32.totalorder %s31, 0
    %p99 = por %p97, %p98
    %p100 = scmp.ne.s32.totalorder %s88, %s89
    %p101 = scmp.eq.s32.totalorder %s32, 1
    %p102 = por %p100, %p101
    %p104 = scmp.ne.s32.totalorder %s89, %s103
    %p105 = scmp.eq.s32.totalorder %s32, 0
    %p106 = por %p104, %p105
    %s108 = sadd.s32 %s107, 1
    %p111 = scmp.eq.s32.totalorder %s26, 1
    %p112 = scmp.ne.s32.totalorder %s107, %s109
    %p113 = scmp.eq.s32.totalorder %s26, 0
    %p114 = por %p112, %p113
    %p115 = scmp.ne.s32.totalorder %s107, %s109
    %p116 = scmp.eq.s32.totalorder %s31, 1
    %p117 = por %p115, %p116
    %p118 = scmp.ne.s32.totalorder %s109, %s110
    %p119 = scmp.eq.s32.totalorder %s31, 0
    %p120 = por %p118, %p119
    %p121 = scmp.ne.s32.totalorder %s109, %s110
    %p122 = scmp.eq.s32.totalorder %s32, 1
    %p123 = por %p121, %p122
    %p125 = scmp.ne.s32.totalorder %s110, %s124
    %p126 = scmp.eq.s32.totalorder %s32, 0
    %p127 = por %p125, %p126
    %s129 = sadd.s32 %s128, 1
    %p132 = scmp.eq.s32.totalorder %s26, 1
    %p133 = scmp.ne.s32.totalorder %s128, %s130
    %p134 = scmp.eq.s32.totalorder %s26, 0
    %p135 = por %p133, %p134
    %p136 = scmp.ne.s32.totalorder %s128, %s130
    %p137 = scmp.eq.s32.totalorder %s31, 1
    %p138 = por %p136, %p137
    %p139 = scmp.ne.s32.totalorder %s130, %s131
    %p140 = scmp.eq.s32.totalorder %s31, 0
    %p141 = por %p139, %p140
    %p142 = scmp.ne.s32.totalorder %s130, %s131
    %p143 = scmp.eq.s32.totalorder %s32, 1
    %p144 = por %p142, %p143
    %p146 = scmp.ne.s32.totalorder %s131, %s145
    %p147 = scmp.eq.s32.totalorder %s32, 0
    %p148 = por %p146, %p147
    %s150 = sadd.s32 %s149, 1
    %p153 = scmp.eq.s32.totalorder %s26, 1
    %p154 = scmp.ne.s32.totalorder %s149, %s151
    %p155 = scmp.eq.s32.totalorder %s26, 0
    %p156 = por %p154, %p155
    %p157 = scmp.ne.s32.totalorder %s149, %s151
    %p158 = scmp.eq.s32.totalorder %s31, 1
    %p159 = por %p157, %p158
    %p160 = scmp.ne.s32.totalorder %s151, %s152
    %p161 = scmp.eq.s32.totalorder %s31, 0
    %p162 = por %p160, %p161
    %p163 = scmp.ne.s32.totalorder %s151, %s152
    %p164 = scmp.eq.s32.totalorder %s32, 1
    %p165 = por %p163, %p164
    %p167 = scmp.ne.s32.totalorder %s152, %s166
    %p168 = scmp.eq.s32.totalorder %s32, 0
    %p169 = por %p167, %p168
    %s171 = sadd.s32 %s170, 1
    %p174 = scmp.eq.s32.totalorder %s26, 1
    %p175 = scmp.ne.s32.totalorder %s170, %s172
    %p176 = scmp.eq.s32.totalorder %s26, 0
    %p177 = por %p175, %p176
    %p178 = scmp.ne.s32.totalorder %s170, %s172
    %p179 = scmp.eq.s32.totalorder %s31, 1
    %p180 = por %p178, %p179
    %p181 = scmp.ne.s32.totalorder %s172, %s173
    %p182 = scmp.eq.s32.totalorder %s31, 0
    %p183 = por %p181, %p182
    %p184 = scmp.ne.s32.totalorder %s172, %s173
    %p185 = scmp.eq.s32.totalorder %s32, 1
    %p186 = por %p184, %p185
    %p188 = scmp.ne.s32.totalorder %s173, %s187
    %p189 = scmp.eq.s32.totalorder %s32, 0
    %p190 = por %p188, %p189
    %s192 = sadd.s32 %s191, 1
    %p195 = scmp.eq.s32.totalorder %s26, 1
    %p196 = scmp.ne.s32.totalorder %s191, %s193
    %p197 = scmp.eq.s32.totalorder %s26, 0
    %p198 = por %p196, %p197
    %p199 = scmp.ne.s32.totalorder %s191, %s193
    %p200 = scmp.eq.s32.totalorder %s31, 1
    %p201 = por %p199, %p200
    %p202 = scmp.ne.s32.totalorder %s193, %s194
    %p203 = scmp.eq.s32.totalorder %s31, 0
    %p204 = por %p202, %p203
    %p205 = scmp.ne.s32.totalorder %s193, %s194
    %p206 = scmp.eq.s32.totalorder %s32, 1
    %p207 = por %p205, %p206
    %p209 = scmp.ne.s32.totalorder %s194, %s208
    %p210 = scmp.eq.s32.totalorder %s32, 0
    %p211 = por %p209, %p210
    %s213 = sadd.s32 %s212, 1
    %p216 = scmp.eq.s32.totalorder %s26, 1
    %p217 = scmp.ne.s32.totalorder %s212, %s214
    %p218 = scmp.eq.s32.totalorder %s26, 0
    %p219 = por %p217, %p218
    %p220 = scmp.ne.s32.totalorder %s212, %s214
    %p221 = scmp.eq.s32.totalorder %s31, 1
    %p222 = por %p220, %p221
    %p223 = scmp.ne.s32.totalorder %s214, %s215
    %p224 = scmp.eq.s32.totalorder %s31, 0
    %p225 = por %p223, %p224
    %p226 = scmp.ne.s32.totalorder %s214, %s215
    %p227 = scmp.eq.s32.totalorder %s32, 1
    %p228 = por %p226, %p227
    %p230 = scmp.ne.s32.totalorder %s215, %s229
    %p231 = scmp.eq.s32.totalorder %s32, 0
    %p232 = por %p230, %p231
    %s234 = sadd.s32 %s233, 1
    %p237 = scmp.eq.s32.totalorder %s26, 1
    %p238 = scmp.ne.s32.totalorder %s233, %s235
    %p239 = scmp.eq.s32.totalorder %s26, 0
    %p240 = por %p238, %p239
    %p241 = scmp.ne.s32.totalorder %s233, %s235
    %p242 = scmp.eq.s32.totalorder %s31, 1
    %p243 = por %p241, %p242
    %p244 = scmp.ne.s32.totalorder %s235, %s236
    %p245 = scmp.eq.s32.totalorder %s31, 0
    %p246 = por %p244, %p245
    %p247 = scmp.ne.s32.totalorder %s235, %s236
    %p248 = scmp.eq.s32.totalorder %s32, 1
    %p249 = por %p247, %p248
    %p251 = scmp.ne.s32.totalorder %s236, %s250
    %p252 = scmp.eq.s32.totalorder %s32, 0
    %p253 = por %p251, %p252
    %s255 = sadd.s32 %s254, 1
    %p258 = scmp.eq.s32.totalorder %s26, 1
    %p259 = scmp.ne.s32.totalorder %s254, %s256
    %p260 = scmp.eq.s32.totalorder %s26, 0
    %p261 = por %p259, %p260
    %p262 = scmp.ne.s32.totalorder %s254, %s256
    %p263 = scmp.eq.s32.totalorder %s31, 1
    %p264 = por %p262, %p263
    %p265 = scmp.ne.s32.totalorder %s256, %s257
    %p266 = scmp.eq.s32.totalorder %s31, 0
    %p267 = por %p265, %p266
    %p268 = scmp.ne.s32.totalorder %s256, %s257
    %p269 = scmp.eq.s32.totalorder %s32, 1
    %p270 = por %p268, %p269
    %p272 = scmp.ne.s32.totalorder %s257, %s271
    %p273 = scmp.eq.s32.totalorder %s32, 0
    %p274 = por %p272, %p273
    %s276 = sadd.s32 %s275, 1
    %p279 = scmp.eq.s32.totalorder %s26, 1
    %p280 = scmp.ne.s32.totalorder %s275, %s277
    %p281 = scmp.eq.s32.totalorder %s26, 0
    %p282 = por %p280, %p281
    %p283 = scmp.ne.s32.totalorder %s275, %s277
    %p284 = scmp.eq.s32.totalorder %s31, 1
    %p285 = por %p283, %p284
    %p286 = scmp.ne.s32.totalorder %s277, %s278
    %p287 = scmp.eq.s32.totalorder %s31, 0
    %p288 = por %p286, %p287
    %p289 = scmp.ne.s32.totalorder %s277, %s278
    %p290 = scmp.eq.s32.totalorder %s32, 1
    %p291 = por %p289, %p290
    %p293 = scmp.ne.s32.totalorder %s278, %s292
    %p294 = scmp.eq.s32.totalorder %s32, 0
    %p295 = por %p293, %p294
    %s297 = sadd.s32 %s296, 1
    %p300 = scmp.eq.s32.totalorder %s26, 1
    %p301 = scmp.ne.s32.totalorder %s296, %s298
    %p302 = scmp.eq.s32.totalorder %s26, 0
    %p303 = por %p301, %p302
    %p304 = scmp.ne.s32.totalorder %s296, %s298
    %p305 = scmp.eq.s32.totalorder %s31, 1
    %p306 = por %p304, %p305
    %p307 = scmp.ne.s32.totalorder %s298, %s299
    %p308 = scmp.eq.s32.totalorder %s31, 0
    %p309 = por %p307, %p308
    %p310 = scmp.ne.s32.totalorder %s298, %s299
    %p311 = scmp.eq.s32.totalorder %s32, 1
    %p312 = por %p310, %p311
    %p314 = scmp.ne.s32.totalorder %s299, %s313
    %p315 = scmp.eq.s32.totalorder %s32, 0
    %p316 = por %p314, %p315
    %s318 = sadd.s32 %s317, 1
    %p321 = scmp.eq.s32.totalorder %s26, 1
    %p322 = scmp.ne.s32.totalorder %s317, %s319
    %p323 = scmp.eq.s32.totalorder %s26, 0
    %p324 = por %p322, %p323
    %p325 = scmp.ne.s32.totalorder %s317, %s319
    %p326 = scmp.eq.s32.totalorder %s31, 1
    %p327 = por %p325, %p326
    %p328 = scmp.ne.s32.totalorder %s319, %s320
    %p329 = scmp.eq.s32.totalorder %s31, 0
    %p330 = por %p328, %p329
    %p331 = scmp.ne.s32.totalorder %s319, %s320
    %p332 = scmp.eq.s32.totalorder %s32, 1
    %p333 = por %p331, %p332
    %p335 = scmp.ne.s32.totalorder %s320, %s334
    %p336 = scmp.eq.s32.totalorder %s32, 0
    %p337 = por %p335, %p336
    %s339 = sadd.s32 %s338, 1
    %p342 = scmp.eq.s32.totalorder %s26, 1
    %p343 = scmp.ne.s32.totalorder %s338, %s340
    %p344 = scmp.eq.s32.totalorder %s26, 0
    %p345 = por %p343, %p344
    %p346 = scmp.ne.s32.totalorder %s338, %s340
    %p347 = scmp.eq.s32.totalorder %s31, 1
    %p348 = por %p346, %p347
    %p349 = scmp.ne.s32.totalorder %s340, %s341
    %p350 = scmp.eq.s32.totalorder %s31, 0
    %p351 = por %p349, %p350
    %p352 = scmp.ne.s32.totalorder %s340, %s341
    %p353 = scmp.eq.s32.totalorder %s32, 1
    %p354 = por %p352, %p353
    %p356 = scmp.ne.s32.totalorder %s341, %s355
    %p357 = scmp.eq.s32.totalorder %s32, 0
    %p358 = por %p356, %p357
    %s360 = sadd.s32 %s359, 1
    %p363 = scmp.eq.s32.totalorder %s26, 1
    %p364 = scmp.ne.s32.totalorder %s359, %s361
    %p365 = scmp.eq.s32.totalorder %s26, 0
    %p366 = por %p364, %p365
    %p367 = scmp.ne.s32.totalorder %s359, %s361
    %p368 = scmp.eq.s32.totalorder %s31, 1
    %p369 = por %p367, %p368
    %p370 = scmp.ne.s32.totalorder %s361, %s362
    %p371 = scmp.eq.s32.totalorder %s31, 0
    %p372 = por %p370, %p371
    %p373 = scmp.ne.s32.totalorder %s361, %s362
    %p374 = scmp.eq.s32.totalorder %s32, 1
    %p375 = por %p373, %p374
    %p377 = scmp.ne.s32.totalorder %s362, %s376
    %p378 = scmp.eq.s32.totalorder %s32, 0
    %p379 = por %p377, %p378
    %s381 = sadd.s32 %s380, 1
    %p384 = scmp.eq.s32.totalorder %s26, 1
    %p385 = scmp.ne.s32.totalorder %s380, %s382
    %p386 = scmp.eq.s32.totalorder %s26, 0
    %p387 = por %p385, %p386
    %p388 = scmp.ne.s32.totalorder %s380, %s382
    %p389 = scmp.eq.s32.totalorder %s31, 1
    %p390 = por %p388, %p389
    %p391 = scmp.ne.s32.totalorder %s382, %s383
    %p392 = scmp.eq.s32.totalorder %s31, 0
    %p393 = por %p391, %p392
    %p394 = scmp.ne.s32.totalorder %s382, %s383
    %p395 = scmp.eq.s32.totalorder %s32, 1
    %p396 = por %p394, %p395
    %p398 = scmp.ne.s32.totalorder %s383, %s397
    %p399 = scmp.eq.s32.totalorder %s32, 0
    %p400 = por %p398, %p399
    %s402 = sadd.s32 %s401, 1
    %p405 = scmp.eq.s32.totalorder %s26, 1
    %p406 = scmp.ne.s32.totalorder %s401, %s403
    %p407 = scmp.eq.s32.totalorder %s26, 0
    %p408 = por %p406, %p407
    %p409 = scmp.ne.s32.totalorder %s401, %s403
    %p410 = scmp.eq.s32.totalorder %s31, 1
    %p411 = por %p409, %p410
    %p412 = scmp.ne.s32.totalorder %s403, %s404
    %p413 = scmp.eq.s32.totalorder %s31, 0
    %p414 = por %p412, %p413
    %p415 = scmp.ne.s32.totalorder %s403, %s404
    %p416 = scmp.eq.s32.totalorder %s32, 1
    %p417 = por %p415, %p416
    %p419 = scmp.ne.s32.totalorder %s404, %s418
    %p420 = scmp.eq.s32.totalorder %s32, 0
    %p421 = por %p419, %p420
    %s423 = sadd.s32 %s422, 1
    %p426 = scmp.eq.s32.totalorder %s26, 1
    %p427 = scmp.ne.s32.totalorder %s422, %s424
    %p428 = scmp.eq.s32.totalorder %s26, 0
    %p429 = por %p427, %p428
    %p430 = scmp.ne.s32.totalorder %s422, %s424
    %p431 = scmp.eq.s32.totalorder %s31, 1
    %p432 = por %p430, %p431
    %p433 = scmp.ne.s32.totalorder %s424, %s425
    %p434 = scmp.eq.s32.totalorder %s31, 0
    %p435 = por %p433, %p434
    %p436 = scmp.ne.s32.totalorder %s424, %s425
    %p437 = scmp.eq.s32.totalorder %s32, 1
    %p438 = por %p436, %p437
    %p440 = scmp.ne.s32.totalorder %s425, %s439
    %p441 = scmp.eq.s32.totalorder %s32, 0
    %p442 = por %p440, %p441
    %s444 = sadd.s32 %s443, 1
    %p447 = scmp.eq.s32.totalorder %s26, 1
    %p448 = scmp.ne.s32.totalorder %s443, %s445
    %p449 = scmp.eq.s32.totalorder %s26, 0
    %p450 = por %p448, %p449
    %p451 = scmp.ne.s32.totalorder %s443, %s445
    %p452 = scmp.eq.s32.totalorder %s31, 1
    %p453 = por %p451, %p452
    %p454 = scmp.ne.s32.totalorder %s445, %s446
    %p455 = scmp.eq.s32.totalorder %s31, 0
    %p456 = por %p454, %p455
    %p457 = scmp.ne.s32.totalorder %s445, %s446
    %p458 = scmp.eq.s32.totalorder %s32, 1
    %p459 = por %p457, %p458
    %p461 = scmp.ne.s32.totalorder %s446, %s460
    %p462 = scmp.eq.s32.totalorder %s32, 0
    %p463 = por %p461, %p462
    %s464 = ssub.s32 %s26, %s33
    %p465 = scmp.eq.s32.totalorder %s464, 0
    %s467 = sadd.s32 %s466, 1
    %s468 = scalar_select %p465, %s466, %s467
    %p471 = pneg %p465
    %p472 = scmp.eq.s32.totalorder %s26, 1
    %p473 = por %p471, %p472
    %p474 = scmp.ne.s32.totalorder %s466, %s469
    %p475 = scmp.eq.s32.totalorder %s26, 0
    %p476 = por %p474, %p475
    %p477 = scmp.ne.s32.totalorder %s466, %s469
    %p478 = scmp.eq.s32.totalorder %s31, 1
    %p479 = por %p477, %p478
    %p480 = scmp.ne.s32.totalorder %s469, %s470
    %p481 = scmp.eq.s32.totalorder %s31, 0
    %p482 = por %p480, %p481
    %p483 = scmp.ne.s32.totalorder %s469, %s470
    %p484 = scmp.eq.s32.totalorder %s32, 1
    %p485 = por %p483, %p484
    %p487 = scmp.ne.s32.totalorder %s470, %s486
    %p488 = scmp.eq.s32.totalorder %s32, 0
    %p489 = por %p487, %p488
    %p490 = scmp.le.s32.totalorder 1, %s26
    %p491 = scmp.lt.s32.totalorder %s26, 3
    %p492 = pnand %p490, %p491
    %p493 = pneg %p492
    // Predicated region
    $region9: #{chunkbert_forward.1} parent=5 // pred_check
      _
    $region10: #{chunkbert_forward.1} parent=5 // pred_check_branch
      %495 = sbr.rel (%p492) target = $region12
    $region11: #{chunkbert_forward.1} parent=5 // pred_region
      %s496 = ssub.s32 %s26, 1
      // Predicated region
      $region13: #{chunkbert_forward.1} parent=11 // pred_check
        %p497 = pneg %p99
      $region14: #{chunkbert_forward.1} parent=11 // pred_check_branch
        %499 = sbr.rel (%p497) target = $region16
      $region15: #{chunkbert_forward.1} parent=11 // pred_region
        _
      $region16: #{chunkbert_forward.1} parent=11 // pred_fallthru
        _
      // Predicated region
      $region17: #{chunkbert_forward.1} parent=11 // pred_check
        %p500 = pneg %p120
      $region18: #{chunkbert_forward.1} parent=11 // pred_check_branch
        %502 = sbr.rel (%p500) target = $region20
      $region19: #{chunkbert_forward.1} parent=11 // pred_region
        _
      $region20: #{chunkbert_forward.1} parent=11 // pred_fallthru
        _
      // Predicated region
      $region21: #{chunkbert_forward.1} parent=11 // pred_check
        %p503 = pneg %p141
      $region22: #{chunkbert_forward.1} parent=11 // pred_check_branch
        %505 = sbr.rel (%p503) target = $region24
      $region23: #{chunkbert_forward.1} parent=11 // pred_region
        _
      $region24: #{chunkbert_forward.1} parent=11 // pred_fallthru
        _
      // Predicated region
      $region25: #{chunkbert_forward.1} parent=11 // pred_check
        %p506 = pneg %p162
      $region26: #{chunkbert_forward.1} parent=11 // pred_check_branch
        %508 = sbr.rel (%p506) target = $region28
      $region27: #{chunkbert_forward.1} parent=11 // pred_region
        _
      $region28: #{chunkbert_forward.1} parent=11 // pred_fallthru
        _
      // Predicated region
      $region29: #{chunkbert_forward.1} parent=11 // pred_check
        %p509 = pneg %p183
      $region30: #{chunkbert_forward.1} parent=11 // pred_check_branch
        %511 = sbr.rel (%p509) target = $region32
      $region31: #{chunkbert_forward.1} parent=11 // pred_region
        _
      $region32: #{chunkbert_forward.1} parent=11 // pred_fallthru
        _
      // Predicated region
      $region33: #{chunkbert_forward.1} parent=11 // pred_check
        %p512 = pneg %p204
      $region34: #{chunkbert_forward.1} parent=11 // pred_check_branch
        %514 = sbr.rel (%p512) target = $region36
      $region35: #{chunkbert_forward.1} parent=11 // pred_region
        _
      $region36: #{chunkbert_forward.1} parent=11 // pred_fallthru
        _
      // Predicated region
      $region37: #{chunkbert_forward.1} parent=11 // pred_check
        %p515 = pneg %p225
      $region38: #{chunkbert_forward.1} parent=11 // pred_check_branch
        %517 = sbr.rel (%p515) target = $region40
      $region39: #{chunkbert_forward.1} parent=11 // pred_region
        _
      $region40: #{chunkbert_forward.1} parent=11 // pred_fallthru
        _
      // Predicated region
      $region41: #{chunkbert_forward.1} parent=11 // pred_check
        %p518 = pneg %p246
      $region42: #{chunkbert_forward.1} parent=11 // pred_check_branch
        %520 = sbr.rel (%p518) target = $region44
      $region43: #{chunkbert_forward.1} parent=11 // pred_region
        _
      $region44: #{chunkbert_forward.1} parent=11 // pred_fallthru
        _
      // Predicated region
      $region45: #{chunkbert_forward.1} parent=11 // pred_check
        %p521 = pneg %p267
      $region46: #{chunkbert_forward.1} parent=11 // pred_check_branch
        %523 = sbr.rel (%p521) target = $region48
      $region47: #{chunkbert_forward.1} parent=11 // pred_region
        _
      $region48: #{chunkbert_forward.1} parent=11 // pred_fallthru
        _
      // Predicated region
      $region49: #{chunkbert_forward.1} parent=11 // pred_check
        %p524 = pneg %p288
      $region50: #{chunkbert_forward.1} parent=11 // pred_check_branch
        %526 = sbr.rel (%p524) target = $region52
      $region51: #{chunkbert_forward.1} parent=11 // pred_region
        _
      $region52: #{chunkbert_forward.1} parent=11 // pred_fallthru
        _
      // Predicated region
      $region53: #{chunkbert_forward.1} parent=11 // pred_check
        %p527 = pneg %p309
      $region54: #{chunkbert_forward.1} parent=11 // pred_check_branch
        %529 = sbr.rel (%p527) target = $region56
      $region55: #{chunkbert_forward.1} parent=11 // pred_region
        _
      $region56: #{chunkbert_forward.1} parent=11 // pred_fallthru
        _
      // Predicated region
      $region57: #{chunkbert_forward.1} parent=11 // pred_check
        %p530 = pneg %p330
      $region58: #{chunkbert_forward.1} parent=11 // pred_check_branch
        %532 = sbr.rel (%p530) target = $region60
      $region59: #{chunkbert_forward.1} parent=11 // pred_region
        _
      $region60: #{chunkbert_forward.1} parent=11 // pred_fallthru
        _
      // Predicated region
      $region61: #{chunkbert_forward.1} parent=11 // pred_check
        %p533 = pneg %p351
      $region62: #{chunkbert_forward.1} parent=11 // pred_check_branch
        %535 = sbr.rel (%p533) target = $region64
      $region63: #{chunkbert_forward.1} parent=11 // pred_region
        _
      $region64: #{chunkbert_forward.1} parent=11 // pred_fallthru
        _
      // Predicated region
      $region65: #{chunkbert_forward.1} parent=11 // pred_check
        %p536 = pneg %p372
      $region66: #{chunkbert_forward.1} parent=11 // pred_check_branch
        %538 = sbr.rel (%p536) target = $region68
      $region67: #{chunkbert_forward.1} parent=11 // pred_region
        _
      $region68: #{chunkbert_forward.1} parent=11 // pred_fallthru
        _
      // Predicated region
      $region69: #{chunkbert_forward.1} parent=11 // pred_check
        %p539 = pneg %p393
      $region70: #{chunkbert_forward.1} parent=11 // pred_check_branch
        %541 = sbr.rel (%p539) target = $region72
      $region71: #{chunkbert_forward.1} parent=11 // pred_region
        _
      $region72: #{chunkbert_forward.1} parent=11 // pred_fallthru
        _
      // Predicated region
      $region73: #{chunkbert_forward.1} parent=11 // pred_check
        %p542 = pneg %p414
      $region74: #{chunkbert_forward.1} parent=11 // pred_check_branch
        %544 = sbr.rel (%p542) target = $region76
      $region75: #{chunkbert_forward.1} parent=11 // pred_region
        _
      $region76: #{chunkbert_forward.1} parent=11 // pred_fallthru
        _
      // Predicated region
      $region77: #{chunkbert_forward.1} parent=11 // pred_check
        %p545 = pneg %p435
      $region78: #{chunkbert_forward.1} parent=11 // pred_check_branch
        %547 = sbr.rel (%p545) target = $region80
      $region79: #{chunkbert_forward.1} parent=11 // pred_region
        _
      $region80: #{chunkbert_forward.1} parent=11 // pred_fallthru
        _
      // Predicated region
      $region81: #{chunkbert_forward.1} parent=11 // pred_check
        %p548 = pneg %p456
      $region82: #{chunkbert_forward.1} parent=11 // pred_check_branch
        %550 = sbr.rel (%p548) target = $region84
      $region83: #{chunkbert_forward.1} parent=11 // pred_region
        _
      $region84: #{chunkbert_forward.1} parent=11 // pred_fallthru
        _
    $region12: #{chunkbert_forward.1} parent=5 // pred_fallthru
      _
    %p551 = scmp.lt.s32.totalorder %s26, 2
    // Predicated region
    $region85: #{chunkbert_forward.1} parent=5 // pred_check
      %p552 = pneg %p551
    $region86: #{chunkbert_forward.1} parent=5 // pred_check_branch
      %554 = sbr.rel (%p552) target = $region88
    $region87: #{chunkbert_forward.1} parent=5 // pred_region
      // Predicated region
      $region89: #{chunkbert_forward.1} parent=87 // pred_check
        %p555 = pneg %p46
      $region90: #{chunkbert_forward.1} parent=87 // pred_check_branch
        %557 = sbr.rel (%p555) target = $region92
      $region91: #{chunkbert_forward.1} parent=87 // pred_region
        %p558 = scmp.lt.s32.totalorder %s26, 1
        %s559 = scalar_select %p558, %s26, 1
        %s560 = smul.addr %s559, 2
        %s561 = smul.addr %s560, 4
        %s562 = scalar_lea.vmem %s0, %s561
      $region92: #{chunkbert_forward.1} parent=87 // pred_fallthru
        _
      // Predicated region
      $region93: #{chunkbert_forward.1} parent=87 // pred_check
        %p563 = pneg %p72
      $region94: #{chunkbert_forward.1} parent=87 // pred_check_branch
        %565 = sbr.rel (%p563) target = $region96
      $region95: #{chunkbert_forward.1} parent=87 // pred_region
        %p566 = scmp.lt.s32.totalorder %s26, 1
        %s567 = scalar_select %p566, %s26, 1
        %s568 = smul.addr %s567, 2
        %s569 = scalar_lea.vmem %s1, %s568
      $region96: #{chunkbert_forward.1} parent=87 // pred_fallthru
        _
    $region88: #{chunkbert_forward.1} parent=5 // pred_fallthru
      _
    %p570 = scmp.le.s32.totalorder 1, %s26
    %p571 = scmp.lt.s32.totalorder %s26, 3
    %p572 = pnand %p570, %p571
    %p573 = pneg %p572
    // Predicated region
    $region97: #{chunkbert_forward.1} parent=5 // pred_check
      _
    $region98: #{chunkbert_forward.1} parent=5 // pred_check_branch
      %575 = sbr.rel (%p572) target = $region100
    $region99: #{chunkbert_forward.1} parent=5 // pred_region
      %s576 = ssub.s32 %s26, 1
      %p577 = scmp.lt.s32.totalorder %s31, 1
      %s578 = scalar_select %p577, %s31, 1
      %s579 = smul.addr %s578, 2
      %s580 = smul.addr %s579, 4
      %s581 = scalar_lea.vmem %s0, %s580
      %p582 = pneg %p52
      %p583 = pneg %p49
      %p584 = scmp.lt.s32.totalorder %s31, 1
      %s585 = scalar_select %p584, %s31, 1
      %s586 = smul.addr %s585, 2
      %s587 = scalar_lea.vmem %s1, %s586
      %p588 = pneg %p78
      %p589 = pneg %p75
      %p590 = pneg %p99
      %p591 = pneg %p96
      %p592 = pneg %p120
      %p593 = pneg %p117
      %p594 = pneg %p141
      %p595 = pneg %p138
      %p596 = pneg %p162
      %p597 = pneg %p159
      %p598 = pneg %p183
      %p599 = pneg %p180
      %p600 = pneg %p204
      %p601 = pneg %p201
      %p602 = pneg %p225
      %p603 = pneg %p222
      %p604 = pneg %p246
      %p605 = pneg %p243
      %p606 = pneg %p267
      %p607 = pneg %p264
      %p608 = pneg %p288
      %p609 = pneg %p285
      %p610 = pneg %p309
      %p611 = pneg %p306
      %p612 = pneg %p330
      %p613 = pneg %p327
      %p614 = pneg %p351
      %p615 = pneg %p348
      %p616 = pneg %p372
      %p617 = pneg %p369
      %p618 = pneg %p393
      %p619 = pneg %p390
      %p620 = pneg %p414
      %p621 = pneg %p411
      %p622 = pneg %p435
      %p623 = pneg %p432
      %p624 = pneg %p456
      %p625 = pneg %p453
      %p626 = pneg %p482
      %p627 = pneg %p479
      %p628 = scmp.lt.s32.totalorder %s31, 1
      %s629 = scalar_select %p628, %s31, 1
      %s630 = smul.addr %s629, 2
      %s631 = scalar_lea.vmem %s20, %s630
      %p632 = scmp.lt.s32.totalorder %s31, 1
      %s633 = scalar_select %p632, %s31, 1
      %s634 = smul.addr %s633, 2
      %s635 = smul.addr %s634, 4
      %s636 = scalar_lea.vmem %s0, %s635
      %p637 = scmp.lt.s32.totalorder %s31, 1
      %s638 = scalar_select %p637, %s31, 1
      %s639 = smul.addr %s638, 2
      %s640 = scalar_lea.vmem %s1, %s639
      %p641 = scmp.lt.s32.totalorder %s31, 1
      %s642 = scalar_select %p641, %s31, 1
      %s643 = smul.addr %s642, 2
      %s644 = scalar_lea.vmem %s20, %s643
      %v646 = vld [vmem:[%s636] sm:$0xf]
      %v647 = vld [vmem:[%s636 + $0x4] sm:$0xf]
      %v648 = vunpack.c.l.bf16 %v646
      %v649 = vunpack.c.l.bf16 %v647
      %v650 = vld [vmem:[%s2] sm:$0x1]
      %v651 = vld [vmem:[%s3] sm:$0x1]
      %vm652 = vcmask 261120
      %v653 = vsel %vm652, %v648, 0.0
      %654 = vadd.xlane.f32.xlu0 %v653
      %v655 = vpop.xlane.xlu0 %654
      %v656 = vsel %vm652, %v649, 0.0
      %657 = vadd.xlane.f32.xlu0 %v656
      %v658 = vpop.xlane.xlu0 %657
      %v659 = vrcp.pop 32.0
      %v660 = vmul.f32 %v655, %v659
      %v661 = vmul.f32 %v658, %v659
      %v662 = vsub.f32 %v648, %v660
      %v663 = vsub.f32 %v649, %v661
      %v664 = vmul.f32 %v662, %v662
      %v665 = vmul.f32 %v663, %v663
      %v666 = vsel %vm652, %v664, 0.0
      %667 = vadd.xlane.f32.xlu0 %v666
      %v668 = vpop.xlane.xlu0 %667
      %v669 = vsel %vm652, %v665, 0.0
      %670 = vadd.xlane.f32.xlu0 %v669
      %v671 = vpop.xlane.xlu0 %670
      %v672 = vmul.f32 %v668, %v659
      %v673 = vmul.f32 %v671, %v659
      %v674 = vadd.f32 %v672, 1e-12
      %v675 = vadd.f32 %v673, 1e-12
      %v676 = vrsqrt.pop %v674
      %v677 = vrsqrt.pop %v675
      %v678 = vmul.f32 %v662, %v676
      %v679 = vmul.f32 %v663, %v677
      %v681 = vlaneseq
      %v682 = vshrl.u32 %v681, 7
      %v683 = vsub.s32 0, %v682
      %v684 = vrot.slane %v650, %v683
      %v686 = vmul.f32 %v678, %v684
      %v687 = vmul.f32 %v679, %v684
      %v689 = vlaneseq
      %v690 = vshrl.u32 %v689, 7
      %v691 = vsub.s32 0, %v690
      %v692 = vrot.slane %v651, %v691
      %v694 = vadd.f32 %v686, %v692
      %v695 = vadd.f32 %v687, %v692
      %v696 = vld [vmem:[%s640] sm:$0x3]
      %v699 = vunpack.c.l.s4 1966171168
      %v700 = vunpack.c.0.s8 %v699
      %v701 = vlaneseq
      %v702 = vshrl.u32 %v701, 7
      %v703 = vsub.s32 %v700, %v702
      %v704 = vrot.slane %v696, %v703
      %v705 = vcombine.high %v704, %v704
      %v707 = vunpack.c.l.s4 1966171168
      %v708 = vunpack.c.0.s8 %v707
      %v709 = vlaneseq
      %v710 = vshrl.u32 %v709, 7
      %v711 = vsub.s32 %v708, %v710
      %v712 = vrot.slane %v704, %v711
      %v714 = vunpack.c.l.s4 1966171168
      %v715 = vunpack.c.0.s8 %v714
      %v716 = vlaneseq
      %v717 = vshrl.u32 %v716, 7
      %v718 = vsub.s32 %v715, %v717
      %v719 = vrot.slane %v705, %v718
      %v720 = vpack.c.bf16 %v695, %v694
      %v721 = vld [vmem:[%s4] sm:$0xf]
      %v722 = vld [vmem:[%s4 + $0x4] sm:$0xf]
      %v723 = vld [vmem:[%s4 + $0x8] sm:$0xf]
      %v724 = vld [vmem:[%s4 + $0xc] sm:$0xf]
      %v725 = vld [vmem:[%s5] sm:$0x1]
      %v727 = vlaneseq
      %v728 = vshrl.u32 %v727, 7
      %v729 = vsub.s32 0, %v728
      %v730 = vrot.slane %v725, %v729
      %v736 = vunpack.c.l.b16 %v721
      %v737 = vunpack.c.l.b16 %v722
      %v738 = vunpack.c.l.b16 %v723
      %v739 = vunpack.c.l.b16 %v724
      %v740 = vpack.c.b16 %v737, %v736
      %v741 = vpack.c.b16 %v739, %v738
      %v745 = vsel %vm652, %v720, 0
      %747 = vmatprep.subr.bf16.mxu0 0
      %748 = vmatpush1.bf16.msra.mxu0 %v740
      %749 = vmatprep.subr.bf16.mxu0 0
      %750 = vmatpush1.bf16.msra.mxu0 %v741
      %751 = vmatprep.subr.bf16.mxu0 0
      %752 = vmatpush1.bf16.msra.mxu0 0
      %753 = vmatprep.subr.bf16.mxu0 0
      %754 = vmatpush1.bf16.msra.mxu0 0
      %755 = vmatprep.subr.bf16.mxu0 0
      %756 = vmatpush1.bf16.msra.mxu0 0
      %757 = vmatprep.subr.bf16.mxu0 0
      %758 = vmatpush1.bf16.msra.mxu0 0
      %759 = vmatprep.subr.bf16.mxu0 0
      %760 = vmatpush1.bf16.msra.mxu0 0
      %761 = vmatprep.subr.bf16.mxu0 0
      %762 = vmatpush1.bf16.msra.mxu0 0
      %763 = vmatprep.subr.bf16.mxu0 0
      %764 = vmatpush1.bf16.msra.mxu0 0
      %765 = vmatprep.subr.bf16.mxu0 0
      %766 = vmatpush1.bf16.msra.mxu0 0
      %767 = vmatprep.subr.bf16.mxu0 0
      %768 = vmatpush1.bf16.msra.mxu0 0
      %769 = vmatprep.subr.bf16.mxu0 0
      %770 = vmatpush1.bf16.msra.mxu0 0
      %771 = vmatprep.subr.bf16.mxu0 0
      %772 = vmatpush1.bf16.msra.mxu0 0
      %773 = vmatprep.subr.bf16.mxu0 0
      %774 = vmatpush1.bf16.msra.mxu0 0
      %775 = vmatprep.subr.bf16.mxu0 0
      %776 = vmatpush1.bf16.msra.mxu0 0
      %777 = vmatprep.subr.bf16.mxu0 0
      %778 = vmatpush1.bf16.msra.mxu0 0
      %779 = vmatprep.mubr.bf16.mxu0 0
      %780 = vmatmul.mubr.bf16.gmra.mrb[0].mxu0 %v745
      %v781 = vpop.f32.mrb[0].mxu0
      %v782 = vadd.f32 %v730, %v781
      %v783 = vpop.f32.mrb[0].mxu0
      %v784 = vpop.f32.mrb[0].mxu0
      %v785 = vadd.f32 %v730, %v784
      %v786 = vpop.f32.mrb[0].mxu0
      %787 = vdwg.mxu0
      %v788 = vld [vmem:[%s6] sm:$0xf]
      %v789 = vld [vmem:[%s6 + $0x4] sm:$0xf]
      %v790 = vld [vmem:[%s6 + $0x8] sm:$0xf]
      %v791 = vld [vmem:[%s6 + $0xc] sm:$0xf]
      %v792 = vld [vmem:[%s7] sm:$0x1]
      %v794 = vlaneseq
      %v795 = vshrl.u32 %v794, 7
      %v796 = vsub.s32 0, %v795
      %v797 = vrot.slane %v792, %v796
      %v803 = vunpack.c.l.b16 %v788
      %v804 = vunpack.c.l.b16 %v789
      %v805 = vunpack.c.l.b16 %v790
      %v806 = vunpack.c.l.b16 %v791
      %v807 = vpack.c.b16 %v804, %v803
      %v808 = vpack.c.b16 %v806, %v805
      %811 = vmatprep.subr.bf16.mxu0 0
      %812 = vmatpush1.bf16.msra.mxu0 %v807
      %813 = vmatprep.subr.bf16.mxu0 0
      %814 = vmatpush1.bf16.msra.mxu0 %v808
      %815 = vmatprep.subr.bf16.mxu0 0
      %816 = vmatpush1.bf16.msra.mxu0 0
      %817 = vmatprep.subr.bf16.mxu0 0
      %818 = vmatpush1.bf16.msra.mxu0 0
      %819 = vmatprep.subr.bf16.mxu0 0
      %820 = vmatpush1.bf16.msra.mxu0 0
      %821 = vmatprep.subr.bf16.mxu0 0
      %822 = vmatpush1.bf16.msra.mxu0 0
      %823 = vmatprep.subr.bf16.mxu0 0
      %824 = vmatpush1.bf16.msra.mxu0 0
      %825 = vmatprep.subr.bf16.mxu0 0
      %826 = vmatpush1.bf16.msra.mxu0 0
      %827 = vmatprep.subr.bf16.mxu0 0
      %828 = vmatpush1.bf16.msra.mxu0 0
      %829 = vmatprep.subr.bf16.mxu0 0
      %830 = vmatpush1.bf16.msra.mxu0 0
      %831 = vmatprep.subr.bf16.mxu0 0
      %832 = vmatpush1.bf16.msra.mxu0 0
      %833 = vmatprep.subr.bf16.mxu0 0
      %834 = vmatpush1.bf16.msra.mxu0 0
      %835 = vmatprep.subr.bf16.mxu0 0
      %836 = vmatpush1.bf16.msra.mxu0 0
      %837 = vmatprep.subr.bf16.mxu0 0
      %838 = vmatpush1.bf16.msra.mxu0 0
      %839 = vmatprep.subr.bf16.mxu0 0
      %840 = vmatpush1.bf16.msra.mxu0 0
      %841 = vmatprep.subr.bf16.mxu0 0
      %842 = vmatpush1.bf16.msra.mxu0 0
      %843 = vmatprep.mubr.bf16.mxu0 0
      %844 = vmatmul.mubr.bf16.gmra.mrb[0].mxu0 %v745
      %v845 = vpop.f32.mrb[0].mxu0
      %v846 = vadd.f32 %v797, %v845
      %v847 = vpop.f32.mrb[0].mxu0
      %v848 = vpop.f32.mrb[0].mxu0
      %v849 = vadd.f32 %v797, %v848
      %v850 = vpop.f32.mrb[0].mxu0
      %851 = vdwg.mxu0
      %v852 = vld [vmem:[%s8] sm:$0xf]
      %v853 = vld [vmem:[%s8 + $0x4] sm:$0xf]
      %v854 = vld [vmem:[%s8 + $0x8] sm:$0xf]
      %v855 = vld [vmem:[%s8 + $0xc] sm:$0xf]
      %v856 = vld [vmem:[%s9] sm:$0x1]
      %v858 = vlaneseq
      %v859 = vshrl.u32 %v858, 7
      %v860 = vsub.s32 0, %v859
      %v861 = vrot.slane %v856, %v860
      %v867 = vunpack.c.l.b16 %v852
      %v868 = vunpack.c.l.b16 %v853
      %v869 = vunpack.c.l.b16 %v854
      %v870 = vunpack.c.l.b16 %v855
      %v871 = vpack.c.b16 %v868, %v867
      %v872 = vpack.c.b16 %v870, %v869
      %875 = vmatprep.subr.bf16.mxu0 0
      %876 = vmatpush1.bf16.msra.mxu0 %v871
      %877 = vmatprep.subr.bf16.mxu0 0
      %878 = vmatpush1.bf16.msra.mxu0 %v872
      %879 = vmatprep.subr.bf16.mxu0 0
      %880 = vmatpush1.bf16.msra.mxu0 0
      %881 = vmatprep.subr.bf16.mxu0 0
      %882 = vmatpush1.bf16.msra.mxu0 0
      %883 = vmatprep.subr.bf16.mxu0 0
      %884 = vmatpush1.bf16.msra.mxu0 0
      %885 = vmatprep.subr.bf16.mxu0 0
      %886 = vmatpush1.bf16.msra.mxu0 0
      %887 = vmatprep.subr.bf16.mxu0 0
      %888 = vmatpush1.bf16.msra.mxu0 0
      %889 = vmatprep.subr.bf16.mxu0 0
      %890 = vmatpush1.bf16.msra.mxu0 0
      %891 = vmatprep.subr.bf16.mxu0 0
      %892 = vmatpush1.bf16.msra.mxu0 0
      %893 = vmatprep.subr.bf16.mxu0 0
      %894 = vmatpush1.bf16.msra.mxu0 0
      %895 = vmatprep.subr.bf16.mxu0 0
      %896 = vmatpush1.bf16.msra.mxu0 0
      %897 = vmatprep.subr.bf16.mxu0 0
      %898 = vmatpush1.bf16.msra.mxu0 0
      %899 = vmatprep.subr.bf16.mxu0 0
      %900 = vmatpush1.bf16.msra.mxu0 0
      %901 = vmatprep.subr.bf16.mxu0 0
      %902 = vmatpush1.bf16.msra.mxu0 0
      %903 = vmatprep.subr.bf16.mxu0 0
      %904 = vmatpush1.bf16.msra.mxu0 0
      %905 = vmatprep.subr.bf16.mxu0 0
      %906 = vmatpush1.bf16.msra.mxu0 0
      %907 = vmatprep.mubr.bf16.mxu0 0
      %908 = vmatmul.mubr.bf16.gmra.mrb[0].mxu0 %v745
      %v909 = vpop.f32.mrb[0].mxu0
      %v910 = vadd.f32 %v861, %v909
      %v911 = vpop.f32.mrb[0].mxu0
      %v912 = vpop.f32.mrb[0].mxu0
      %v913 = vadd.f32 %v861, %v912
      %v914 = vpop.f32.mrb[0].mxu0
      %915 = vdwg.mxu0
      %918 = vrot.lane.b32.xlu0 %v782, 120
      %v919 = vpop.permute.xlu0 %918
      %920 = vrot.lane.b32.xlu0 %v785, 120
      %v921 = vpop.permute.xlu0 %920
      %924 = vrot.lane.b32.xlu0 %v782, 112
      %v925 = vpop.permute.xlu0 %924
      %926 = vrot.lane.b32.xlu0 %v785, 112
      %v927 = vpop.permute.xlu0 %926
      %930 = vrot.lane.b32.xlu0 %v782, 104
      %v931 = vpop.permute.xlu0 %930
      %932 = vrot.lane.b32.xlu0 %v785, 104
      %v933 = vpop.permute.xlu0 %932
      %v936 = vpack.c.bf16 %v782, %v782
      %v937 = vpack.c.bf16 %v785, %v785
      %v938 = vpack.c.bf16 %v919, %v919
      %v939 = vpack.c.bf16 %v921, %v921
      %v940 = vpack.c.bf16 %v925, %v925
      %v941 = vpack.c.bf16 %v927, %v927
      %v942 = vpack.c.bf16 %v931, %v931
      %v943 = vpack.c.bf16 %v933, %v933
      %946 = vrot.lane.b32.xlu0 %v846, 120
      %v947 = vpop.permute.xlu0 %946
      %948 = vrot.lane.b32.xlu0 %v849, 120
      %v949 = vpop.permute.xlu0 %948
      %952 = vrot.lane.b32.xlu0 %v846, 112
      %v953 = vpop.permute.xlu0 %952
      %954 = vrot.lane.b32.xlu0 %v849, 112
      %v955 = vpop.permute.xlu0 %954
      %958 = vrot.lane.b32.xlu0 %v846, 104
      %v959 = vpop.permute.xlu0 %958
      %960 = vrot.lane.b32.xlu0 %v849, 104
      %v961 = vpop.permute.xlu0 %960
      %v964 = vpack.c.bf16 %v846, %v846
      %v965 = vpack.c.bf16 %v849, %v849
      %v966 = vpack.c.bf16 %v947, %v947
      %v967 = vpack.c.bf16 %v949, %v949
      %v968 = vpack.c.bf16 %v953, %v953
      %v969 = vpack.c.bf16 %v955, %v955
      %v970 = vpack.c.bf16 %v959, %v959
      %v971 = vpack.c.bf16 %v961, %v961
      %974 = vrot.lane.b32.xlu0 %v910, 120
      %v975 = vpop.permute.xlu0 %974
      %976 = vrot.lane.b32.xlu0 %v913, 120
      %v977 = vpop.permute.xlu0 %976
      %980 = vrot.lane.b32.xlu0 %v910, 112
      %v981 = vpop.permute.xlu0 %980
      %982 = vrot.lane.b32.xlu0 %v913, 112
      %v983 = vpop.permute.xlu0 %982
      %986 = vrot.lane.b32.xlu0 %v910, 104
      %v987 = vpop.permute.xlu0 %986
      %988 = vrot.lane.b32.xlu0 %v913, 104
      %v989 = vpop.permute.xlu0 %988
      %v992 = vpack.c.bf16 %v910, %v910
      %v993 = vpack.c.bf16 %v913, %v913
      %v994 = vpack.c.bf16 %v975, %v975
      %v995 = vpack.c.bf16 %v977, %v977
      %v996 = vpack.c.bf16 %v981, %v981
      %v997 = vpack.c.bf16 %v983, %v983
      %v998 = vpack.c.bf16 %v987, %v987
      %v999 = vpack.c.bf16 %v989, %v989
      %vm1000 = vcmask 64512
      %v1002 = vsel %vm1000, %v936, 0
      %v1005 = vsel %vm1000, %v964, 0
      %1007 = vmatprep.subr.bf16.mxu0 0
      %1008 = vmatpush1.bf16.xpose.msra.mxu0 %v1005
      %1009 = vmatprep.subr.bf16.mxu0 0
      %1010 = vmatpush1.bf16.xpose.msra.mxu0 0
      %1011 = vmatprep.subr.bf16.mxu0 0
      %1012 = vmatpush1.bf16.xpose.msra.mxu0 0
      %1013 = vmatprep.subr.bf16.mxu0 0
      %1014 = vmatpush1.bf16.xpose.msra.mxu0 0
      %1015 = vmatprep.subr.bf16.mxu0 0
      %1016 = vmatpush1.bf16.xpose.msra.mxu0 0
      %1017 = vmatprep.subr.bf16.mxu0 0
      %1018 = vmatpush1.bf16.xpose.msra.mxu0 0
      %1019 = vmatprep.subr.bf16.mxu0 0
      %1020 = vmatpush1.bf16.xpose.msra.mxu0 0
      %1021 = vmatprep.subr.bf16.mxu0 0
      %1022 = vmatpush1.bf16.xpose.msra.mxu0 0
      %1023 = vmatprep.subr.bf16.mxu0 0
      %1024 = vmatpush1.bf16.xpose.msra.mxu0 0
      %1025 = vmatprep.subr.bf16.mxu0 0
      %1026 = vmatpush1.bf16.xpose.msra.mxu0 0
      %1027 = vmatprep.subr.bf16.mxu0 0
      %1028 = vmatpush1.bf16.xpose.msra.mxu0 0
      %1029 = vmatprep.subr.bf16.mxu0 0
      %1030 = vmatpush1.bf16.xpose.msra.mxu0 0
      %1031 = vmatprep.subr.bf16.mxu0 0
      %1032 = vmatpush1.bf16.xpose.msra.mxu0 0
      %1033 = vmatprep.subr.bf16.mxu0 0
      %1034 = vmatpush1.bf16.xpose.msra.mxu0 0
      %1035 = vmatprep.subr.bf16.mxu0 0
      %1036 = vmatpush1.bf16.xpose.msra.mxu0 0
      %1037 = vmatprep.subr.bf16.mxu0 0
      %1038 = vmatpush1.bf16.xpose.msra.mxu0 0
      %1039 = vmatprep.mubr.bf16.mxu0 0
      %1040 = vmatmul.mubr.bf16.gmra.mrb[0].mxu0 %v1002
      %v1041 = vpop.f32.mrb[0].mxu0
      %v1042 = vadd.f32 0.0, %v1041
      %v1043 = vpop.f32.mrb[0].mxu0
      %v1044 = vpop.f32.mrb[0].mxu0
      %v1045 = vpop.f32.mrb[0].mxu0
      %1046 = vdwg.mxu0
      %v1048 = vsel %vm1000, %v937, 0
      %v1051 = vsel %vm1000, %v965, 0
      %1053 = vmatprep.subr.bf16.mxu0 0
      %1054 = vmatpush1.bf16.xpose.msra.mxu0 %v1051
      %1055 = vmatprep.subr.bf16.mxu0 0
      %1056 = vmatpush1.bf16.xpose.msra.mxu0 0
      %1057 = vmatprep.subr.bf16.mxu0 0
      %1058 = vmatpush1.bf16.xpose.msra.mxu0 0
      %1059 = vmatprep.subr.bf16.mxu0 0
      %1060 = vmatpush1.bf16.xpose.msra.mxu0 0
      %1061 = vmatprep.subr.bf16.mxu0 0
      %1062 = vmatpush1.bf16.xpose.msra.mxu0 0
      %1063 = vmatprep.subr.bf16.mxu0 0
      %1064 = vmatpush1.bf16.xpose.msra.mxu0 0
      %1065 = vmatprep.subr.bf16.mxu0 0
      %1066 = vmatpush1.bf16.xpose.msra.mxu0 0
      %1067 = vmatprep.subr.bf16.mxu0 0
      %1068 = vmatpush1.bf16.xpose.msra.mxu0 0
      %1069 = vmatprep.subr.bf16.mxu0 0
      %1070 = vmatpush1.bf16.xpose.msra.mxu0 0
      %1071 = vmatprep.subr.bf16.mxu0 0
      %1072 = vmatpush1.bf16.xpose.msra.mxu0 0
      %1073 = vmatprep.subr.bf16.mxu0 0
      %1074 = vmatpush1.bf16.xpose.msra.mxu0 0
      %1075 = vmatprep.subr.bf16.mxu0 0
      %1076 = vmatpush1.bf16.xpose.msra.mxu0 0
      %1077 = vmatprep.subr.bf16.mxu0 0
      %1078 = vmatpush1.bf16.xpose.msra.mxu0 0
      %1079 = vmatprep.subr.bf16.mxu0 0
      %1080 = vmatpush1.bf16.xpose.msra.mxu0 0
      %1081 = vmatprep.subr.bf16.mxu0 0
      %1082 = vmatpush1.bf16.xpose.msra.mxu0 0
      %1083 = vmatprep.subr.bf16.mxu0 0
      %1084 = vmatpush1.bf16.xpose.msra.mxu0 0
      %1085 = vmatprep.mubr.bf16.mxu0 0
      %1086 = vmatmul.mubr.bf16.gmra.mrb[0].mxu0 %v1048
      %v1087 = vpop.f32.mrb[0].mxu0
      %v1088 = vadd.f32 0.0, %v1087
      %v1089 = vpop.f32.mrb[0].mxu0
      %v1090 = vpop.f32.mrb[0].mxu0
      %v1091 = vpop.f32.mrb[0].mxu0
      %1092 = vdwg.mxu0
      %v1094 = vsel %vm1000, %v938, 0
      %v1097 = vsel %vm1000, %v966, 0
      %1099 = vmatprep.subr.bf16.mxu0 0
      %1100 = vmatpush1.bf16.xpose.msra.mxu0 %v1097
      %1101 = vmatprep.subr.bf16.mxu0 0
      %1102 = vmatpush1.bf16.xpose.msra.mxu0 0
      %1103 = vmatprep.subr.bf16.mxu0 0
      %1104 = vmatpush1.bf16.xpose.msra.mxu0 0
      %1105 = vmatprep.subr.bf16.mxu0 0
      %1106 = vmatpush1.bf16.xpose.msra.mxu0 0
      %1107 = vmatprep.subr.bf16.mxu0 0
      %1108 = vmatpush1.bf16.xpose.msra.mxu0 0
      %1109 = vmatprep.subr.bf16.mxu0 0
      %1110 = vmatpush1.bf16.xpose.msra.mxu0 0
      %1111 = vmatprep.subr.bf16.mxu0 0
      %1112 = vmatpush1.bf16.xpose.msra.mxu0 0
      %1113 = vmatprep.subr.bf16.mxu0 0
      %1114 = vmatpush1.bf16.xpose.msra.mxu0 0
      %1115 = vmatprep.subr.bf16.mxu0 0
      %1116 = vmatpush1.bf16.xpose.msra.mxu0 0
      %1117 = vmatprep.subr.bf16.mxu0 0
      %1118 = vmatpush1.bf16.xpose.msra.mxu0 0
      %1119 = vmatprep.subr.bf16.mxu0 0
      %1120 = vmatpush1.bf16.xpose.msra.mxu0 0
      %1121 = vmatprep.subr.bf16.mxu0 0
      %1122 = vmatpush1.bf16.xpose.msra.mxu0 0
      %1123 = vmatprep.subr.bf16.mxu0 0
      %1124 = vmatpush1.bf16.xpose.msra.mxu0 0
      %1125 = vmatprep.subr.bf16.mxu0 0
      %1126 = vmatpush1.bf16.xpose.msra.mxu0 0
      %1127 = vmatprep.subr.bf16.mxu0 0
      %1128 = vmatpush1.bf16.xpose.msra.mxu0 0
      %1129 = vmatprep.subr.bf16.mxu0 0
      %1130 = vmatpush1.bf16.xpose.msra.mxu0 0
      %1131 = vmatprep.mubr.bf16.mxu0 0
      %1132 = vmatmul.mubr.bf16.gmra.mrb[0].mxu0 %v1094
      %v1133 = vpop.f32.mrb[0].mxu0
      %v1134 = vadd.f32 0.0, %v1133
      %v1135 = vpop.f32.mrb[0].mxu0
      %v1136 = vpop.f32.mrb[0].mxu0
      %v1137 = vpop.f32.mrb[0].mxu0
      %1138 = vdwg.mxu0
      %v1140 = vsel %vm1000, %v939, 0
      %v1143 = vsel %vm1000, %v967, 0
      %1145 = vmatprep.subr.bf16.mxu0 0
      %1146 = vmatpush1.bf16.xpose.msra.mxu0 %v1143
      %1147 = vmatprep.subr.bf16.mxu0 0
      %1148 = vmatpush1.bf16.xpose.msra.mxu0 0
      %1149 = vmatprep.subr.bf16.mxu0 0
      %1150 = vmatpush1.bf16.xpose.msra.mxu0 0
      %1151 = vmatprep.subr.bf16.mxu0 0
      %1152 = vmatpush1.bf16.xpose.msra.mxu0 0
      %1153 = vmatprep.subr.bf16.mxu0 0
      %1154 = vmatpush1.bf16.xpose.msra.mxu0 0
      %1155 = vmatprep.subr.bf16.mxu0 0
      %1156 = vmatpush1.bf16.xpose.msra.mxu0 0
      %1157 = vmatprep.subr.bf16.mxu0 0
      %1158 = vmatpush1.bf16.xpose.msra.mxu0 0
      %1159 = vmatprep.subr.bf16.mxu0 0
      %1160 = vmatpush1.bf16.xpose.msra.mxu0 0
      %1161 = vmatprep.subr.bf16.mxu0 0
      %1162 = vmatpush1.bf16.xpose.msra.mxu0 0
      %1163 = vmatprep.subr.bf16.mxu0 0
      %1164 = vmatpush1.bf16.xpose.msra.mxu0 0
      %1165 = vmatprep.subr.bf16.mxu0 0
      %1166 = vmatpush1.bf16.xpose.msra.mxu0 0
      %1167 = vmatprep.subr.bf16.mxu0 0
      %1168 = vmatpush1.bf16.xpose.msra.mxu0 0
      %1169 = vmatprep.subr.bf16.mxu0 0
      %1170 = vmatpush1.bf16.xpose.msra.mxu0 0
      %1171 = vmatprep.subr.bf16.mxu0 0
      %1172 = vmatpush1.bf16.xpose.msra.mxu0 0
      %1173 = vmatprep.subr.bf16.mxu0 0
      %1174 = vmatpush1.bf16.xpose.msra.mxu0 0
      %1175 = vmatprep.subr.bf16.mxu0 0
      %1176 = vmatpush1.bf16.xpose.msra.mxu0 0
      %1177 = vmatprep.mubr.bf16.mxu0 0
      %1178 = vmatmul.mubr.bf16.gmra.mrb[0].mxu0 %v1140
      %v1179 = vpop.f32.mrb[0].mxu0
      %v1180 = vadd.f32 0.0, %v1179
      %v1181 = vpop.f32.mrb[0].mxu0
      %v1182 = vpop.f32.mrb[0].mxu0
      %v1183 = vpop.f32.mrb[0].mxu0
      %1184 = vdwg.mxu0
      %v1186 = vsel %vm1000, %v940, 0
      %v1189 = vsel %vm1000, %v968, 0
      %1191 = vmatprep.subr.bf16.mxu0 0
      %1192 = vmatpush1.bf16.xpose.msra.mxu0 %v1189
      %1193 = vmatprep.subr.bf16.mxu0 0
      %1194 = vmatpush1.bf16.xpose.msra.mxu0 0
      %1195 = vmatprep.subr.bf16.mxu0 0
      %1196 = vmatpush1.bf16.xpose.msra.mxu0 0
      %1197 = vmatprep.subr.bf16.mxu0 0
      %1198 = vmatpush1.bf16.xpose.msra.mxu0 0
      %1199 = vmatprep.subr.bf16.mxu0 0
      %1200 = vmatpush1.bf16.xpose.msra.mxu0 0
      %1201 = vmatprep.subr.bf16.mxu0 0
      %1202 = vmatpush1.bf16.xpose.msra.mxu0 0
      %1203 = vmatprep.subr.bf16.mxu0 0
      %1204 = vmatpush1.bf16.xpose.msra.mxu0 0
      %1205 = vmatprep.subr.bf16.mxu0 0
      %1206 = vmatpush1.bf16.xpose.msra.mxu0 0
      %1207 = vmatprep.subr.bf16.mxu0 0
      %1208 = vmatpush1.bf16.xpose.msra.mxu0 0
      %1209 = vmatprep.subr.bf16.mxu0 0
      %1210 = vmatpush1.bf16.xpose.msra.mxu0 0
      %1211 = vmatprep.subr.bf16.mxu0 0
      %1212 = vmatpush1.bf16.xpose.msra.mxu0 0
      %1213 = vmatprep.subr.bf16.mxu0 0
      %1214 = vmatpush1.bf16.xpose.msra.mxu0 0
      %1215 = vmatprep.subr.bf16.mxu0 0
      %1216 = vmatpush1.bf16.xpose.msra.mxu0 0
      %1217 = vmatprep.subr.bf16.mxu0 0
      %1218 = vmatpush1.bf16.xpose.msra.mxu0 0
      %1219 = vmatprep.subr.bf16.mxu0 0
      %1220 = vmatpush1.bf16.xpose.msra.mxu0 0
      %1221 = vmatprep.subr.bf16.mxu0 0
      %1222 = vmatpush1.bf16.xpose.msra.mxu0 0
      %1223 = vmatprep.mubr.bf16.mxu0 0
      %1224 = vmatmul.mubr.bf16.gmra.mrb[0].mxu0 %v1186
      %v1225 = vpop.f32.mrb[0].mxu0
      %v1226 = vadd.f32 0.0, %v1225
      %v1227 = vpop.f32.mrb[0].mxu0
      %v1228 = vpop.f32.mrb[0].mxu0
      %v1229 = vpop.f32.mrb[0].mxu0
      %1230 = vdwg.mxu0
      %v1232 = vsel %vm1000, %v941, 0
      %v1235 = vsel %vm1000, %v969, 0
      %1237 = vmatprep.subr.bf16.mxu0 0
      %1238 = vmatpush1.bf16.xpose.msra.mxu0 %v1235
      %1239 = vmatprep.subr.bf16.mxu0 0
      %1240 = vmatpush1.bf16.xpose.msra.mxu0 0
      %1241 = vmatprep.subr.bf16.mxu0 0
      %1242 = vmatpush1.bf16.xpose.msra.mxu0 0
      %1243 = vmatprep.subr.bf16.mxu0 0
      %1244 = vmatpush1.bf16.xpose.msra.mxu0 0
      %1245 = vmatprep.subr.bf16.mxu0 0
      %1246 = vmatpush1.bf16.xpose.msra.mxu0 0
      %1247 = vmatprep.subr.bf16.mxu0 0
      %1248 = vmatpush1.bf16.xpose.msra.mxu0 0
      %1249 = vmatprep.subr.bf16.mxu0 0
      %1250 = vmatpush1.bf16.xpose.msra.mxu0 0
      %1251 = vmatprep.subr.bf16.mxu0 0
      %1252 = vmatpush1.bf16.xpose.msra.mxu0 0
      %1253 = vmatprep.subr.bf16.mxu0 0
      %1254 = vmatpush1.bf16.xpose.msra.mxu0 0
      %1255 = vmatprep.subr.bf16.mxu0 0
      %1256 = vmatpush1.bf16.xpose.msra.mxu0 0
      %1257 = vmatprep.subr.bf16.mxu0 0
      %1258 = vmatpush1.bf16.xpose.msra.mxu0 0
      %1259 = vmatprep.subr.bf16.mxu0 0
      %1260 = vmatpush1.bf16.xpose.msra.mxu0 0
      %1261 = vmatprep.subr.bf16.mxu0 0
      %1262 = vmatpush1.bf16.xpose.msra.mxu0 0
      %1263 = vmatprep.subr.bf16.mxu0 0
      %1264 = vmatpush1.bf16.xpose.msra.mxu0 0
      %1265 = vmatprep.subr.bf16.mxu0 0
      %1266 = vmatpush1.bf16.xpose.msra.mxu0 0
      %1267 = vmatprep.subr.bf16.mxu0 0
      %1268 = vmatpush1.bf16.xpose.msra.mxu0 0
      %1269 = vmatprep.mubr.bf16.mxu0 0
      %1270 = vmatmul.mubr.bf16.gmra.mrb[0].mxu0 %v1232
      %v1271 = vpop.f32.mrb[0].mxu0
      %v1272 = vadd.f32 0.0, %v1271
      %v1273 = vpop.f32.mrb[0].mxu0
      %v1274 = vpop.f32.mrb[0].mxu0
      %v1275 = vpop.f32.mrb[0].mxu0
      %1276 = vdwg.mxu0
      %v1278 = vsel %vm1000, %v942, 0
      %v1281 = vsel %vm1000, %v970, 0
      %1283 = vmatprep.subr.bf16.mxu0 0
      %1284 = vmatpush1.bf16.xpose.msra.mxu0 %v1281
      %1285 = vmatprep.subr.bf16.mxu0 0
      %1286 = vmatpush1.bf16.xpose.msra.mxu0 0
      %1287 = vmatprep.subr.bf16.mxu0 0
      %1288 = vmatpush1.bf16.xpose.msra.mxu0 0
      %1289 = vmatprep.subr.bf16.mxu0 0
      %1290 = vmatpush1.bf16.xpose.msra.mxu0 0
      %1291 = vmatprep.subr.bf16.mxu0 0
      %1292 = vmatpush1.bf16.xpose.msra.mxu0 0
      %1293 = vmatprep.subr.bf16.mxu0 0
      %1294 = vmatpush1.bf16.xpose.msra.mxu0 0
      %1295 = vmatprep.subr.bf16.mxu0 0
      %1296 = vmatpush1.bf16.xpose.msra.mxu0 0
      %1297 = vmatprep.subr.bf16.mxu0 0
      %1298 = vmatpush1.bf16.xpose.msra.mxu0 0
      %1299 = vmatprep.subr.bf16.mxu0 0
      %1300 = vmatpush1.bf16.xpose.msra.mxu0 0
      %1301 = vmatprep.subr.bf16.mxu0 0
      %1302 = vmatpush1.bf16.xpose.msra.mxu0 0
      %1303 = vmatprep.subr.bf16.mxu0 0
      %1304 = vmatpush1.bf16.xpose.msra.mxu0 0
      %1305 = vmatprep.subr.bf16.mxu0 0
      %1306 = vmatpush1.bf16.xpose.msra.mxu0 0
      %1307 = vmatprep.subr.bf16.mxu0 0
      %1308 = vmatpush1.bf16.xpose.msra.mxu0 0
      %1309 = vmatprep.subr.bf16.mxu0 0
      %1310 = vmatpush1.bf16.xpose.msra.mxu0 0
      %1311 = vmatprep.subr.bf16.mxu0 0
      %1312 = vmatpush1.bf16.xpose.msra.mxu0 0
      %1313 = vmatprep.subr.bf16.mxu0 0
      %1314 = vmatpush1.bf16.xpose.msra.mxu0 0
      %1315 = vmatprep.mubr.bf16.mxu0 0
      %1316 = vmatmul.mubr.bf16.gmra.mrb[0].mxu0 %v1278
      %v1317 = vpop.f32.mrb[0].mxu0
      %v1318 = vadd.f32 0.0, %v1317
      %v1319 = vpop.f32.mrb[0].mxu0
      %v1320 = vpop.f32.mrb[0].mxu0
      %v1321 = vpop.f32.mrb[0].mxu0
      %1322 = vdwg.mxu0
      %v1324 = vsel %vm1000, %v943, 0
      %v1327 = vsel %vm1000, %v971, 0
      %1329 = vmatprep.subr.bf16.mxu0 0
      %1330 = vmatpush1.bf16.xpose.msra.mxu0 %v1327
      %1331 = vmatprep.subr.bf16.mxu0 0
      %1332 = vmatpush1.bf16.xpose.msra.mxu0 0
      %1333 = vmatprep.subr.bf16.mxu0 0
      %1334 = vmatpush1.bf16.xpose.msra.mxu0 0
      %1335 = vmatprep.subr.bf16.mxu0 0
      %1336 = vmatpush1.bf16.xpose.msra.mxu0 0
      %1337 = vmatprep.subr.bf16.mxu0 0
      %1338 = vmatpush1.bf16.xpose.msra.mxu0 0
      %1339 = vmatprep.subr.bf16.mxu0 0
      %1340 = vmatpush1.bf16.xpose.msra.mxu0 0
      %1341 = vmatprep.subr.bf16.mxu0 0
      %1342 = vmatpush1.bf16.xpose.msra.mxu0 0
      %1343 = vmatprep.subr.bf16.mxu0 0
      %1344 = vmatpush1.bf16.xpose.msra.mxu0 0
      %1345 = vmatprep.subr.bf16.mxu0 0
      %1346 = vmatpush1.bf16.xpose.msra.mxu0 0
      %1347 = vmatprep.subr.bf16.mxu0 0
      %1348 = vmatpush1.bf16.xpose.msra.mxu0 0
      %1349 = vmatprep.subr.bf16.mxu0 0
      %1350 = vmatpush1.bf16.xpose.msra.mxu0 0
      %1351 = vmatprep.subr.bf16.mxu0 0
      %1352 = vmatpush1.bf16.xpose.msra.mxu0 0
      %1353 = vmatprep.subr.bf16.mxu0 0
      %1354 = vmatpush1.bf16.xpose.msra.mxu0 0
      %1355 = vmatprep.subr.bf16.mxu0 0
      %1356 = vmatpush1.bf16.xpose.msra.mxu0 0
      %1357 = vmatprep.subr.bf16.mxu0 0
      %1358 = vmatpush1.bf16.xpose.msra.mxu0 0
      %1359 = vmatprep.subr.bf16.mxu0 0
      %1360 = vmatpush1.bf16.xpose.msra.mxu0 0
      %1361 = vmatprep.mubr.bf16.mxu0 0
      %1362 = vmatmul.mubr.bf16.gmra.mrb[0].mxu0 %v1324
      %v1363 = vpop.f32.mrb[0].mxu0
      %v1364 = vadd.f32 0.0, %v1363
      %v1365 = vpop.f32.mrb[0].mxu0
      %v1366 = vpop.f32.mrb[0].mxu0
      %v1367 = vpop.f32.mrb[0].mxu0
      %1368 = vdwg.mxu0
      %v1369 = vmul.f32 %v1042, 0.35355338
      %v1370 = vmul.f32 %v1088, 0.35355338
      %v1371 = vmul.f32 %v1134, 0.35355338
      %v1372 = vmul.f32 %v1180, 0.35355338
      %v1373 = vmul.f32 %v1226, 0.35355338
      %v1374 = vmul.f32 %v1272, 0.35355338
      %v1375 = vmul.f32 %v1318, 0.35355338
      %v1376 = vmul.f32 %v1364, 0.35355338
      %v1377 = vlaneseq
      %v1378 = vshrl.u32 %v1377, 7
      %v1379 = vsub.s32 0, %v1378
      %v1380 = vrot.slane %v712, %v1379
      %v1381 = vlaneseq
      %v1382 = vshrl.u32 %v1381, 7
      %v1383 = vsub.s32 0, %v1382
      %v1384 = vrot.slane %v719, %v1383
      %v1387 = vadd.f32 %v1369, %v1380
      %v1388 = vadd.f32 %v1370, %v1384
      %v1389 = vadd.f32 %v1371, %v1380
      %v1390 = vadd.f32 %v1372, %v1384
      %v1391 = vadd.f32 %v1373, %v1380
      %v1392 = vadd.f32 %v1374, %v1384
      %v1393 = vadd.f32 %v1375, %v1380
      %v1394 = vadd.f32 %v1376, %v1384
      %v1395 = vsel %vm1000, %v1387, -inf
      %1396 = vmax.xlane.f32.xlu0 %v1395
      %v1397 = vpop.xlane.xlu0 %1396
      %v1398 = vsel %vm1000, %v1388, -inf
      %1399 = vmax.xlane.f32.xlu0 %v1398
      %v1400 = vpop.xlane.xlu0 %1399
      %v1401 = vsel %vm1000, %v1389, -inf
      %1402 = vmax.xlane.f32.xlu0 %v1401
      %v1403 = vpop.xlane.xlu0 %1402
      %v1404 = vsel %vm1000, %v1390, -inf
      %1405 = vmax.xlane.f32.xlu0 %v1404
      %v1406 = vpop.xlane.xlu0 %1405
      %v1407 = vsel %vm1000, %v1391, -inf
      %1408 = vmax.xlane.f32.xlu0 %v1407
      %v1409 = vpop.xlane.xlu0 %1408
      %v1410 = vsel %vm1000, %v1392, -inf
      %1411 = vmax.xlane.f32.xlu0 %v1410
      %v1412 = vpop.xlane.xlu0 %1411
      %v1413 = vsel %vm1000, %v1393, -inf
      %1414 = vmax.xlane.f32.xlu0 %v1413
      %v1415 = vpop.xlane.xlu0 %1414
      %v1416 = vsel %vm1000, %v1394, -inf
      %1417 = vmax.xlane.f32.xlu0 %v1416
      %v1418 = vpop.xlane.xlu0 %1417
      %v1419 = vsub.f32 %v1387, %v1397
      %v1420 = vsub.f32 %v1388, %v1400
      %v1421 = vsub.f32 %v1389, %v1403
      %v1422 = vsub.f32 %v1390, %v1406
      %v1423 = vsub.f32 %v1391, %v1409
      %v1424 = vsub.f32 %v1392, %v1412
      %v1425 = vsub.f32 %v1393, %v1415
      %v1426 = vsub.f32 %v1394, %v1418
      %v1427 = vmul.f32 %v1419, 1.442695
      %v1428 = vpow.pop %v1427
      %v1429 = vmul.f32 %v1420, 1.442695
      %v1430 = vpow.pop %v1429
      %v1431 = vmul.f32 %v1421, 1.442695
      %v1432 = vpow.pop %v1431
      %v1433 = vmul.f32 %v1422, 1.442695
      %v1434 = vpow.pop %v1433
      %v1435 = vmul.f32 %v1423, 1.442695
      %v1436 = vpow.pop %v1435
      %v1437 = vmul.f32 %v1424, 1.442695
      %v1438 = vpow.pop %v1437
      %v1439 = vmul.f32 %v1425, 1.442695
      %v1440 = vpow.pop %v1439
      %v1441 = vmul.f32 %v1426, 1.442695
      %v1442 = vpow.pop %v1441
      %v1443 = vsel %vm1000, %v1428, 0.0
      %1444 = vadd.xlane.f32.xlu0 %v1443
      %v1445 = vpop.xlane.xlu0 %1444
      %v1446 = vsel %vm1000, %v1430, 0.0
      %1447 = vadd.xlane.f32.xlu0 %v1446
      %v1448 = vpop.xlane.xlu0 %1447
      %v1449 = vsel %vm1000, %v1432, 0.0
      %1450 = vadd.xlane.f32.xlu0 %v1449
      %v1451 = vpop.xlane.xlu0 %1450
      %v1452 = vsel %vm1000, %v1434, 0.0
      %1453 = vadd.xlane.f32.xlu0 %v1452
      %v1454 = vpop.xlane.xlu0 %1453
      %v1455 = vsel %vm1000, %v1436, 0.0
      %1456 = vadd.xlane.f32.xlu0 %v1455
      %v1457 = vpop.xlane.xlu0 %1456
      %v1458 = vsel %vm1000, %v1438, 0.0
      %1459 = vadd.xlane.f32.xlu0 %v1458
      %v1460 = vpop.xlane.xlu0 %1459
      %v1461 = vsel %vm1000, %v1440, 0.0
      %1462 = vadd.xlane.f32.xlu0 %v1461
      %v1463 = vpop.xlane.xlu0 %1462
      %v1464 = vsel %vm1000, %v1442, 0.0
      %1465 = vadd.xlane.f32.xlu0 %v1464
      %v1466 = vpop.xlane.xlu0 %1465
      %v1467 = vrcp.pop %v1445
      %v1468 = vrcp.pop %v1448
      %v1469 = vrcp.pop %v1451
      %v1470 = vrcp.pop %v1454
      %v1471 = vrcp.pop %v1457
      %v1472 = vrcp.pop %v1460
      %v1473 = vrcp.pop %v1463
      %v1474 = vrcp.pop %v1466
      %v1475 = vmul.f32 %v1428, %v1467
      %v1476 = vmul.f32 %v1430, %v1468
      %v1477 = vmul.f32 %v1432, %v1469
      %v1478 = vmul.f32 %v1434, %v1470
      %v1479 = vmul.f32 %v1436, %v1471
      %v1480 = vmul.f32 %v1438, %v1472
      %v1481 = vmul.f32 %v1440, %v1473
      %v1482 = vmul.f32 %v1442, %v1474
      %v1483 = vpack.c.bf16 %v1475, %v1475
      %v1484 = vpack.c.bf16 %v1476, %v1476
      %v1485 = vpack.c.bf16 %v1477, %v1477
      %v1486 = vpack.c.bf16 %v1478, %v1478
      %v1487 = vpack.c.bf16 %v1479, %v1479
      %v1488 = vpack.c.bf16 %v1480, %v1480
      %v1489 = vpack.c.bf16 %v1481, %v1481
      %v1490 = vpack.c.bf16 %v1482, %v1482
      %v1492 = vsel %vm1000, %v1483, 0
      %vm1494 = vcmask 1043456
      %v1496 = vsel %vm1494, %v992, 0
      %1498 = vmatprep.subr.bf16.mxu0 0
      %1499 = vmatpush1.bf16.msra.mxu0 %v1496
      %1500 = vmatprep.subr.bf16.mxu0 0
      %1501 = vmatpush1.bf16.msra.mxu0 0
      %1502 = vmatprep.subr.bf16.mxu0 0
      %1503 = vmatpush1.bf16.msra.mxu0 0
      %1504 = vmatprep.subr.bf16.mxu0 0
      %1505 = vmatpush1.bf16.msra.mxu0 0
      %1506 = vmatprep.subr.bf16.mxu0 0
      %1507 = vmatpush1.bf16.msra.mxu0 0
      %1508 = vmatprep.subr.bf16.mxu0 0
      %1509 = vmatpush1.bf16.msra.mxu0 0
      %1510 = vmatprep.subr.bf16.mxu0 0
      %1511 = vmatpush1.bf16.msra.mxu0 0
      %1512 = vmatprep.subr.bf16.mxu0 0
      %1513 = vmatpush1.bf16.msra.mxu0 0
      %1514 = vmatprep.subr.bf16.mxu0 0
      %1515 = vmatpush1.bf16.msra.mxu0 0
      %1516 = vmatprep.subr.bf16.mxu0 0
      %1517 = vmatpush1.bf16.msra.mxu0 0
      %1518 = vmatprep.subr.bf16.mxu0 0
      %1519 = vmatpush1.bf16.msra.mxu0 0
      %1520 = vmatprep.subr.bf16.mxu0 0
      %1521 = vmatpush1.bf16.msra.mxu0 0
      %1522 = vmatprep.subr.bf16.mxu0 0
      %1523 = vmatpush1.bf16.msra.mxu0 0
      %1524 = vmatprep.subr.bf16.mxu0 0
      %1525 = vmatpush1.bf16.msra.mxu0 0
      %1526 = vmatprep.subr.bf16.mxu0 0
      %1527 = vmatpush1.bf16.msra.mxu0 0
      %1528 = vmatprep.subr.bf16.mxu0 0
      %1529 = vmatpush1.bf16.msra.mxu0 0
      %1530 = vmatprep.mubr.bf16.mxu0 0
      %1531 = vmatmul.mubr.bf16.gmra.mrb[0].mxu0 %v1492
      %v1532 = vpop.f32.mrb[0].mxu0
      %v1533 = vadd.f32 0.0, %v1532
      %v1534 = vpop.f32.mrb[0].mxu0
      %v1535 = vpop.f32.mrb[0].mxu0
      %v1536 = vpop.f32.mrb[0].mxu0
      %1537 = vdwg.mxu0
      %v1539 = vsel %vm1000, %v1484, 0
      %v1542 = vsel %vm1494, %v993, 0
      %1544 = vmatprep.subr.bf16.mxu0 0
      %1545 = vmatpush1.bf16.msra.mxu0 %v1542
      %1546 = vmatprep.subr.bf16.mxu0 0
      %1547 = vmatpush1.bf16.msra.mxu0 0
      %1548 = vmatprep.subr.bf16.mxu0 0
      %1549 = vmatpush1.bf16.msra.mxu0 0
      %1550 = vmatprep.subr.bf16.mxu0 0
      %1551 = vmatpush1.bf16.msra.mxu0 0
      %1552 = vmatprep.subr.bf16.mxu0 0
      %1553 = vmatpush1.bf16.msra.mxu0 0
      %1554 = vmatprep.subr.bf16.mxu0 0
      %1555 = vmatpush1.bf16.msra.mxu0 0
      %1556 = vmatprep.subr.bf16.mxu0 0
      %1557 = vmatpush1.bf16.msra.mxu0 0
      %1558 = vmatprep.subr.bf16.mxu0 0
      %1559 = vmatpush1.bf16.msra.mxu0 0
      %1560 = vmatprep.subr.bf16.mxu0 0
      %1561 = vmatpush1.bf16.msra.mxu0 0
      %1562 = vmatprep.subr.bf16.mxu0 0
      %1563 = vmatpush1.bf16.msra.mxu0 0
      %1564 = vmatprep.subr.bf16.mxu0 0
      %1565 = vmatpush1.bf16.msra.mxu0 0
      %1566 = vmatprep.subr.bf16.mxu0 0
      %1567 = vmatpush1.bf16.msra.mxu0 0
      %1568 = vmatprep.subr.bf16.mxu0 0
      %1569 = vmatpush1.bf16.msra.mxu0 0
      %1570 = vmatprep.subr.bf16.mxu0 0
      %1571 = vmatpush1.bf16.msra.mxu0 0
      %1572 = vmatprep.subr.bf16.mxu0 0
      %1573 = vmatpush1.bf16.msra.mxu0 0
      %1574 = vmatprep.subr.bf16.mxu0 0
      %1575 = vmatpush1.bf16.msra.mxu0 0
      %1576 = vmatprep.mubr.bf16.mxu0 0
      %1577 = vmatmul.mubr.bf16.gmra.mrb[0].mxu0 %v1539
      %v1578 = vpop.f32.mrb[0].mxu0
      %v1579 = vadd.f32 0.0, %v1578
      %v1580 = vpop.f32.mrb[0].mxu0
      %v1581 = vpop.f32.mrb[0].mxu0
      %v1582 = vpop.f32.mrb[0].mxu0
      %1583 = vdwg.mxu0
      %v1585 = vsel %vm1000, %v1485, 0
      %v1588 = vsel %vm1494, %v994, 0
      %1590 = vmatprep.subr.bf16.mxu0 0
      %1591 = vmatpush1.bf16.msra.mxu0 %v1588
      %1592 = vmatprep.subr.bf16.mxu0 0
      %1593 = vmatpush1.bf16.msra.mxu0 0
      %1594 = vmatprep.subr.bf16.mxu0 0
      %1595 = vmatpush1.bf16.msra.mxu0 0
      %1596 = vmatprep.subr.bf16.mxu0 0
      %1597 = vmatpush1.bf16.msra.mxu0 0
      %1598 = vmatprep.subr.bf16.mxu0 0
      %1599 = vmatpush1.bf16.msra.mxu0 0
      %1600 = vmatprep.subr.bf16.mxu0 0
      %1601 = vmatpush1.bf16.msra.mxu0 0
      %1602 = vmatprep.subr.bf16.mxu0 0
      %1603 = vmatpush1.bf16.msra.mxu0 0
      %1604 = vmatprep.subr.bf16.mxu0 0
      %1605 = vmatpush1.bf16.msra.mxu0 0
      %1606 = vmatprep.subr.bf16.mxu0 0
      %1607 = vmatpush1.bf16.msra.mxu0 0
      %1608 = vmatprep.subr.bf16.mxu0 0
      %1609 = vmatpush1.bf16.msra.mxu0 0
      %1610 = vmatprep.subr.bf16.mxu0 0
      %1611 = vmatpush1.bf16.msra.mxu0 0
      %1612 = vmatprep.subr.bf16.mxu0 0
      %1613 = vmatpush1.bf16.msra.mxu0 0
      %1614 = vmatprep.subr.bf16.mxu0 0
      %1615 = vmatpush1.bf16.msra.mxu0 0
      %1616 = vmatprep.subr.bf16.mxu0 0
      %1617 = vmatpush1.bf16.msra.mxu0 0
      %1618 = vmatprep.subr.bf16.mxu0 0
      %1619 = vmatpush1.bf16.msra.mxu0 0
      %1620 = vmatprep.subr.bf16.mxu0 0
      %1621 = vmatpush1.bf16.msra.mxu0 0
      %1622 = vmatprep.mubr.bf16.mxu0 0
      %1623 = vmatmul.mubr.bf16.gmra.mrb[0].mxu0 %v1585
      %v1624 = vpop.f32.mrb[0].mxu0
      %v1625 = vadd.f32 0.0, %v1624
      %v1626 = vpop.f32.mrb[0].mxu0
      %v1627 = vpop.f32.mrb[0].mxu0
      %v1628 = vpop.f32.mrb[0].mxu0
      %1629 = vdwg.mxu0
      %v1631 = vsel %vm1000, %v1486, 0
      %v1634 = vsel %vm1494, %v995, 0
      %1636 = vmatprep.subr.bf16.mxu0 0
      %1637 = vmatpush1.bf16.msra.mxu0 %v1634
      %1638 = vmatprep.subr.bf16.mxu0 0
      %1639 = vmatpush1.bf16.msra.mxu0 0
      %1640 = vmatprep.subr.bf16.mxu0 0
      %1641 = vmatpush1.bf16.msra.mxu0 0
      %1642 = vmatprep.subr.bf16.mxu0 0
      %1643 = vmatpush1.bf16.msra.mxu0 0
      %1644 = vmatprep.subr.bf16.mxu0 0
      %1645 = vmatpush1.bf16.msra.mxu0 0
      %1646 = vmatprep.subr.bf16.mxu0 0
      %1647 = vmatpush1.bf16.msra.mxu0 0
      %1648 = vmatprep.subr.bf16.mxu0 0
      %1649 = vmatpush1.bf16.msra.mxu0 0
      %1650 = vmatprep.subr.bf16.mxu0 0
      %1651 = vmatpush1.bf16.msra.mxu0 0
      %1652 = vmatprep.subr.bf16.mxu0 0
      %1653 = vmatpush1.bf16.msra.mxu0 0
      %1654 = vmatprep.subr.bf16.mxu0 0
      %1655 = vmatpush1.bf16.msra.mxu0 0
      %1656 = vmatprep.subr.bf16.mxu0 0
      %1657 = vmatpush1.bf16.msra.mxu0 0
      %1658 = vmatprep.subr.bf16.mxu0 0
      %1659 = vmatpush1.bf16.msra.mxu0 0
      %1660 = vmatprep.subr.bf16.mxu0 0
      %1661 = vmatpush1.bf16.msra.mxu0 0
      %1662 = vmatprep.subr.bf16.mxu0 0
      %1663 = vmatpush1.bf16.msra.mxu0 0
      %1664 = vmatprep.subr.bf16.mxu0 0
      %1665 = vmatpush1.bf16.msra.mxu0 0
      %1666 = vmatprep.subr.bf16.mxu0 0
      %1667 = vmatpush1.bf16.msra.mxu0 0
      %1668 = vmatprep.mubr.bf16.mxu0 0
      %1669 = vmatmul.mubr.bf16.gmra.mrb[0].mxu0 %v1631
      %v1670 = vpop.f32.mrb[0].mxu0
      %v1671 = vadd.f32 0.0, %v1670
      %v1672 = vpop.f32.mrb[0].mxu0
      %v1673 = vpop.f32.mrb[0].mxu0
      %v1674 = vpop.f32.mrb[0].mxu0
      %1675 = vdwg.mxu0
      %v1677 = vsel %vm1000, %v1487, 0
      %v1680 = vsel %vm1494, %v996, 0
      %1682 = vmatprep.subr.bf16.mxu0 0
      %1683 = vmatpush1.bf16.msra.mxu0 %v1680
      %1684 = vmatprep.subr.bf16.mxu0 0
      %1685 = vmatpush1.bf16.msra.mxu0 0
      %1686 = vmatprep.subr.bf16.mxu0 0
      %1687 = vmatpush1.bf16.msra.mxu0 0
      %1688 = vmatprep.subr.bf16.mxu0 0
      %1689 = vmatpush1.bf16.msra.mxu0 0
      %1690 = vmatprep.subr.bf16.mxu0 0
      %1691 = vmatpush1.bf16.msra.mxu0 0
      %1692 = vmatprep.subr.bf16.mxu0 0
      %1693 = vmatpush1.bf16.msra.mxu0 0
      %1694 = vmatprep.subr.bf16.mxu0 0
      %1695 = vmatpush1.bf16.msra.mxu0 0
      %1696 = vmatprep.subr.bf16.mxu0 0
      %1697 = vmatpush1.bf16.msra.mxu0 0
      %1698 = vmatprep.subr.bf16.mxu0 0
      %1699 = vmatpush1.bf16.msra.mxu0 0
      %1700 = vmatprep.subr.bf16.mxu0 0
      %1701 = vmatpush1.bf16.msra.mxu0 0
      %1702 = vmatprep.subr.bf16.mxu0 0
      %1703 = vmatpush1.bf16.msra.mxu0 0
      %1704 = vmatprep.subr.bf16.mxu0 0
      %1705 = vmatpush1.bf16.msra.mxu0 0
      %1706 = vmatprep.subr.bf16.mxu0 0
      %1707 = vmatpush1.bf16.msra.mxu0 0
      %1708 = vmatprep.subr.bf16.mxu0 0
      %1709 = vmatpush1.bf16.msra.mxu0 0
      %1710 = vmatprep.subr.bf16.mxu0 0
      %1711 = vmatpush1.bf16.msra.mxu0 0
      %1712 = vmatprep.subr.bf16.mxu0 0
      %1713 = vmatpush1.bf16.msra.mxu0 0
      %1714 = vmatprep.mubr.bf16.mxu0 0
      %1715 = vmatmul.mubr.bf16.gmra.mrb[0].mxu0 %v1677
      %v1716 = vpop.f32.mrb[0].mxu0
      %v1717 = vadd.f32 0.0, %v1716
      %v1718 = vpop.f32.mrb[0].mxu0
      %v1719 = vpop.f32.mrb[0].mxu0
      %v1720 = vpop.f32.mrb[0].mxu0
      %1721 = vdwg.mxu0
      %v1723 = vsel %vm1000, %v1488, 0
      %v1726 = vsel %vm1494, %v997, 0
      %1728 = vmatprep.subr.bf16.mxu0 0
      %1729 = vmatpush1.bf16.msra.mxu0 %v1726
      %1730 = vmatprep.subr.bf16.mxu0 0
      %1731 = vmatpush1.bf16.msra.mxu0 0
      %1732 = vmatprep.subr.bf16.mxu0 0
      %1733 = vmatpush1.bf16.msra.mxu0 0
      %1734 = vmatprep.subr.bf16.mxu0 0
      %1735 = vmatpush1.bf16.msra.mxu0 0
      %1736 = vmatprep.subr.bf16.mxu0 0
      %1737 = vmatpush1.bf16.msra.mxu0 0
      %1738 = vmatprep.subr.bf16.mxu0 0
      %1739 = vmatpush1.bf16.msra.mxu0 0
      %1740 = vmatprep.subr.bf16.mxu0 0
      %1741 = vmatpush1.bf16.msra.mxu0 0
      %1742 = vmatprep.subr.bf16.mxu0 0
      %1743 = vmatpush1.bf16.msra.mxu0 0
      %1744 = vmatprep.subr.bf16.mxu0 0
      %1745 = vmatpush1.bf16.msra.mxu0 0
      %1746 = vmatprep.subr.bf16.mxu0 0
      %1747 = vmatpush1.bf16.msra.mxu0 0
      %1748 = vmatprep.subr.bf16.mxu0 0
      %1749 = vmatpush1.bf16.msra.mxu0 0
      %1750 = vmatprep.subr.bf16.mxu0 0
      %1751 = vmatpush1.bf16.msra.mxu0 0
      %1752 = vmatprep.subr.bf16.mxu0 0
      %1753 = vmatpush1.bf16.msra.mxu0 0
      %1754 = vmatprep.subr.bf16.mxu0 0
      %1755 = vmatpush1.bf16.msra.mxu0 0
      %1756 = vmatprep.subr.bf16.mxu0 0
      %1757 = vmatpush1.bf16.msra.mxu0 0
      %1758 = vmatprep.subr.bf16.mxu0 0
      %1759 = vmatpush1.bf16.msra.mxu0 0
      %1760 = vmatprep.mubr.bf16.mxu0 0
      %1761 = vmatmul.mubr.bf16.gmra.mrb[0].mxu0 %v1723
      %v1762 = vpop.f32.mrb[0].mxu0
      %v1763 = vadd.f32 0.0, %v1762
      %v1764 = vpop.f32.mrb[0].mxu0
      %v1765 = vpop.f32.mrb[0].mxu0
      %v1766 = vpop.f32.mrb[0].mxu0
      %1767 = vdwg.mxu0
      %v1769 = vsel %vm1000, %v1489, 0
      %v1772 = vsel %vm1494, %v998, 0
      %1774 = vmatprep.subr.bf16.mxu0 0
      %1775 = vmatpush1.bf16.msra.mxu0 %v1772
      %1776 = vmatprep.subr.bf16.mxu0 0
      %1777 = vmatpush1.bf16.msra.mxu0 0
      %1778 = vmatprep.subr.bf16.mxu0 0
      %1779 = vmatpush1.bf16.msra.mxu0 0
      %1780 = vmatprep.subr.bf16.mxu0 0
      %1781 = vmatpush1.bf16.msra.mxu0 0
      %1782 = vmatprep.subr.bf16.mxu0 0
      %1783 = vmatpush1.bf16.msra.mxu0 0
      %1784 = vmatprep.subr.bf16.mxu0 0
      %1785 = vmatpush1.bf16.msra.mxu0 0
      %1786 = vmatprep.subr.bf16.mxu0 0
      %1787 = vmatpush1.bf16.msra.mxu0 0
      %1788 = vmatprep.subr.bf16.mxu0 0
      %1789 = vmatpush1.bf16.msra.mxu0 0
      %1790 = vmatprep.subr.bf16.mxu0 0
      %1791 = vmatpush1.bf16.msra.mxu0 0
      %1792 = vmatprep.subr.bf16.mxu0 0
      %1793 = vmatpush1.bf16.msra.mxu0 0
      %1794 = vmatprep.subr.bf16.mxu0 0
      %1795 = vmatpush1.bf16.msra.mxu0 0
      %1796 = vmatprep.subr.bf16.mxu0 0
      %1797 = vmatpush1.bf16.msra.mxu0 0
      %1798 = vmatprep.subr.bf16.mxu0 0
      %1799 = vmatpush1.bf16.msra.mxu0 0
      %1800 = vmatprep.subr.bf16.mxu0 0
      %1801 = vmatpush1.bf16.msra.mxu0 0
      %1802 = vmatprep.subr.bf16.mxu0 0
      %1803 = vmatpush1.bf16.msra.mxu0 0
      %1804 = vmatprep.subr.bf16.mxu0 0
      %1805 = vmatpush1.bf16.msra.mxu0 0
      %1806 = vmatprep.mubr.bf16.mxu0 0
      %1807 = vmatmul.mubr.bf16.gmra.mrb[0].mxu0 %v1769
      %v1808 = vpop.f32.mrb[0].mxu0
      %v1809 = vadd.f32 0.0, %v1808
      %v1810 = vpop.f32.mrb[0].mxu0
      %v1811 = vpop.f32.mrb[0].mxu0
      %v1812 = vpop.f32.mrb[0].mxu0
      %1813 = vdwg.mxu0
      %v1815 = vsel %vm1000, %v1490, 0
      %v1818 = vsel %vm1494, %v999, 0
      %1820 = vmatprep.subr.bf16.mxu0 0
      %1821 = vmatpush1.bf16.msra.mxu0 %v1818
      %1822 = vmatprep.subr.bf16.mxu0 0
      %1823 = vmatpush1.bf16.msra.mxu0 0
      %1824 = vmatprep.subr.bf16.mxu0 0
      %1825 = vmatpush1.bf16.msra.mxu0 0
      %1826 = vmatprep.subr.bf16.mxu0 0
      %1827 = vmatpush1.bf16.msra.mxu0 0
      %1828 = vmatprep.subr.bf16.mxu0 0
      %1829 = vmatpush1.bf16.msra.mxu0 0
      %1830 = vmatprep.subr.bf16.mxu0 0
      %1831 = vmatpush1.bf16.msra.mxu0 0
      %1832 = vmatprep.subr.bf16.mxu0 0
      %1833 = vmatpush1.bf16.msra.mxu0 0
      %1834 = vmatprep.subr.bf16.mxu0 0
      %1835 = vmatpush1.bf16.msra.mxu0 0
      %1836 = vmatprep.subr.bf16.mxu0 0
      %1837 = vmatpush1.bf16.msra.mxu0 0
      %1838 = vmatprep.subr.bf16.mxu0 0
      %1839 = vmatpush1.bf16.msra.mxu0 0
      %1840 = vmatprep.subr.bf16.mxu0 0
      %1841 = vmatpush1.bf16.msra.mxu0 0
      %1842 = vmatprep.subr.bf16.mxu0 0
      %1843 = vmatpush1.bf16.msra.mxu0 0
      %1844 = vmatprep.subr.bf16.mxu0 0
      %1845 = vmatpush1.bf16.msra.mxu0 0
      %1846 = vmatprep.subr.bf16.mxu0 0
      %1847 = vmatpush1.bf16.msra.mxu0 0
      %1848 = vmatprep.subr.bf16.mxu0 0
      %1849 = vmatpush1.bf16.msra.mxu0 0
      %1850 = vmatprep.subr.bf16.mxu0 0
      %1851 = vmatpush1.bf16.msra.mxu0 0
      %1852 = vmatprep.mubr.bf16.mxu0 0
      %1853 = vmatmul.mubr.bf16.gmra.mrb[0].mxu0 %v1815
      %v1854 = vpop.f32.mrb[0].mxu0
      %v1855 = vadd.f32 0.0, %v1854
      %v1856 = vpop.f32.mrb[0].mxu0
      %v1857 = vpop.f32.mrb[0].mxu0
      %v1858 = vpop.f32.mrb[0].mxu0
      %1859 = vdwg.mxu0
      %1862 = vrot.lane.b32.xlu0 %v1625, 8
      %v1863 = vpop.permute.xlu0 %1862
      %1864 = vrot.lane.b32.xlu0 %v1671, 8
      %v1865 = vpop.permute.xlu0 %1864
      %1870 = vrot.lane.b32.xlu0 %v1717, 16
      %v1871 = vpop.permute.xlu0 %1870
      %1872 = vrot.lane.b32.xlu0 %v1763, 16
      %v1873 = vpop.permute.xlu0 %1872
      %1878 = vrot.lane.b32.xlu0 %v1809, 24
      %v1879 = vpop.permute.xlu0 %1878
      %1880 = vrot.lane.b32.xlu0 %v1855, 24
      %v1881 = vpop.permute.xlu0 %1880
      %v1884 = vsel %vm1000, %v1533, %v1863
      %v1885 = vsel %vm1000, %v1579, %v1865
      %vm1886 = vcmask 130048
      %v1887 = vsel %vm1886, %v1884, %v1871
      %v1888 = vsel %vm1886, %v1885, %v1873
      %vm1889 = vcmask 195584
      %v1890 = vsel %vm1889, %v1887, %v1879
      %v1891 = vsel %vm1889, %v1888, %v1881
      %v1892 = vpack.c.bf16 %v1891, %v1890
      %v1893 = vld [vmem:[%s10] sm:$0xf]
      %v1894 = vld [vmem:[%s10 + $0x4] sm:$0xf]
      %v1895 = vld [vmem:[%s10 + $0x8] sm:$0xf]
      %v1896 = vld [vmem:[%s10 + $0xc] sm:$0xf]
      %v1897 = vld [vmem:[%s11] sm:$0x1]
      %v1899 = vlaneseq
      %v1900 = vshrl.u32 %v1899, 7
      %v1901 = vsub.s32 0, %v1900
      %v1902 = vrot.slane %v1897, %v1901
      %v1908 = vunpack.c.l.b16 %v1893
      %v1909 = vunpack.c.l.b16 %v1894
      %v1910 = vunpack.c.l.b16 %v1895
      %v1911 = vunpack.c.l.b16 %v1896
      %v1912 = vpack.c.b16 %v1909, %v1908
      %v1913 = vpack.c.b16 %v1911, %v1910
      %v1917 = vsel %vm652, %v1892, 0
      %1919 = vmatprep.subr.bf16.mxu0 0
      %1920 = vmatpush1.bf16.msra.mxu0 %v1912
      %1921 = vmatprep.subr.bf16.mxu0 0
      %1922 = vmatpush1.bf16.msra.mxu0 %v1913
      %1923 = vmatprep.subr.bf16.mxu0 0
      %1924 = vmatpush1.bf16.msra.mxu0 0
      %1925 = vmatprep.subr.bf16.mxu0 0
      %1926 = vmatpush1.bf16.msra.mxu0 0
      %1927 = vmatprep.subr.bf16.mxu0 0
      %1928 = vmatpush1.bf16.msra.mxu0 0
      %1929 = vmatprep.subr.bf16.mxu0 0
      %1930 = vmatpush1.bf16.msra.mxu0 0
      %1931 = vmatprep.subr.bf16.mxu0 0
      %1932 = vmatpush1.bf16.msra.mxu0 0
      %1933 = vmatprep.subr.bf16.mxu0 0
      %1934 = vmatpush1.bf16.msra.mxu0 0
      %1935 = vmatprep.subr.bf16.mxu0 0
      %1936 = vmatpush1.bf16.msra.mxu0 0
      %1937 = vmatprep.subr.bf16.mxu0 0
      %1938 = vmatpush1.bf16.msra.mxu0 0
      %1939 = vmatprep.subr.bf16.mxu0 0
      %1940 = vmatpush1.bf16.msra.mxu0 0
      %1941 = vmatprep.subr.bf16.mxu0 0
      %1942 = vmatpush1.bf16.msra.mxu0 0
      %1943 = vmatprep.subr.bf16.mxu0 0
      %1944 = vmatpush1.bf16.msra.mxu0 0
      %1945 = vmatprep.subr.bf16.mxu0 0
      %1946 = vmatpush1.bf16.msra.mxu0 0
      %1947 = vmatprep.subr.bf16.mxu0 0
      %1948 = vmatpush1.bf16.msra.mxu0 0
      %1949 = vmatprep.subr.bf16.mxu0 0
      %1950 = vmatpush1.bf16.msra.mxu0 0
      %1951 = vmatprep.mubr.bf16.mxu0 0
      %1952 = vmatmul.mubr.bf16.gmra.mrb[0].mxu0 %v1917
      %v1953 = vpop.f32.mrb[0].mxu0
      %v1954 = vadd.f32 %v1902, %v1953
      %v1955 = vpop.f32.mrb[0].mxu0
      %v1956 = vpop.f32.mrb[0].mxu0
      %v1957 = vadd.f32 %v1902, %v1956
      %v1958 = vpop.f32.mrb[0].mxu0
      %1959 = vdwg.mxu0
      %v1960 = vadd.f32 %v1954, %v694
      %v1961 = vadd.f32 %v1957, %v695
      %v1962 = vld [vmem:[%s12] sm:$0x1]
      %v1963 = vld [vmem:[%s13] sm:$0x1]
      %v1964 = vsel %vm652, %v1960, 0.0
      %1965 = vadd.xlane.f32.xlu0 %v1964
      %v1966 = vpop.xlane.xlu0 %1965
      %v1967 = vsel %vm652, %v1961, 0.0
      %1968 = vadd.xlane.f32.xlu0 %v1967
      %v1969 = vpop.xlane.xlu0 %1968
      %v1970 = vmul.f32 %v1966, %v659
      %v1971 = vmul.f32 %v1969, %v659
      %v1972 = vsub.f32 %v1960, %v1970
      %v1973 = vsub.f32 %v1961, %v1971
      %v1974 = vmul.f32 %v1972, %v1972
      %v1975 = vmul.f32 %v1973, %v1973
      %v1976 = vsel %vm652, %v1974, 0.0
      %1977 = vadd.xlane.f32.xlu0 %v1976
      %v1978 = vpop.xlane.xlu0 %1977
      %v1979 = vsel %vm652, %v1975, 0.0
      %1980 = vadd.xlane.f32.xlu0 %v1979
      %v1981 = vpop.xlane.xlu0 %1980
      %v1982 = vmul.f32 %v1978, %v659
      %v1983 = vmul.f32 %v1981, %v659
      %v1984 = vadd.f32 %v1982, 1e-12
      %v1985 = vadd.f32 %v1983, 1e-12
      %v1986 = vrsqrt.pop %v1984
      %v1987 = vrsqrt.pop %v1985
      %v1988 = vmul.f32 %v1972, %v1986
      %v1989 = vmul.f32 %v1973, %v1987
      %v1991 = vlaneseq
      %v1992 = vshrl.u32 %v1991, 7
      %v1993 = vsub.s32 0, %v1992
      %v1994 = vrot.slane %v1962, %v1993
      %v1996 = vmul.f32 %v1988, %v1994
      %v1997 = vmul.f32 %v1989, %v1994
      %v1999 = vlaneseq
      %v2000 = vshrl.u32 %v1999, 7
      %v2001 = vsub.s32 0, %v2000
      %v2002 = vrot.slane %v1963, %v2001
      %v2004 = vadd.f32 %v1996, %v2002
      %v2005 = vadd.f32 %v1997, %v2002
      %v2006 = vpack.c.bf16 %v2005, %v2004
      %v2007 = vld [vmem:[%s14] sm:$0xf]
      %v2008 = vld [vmem:[%s14 + $0x4] sm:$0xf]
      %v2009 = vld [vmem:[%s14 + $0x8] sm:$0xf]
      %v2010 = vld [vmem:[%s14 + $0xc] sm:$0xf]
      %v2011 = vld [vmem:[%s15] sm:$0x1]
      %v2013 = vlaneseq
      %v2014 = vshrl.u32 %v2013, 7
      %v2015 = vsub.s32 0, %v2014
      %v2016 = vrot.slane %v2011, %v2015
      %v2022 = vunpack.c.l.b16 %v2007
      %v2023 = vunpack.c.l.b16 %v2008
      %v2024 = vunpack.c.l.b16 %v2009
      %v2025 = vunpack.c.l.b16 %v2010
      %v2026 = vpack.c.b16 %v2023, %v2022
      %v2027 = vpack.c.b16 %v2025, %v2024
      %v2031 = vsel %vm652, %v2006, 0
      %2033 = vmatprep.subr.bf16.mxu0 0
      %2034 = vmatpush1.bf16.msra.mxu0 %v2026
      %2035 = vmatprep.subr.bf16.mxu0 0
      %2036 = vmatpush1.bf16.msra.mxu0 %v2027
      %2037 = vmatprep.subr.bf16.mxu0 0
      %2038 = vmatpush1.bf16.msra.mxu0 0
      %2039 = vmatprep.subr.bf16.mxu0 0
      %2040 = vmatpush1.bf16.msra.mxu0 0
      %2041 = vmatprep.subr.bf16.mxu0 0
      %2042 = vmatpush1.bf16.msra.mxu0 0
      %2043 = vmatprep.subr.bf16.mxu0 0
      %2044 = vmatpush1.bf16.msra.mxu0 0
      %2045 = vmatprep.subr.bf16.mxu0 0
      %2046 = vmatpush1.bf16.msra.mxu0 0
      %2047 = vmatprep.subr.bf16.mxu0 0
      %2048 = vmatpush1.bf16.msra.mxu0 0
      %2049 = vmatprep.subr.bf16.mxu0 0
      %2050 = vmatpush1.bf16.msra.mxu0 0
      %2051 = vmatprep.subr.bf16.mxu0 0
      %2052 = vmatpush1.bf16.msra.mxu0 0
      %2053 = vmatprep.subr.bf16.mxu0 0
      %2054 = vmatpush1.bf16.msra.mxu0 0
      %2055 = vmatprep.subr.bf16.mxu0 0
      %2056 = vmatpush1.bf16.msra.mxu0 0
      %2057 = vmatprep.subr.bf16.mxu0 0
      %2058 = vmatpush1.bf16.msra.mxu0 0
      %2059 = vmatprep.subr.bf16.mxu0 0
      %2060 = vmatpush1.bf16.msra.mxu0 0
      %2061 = vmatprep.subr.bf16.mxu0 0
      %2062 = vmatpush1.bf16.msra.mxu0 0
      %2063 = vmatprep.subr.bf16.mxu0 0
      %2064 = vmatpush1.bf16.msra.mxu0 0
      %2065 = vmatprep.mubr.bf16.mxu0 0
      %2066 = vmatmul.mubr.bf16.gmra.mrb[0].mxu0 %v2031
      %v2067 = vpop.f32.mrb[0].mxu0
      %v2068 = vadd.f32 %v2016, %v2067
      %v2069 = vpop.f32.mrb[0].mxu0
      %v2070 = vpop.f32.mrb[0].mxu0
      %v2071 = vadd.f32 %v2016, %v2070
      %v2072 = vpop.f32.mrb[0].mxu0
      %2073 = vdwg.mxu0
      %v2074 = vmul.f32 %v2068, %v2068
      %v2075 = vmul.f32 %v2071, %v2071
      %v2076 = vmul.f32 %v2068, %v2074
      %v2077 = vmul.f32 %v2071, %v2075
      %v2078 = vmul.f32 %v2076, 0.044715
      %v2079 = vmul.f32 %v2077, 0.044715
      %v2080 = vadd.f32 %v2068, %v2078
      %v2081 = vadd.f32 %v2071, %v2079
      %v2082 = vmul.f32 %v2080, 0.7978846
      %v2083 = vmul.f32 %v2081, 0.7978846
      %v2084 = vtanh.pop %v2082
      %v2085 = vtanh.pop %v2083
      %v2086 = vadd.f32 %v2084, 1.0
      %v2087 = vadd.f32 %v2085, 1.0
      %v2088 = vmul.f32 %v2086, 0.5
      %v2089 = vmul.f32 %v2087, 0.5
      %v2090 = vmul.f32 %v2068, %v2088
      %v2091 = vmul.f32 %v2071, %v2089
      %v2092 = vpack.c.bf16 %v2091, %v2090
      %v2093 = vld [vmem:[%s16] sm:$0xf]
      %v2094 = vld [vmem:[%s16 + $0x4] sm:$0xf]
      %v2095 = vld [vmem:[%s16 + $0x8] sm:$0xf]
      %v2096 = vld [vmem:[%s16 + $0xc] sm:$0xf]
      %v2097 = vld [vmem:[%s16 + $0x10] sm:$0xf]
      %v2098 = vld [vmem:[%s16 + $0x14] sm:$0xf]
      %v2099 = vld [vmem:[%s16 + $0x18] sm:$0xf]
      %v2100 = vld [vmem:[%s16 + $0x1c] sm:$0xf]
      %v2101 = vld [vmem:[%s17] sm:$0x1]
      %v2103 = vlaneseq
      %v2104 = vshrl.u32 %v2103, 7
      %v2105 = vsub.s32 0, %v2104
      %v2106 = vrot.slane %v2101, %v2105
      %v2116 = vunpack.c.l.b16 %v2093
      %v2117 = vunpack.c.l.b16 %v2094
      %v2118 = vunpack.c.l.b16 %v2095
      %v2119 = vunpack.c.l.b16 %v2096
      %v2120 = vunpack.c.l.b16 %v2097
      %v2121 = vunpack.c.l.b16 %v2098
      %v2122 = vunpack.c.l.b16 %v2099
      %v2123 = vunpack.c.l.b16 %v2100
      %v2124 = vpack.c.b16 %v2117, %v2116
      %v2125 = vpack.c.b16 %v2119, %v2118
      %v2126 = vpack.c.b16 %v2121, %v2120
      %v2127 = vpack.c.b16 %v2123, %v2122
      %vm2132 = vcmask 523264
      %v2134 = vsel %vm2132, %v2092, 0
      %2136 = vmatprep.subr.bf16.mxu0 0
      %2137 = vmatpush1.bf16.msra.mxu0 %v2124
      %2138 = vmatprep.subr.bf16.mxu0 0
      %2139 = vmatpush1.bf16.msra.mxu0 %v2125
      %2140 = vmatprep.subr.bf16.mxu0 0
      %2141 = vmatpush1.bf16.msra.mxu0 %v2126
      %2142 = vmatprep.subr.bf16.mxu0 0
      %2143 = vmatpush1.bf16.msra.mxu0 %v2127
      %2144 = vmatprep.subr.bf16.mxu0 0
      %2145 = vmatpush1.bf16.msra.mxu0 0
      %2146 = vmatprep.subr.bf16.mxu0 0
      %2147 = vmatpush1.bf16.msra.mxu0 0
      %2148 = vmatprep.subr.bf16.mxu0 0
      %2149 = vmatpush1.bf16.msra.mxu0 0
      %2150 = vmatprep.subr.bf16.mxu0 0
      %2151 = vmatpush1.bf16.msra.mxu0 0
      %2152 = vmatprep.subr.bf16.mxu0 0
      %2153 = vmatpush1.bf16.msra.mxu0 0
      %2154 = vmatprep.subr.bf16.mxu0 0
      %2155 = vmatpush1.bf16.msra.mxu0 0
      %2156 = vmatprep.subr.bf16.mxu0 0
      %2157 = vmatpush1.bf16.msra.mxu0 0
      %2158 = vmatprep.subr.bf16.mxu0 0
      %2159 = vmatpush1.bf16.msra.mxu0 0
      %2160 = vmatprep.subr.bf16.mxu0 0
      %2161 = vmatpush1.bf16.msra.mxu0 0
      %2162 = vmatprep.subr.bf16.mxu0 0
      %2163 = vmatpush1.bf16.msra.mxu0 0
      %2164 = vmatprep.subr.bf16.mxu0 0
      %2165 = vmatpush1.bf16.msra.mxu0 0
      %2166 = vmatprep.subr.bf16.mxu0 0
      %2167 = vmatpush1.bf16.msra.mxu0 0
      %2168 = vmatprep.mubr.bf16.mxu0 0
      %2169 = vmatmul.mubr.bf16.gmra.mrb[0].mxu0 %v2134
      %v2170 = vpop.f32.mrb[0].mxu0
      %v2171 = vadd.f32 %v2106, %v2170
      %v2172 = vpop.f32.mrb[0].mxu0
      %v2173 = vpop.f32.mrb[0].mxu0
      %v2174 = vadd.f32 %v2106, %v2173
      %v2175 = vpop.f32.mrb[0].mxu0
      %2176 = vdwg.mxu0
      %v2177 = vadd.f32 %v2171, %v2004
      %v2178 = vadd.f32 %v2174, %v2005
      %v2179 = vld [vmem:[%s18] sm:$0x1]
      %v2180 = vld [vmem:[%s19] sm:$0x1]
      %v2181 = vsel %vm652, %v2177, 0.0
      %2182 = vadd.xlane.f32.xlu0 %v2181
      %v2183 = vpop.xlane.xlu0 %2182
      %v2184 = vsel %vm652, %v2178, 0.0
      %2185 = vadd.xlane.f32.xlu0 %v2184
      %v2186 = vpop.xlane.xlu0 %2185
      %v2187 = vmul.f32 %v2183, %v659
      %v2188 = vmul.f32 %v2186, %v659
      %v2189 = vsub.f32 %v2177, %v2187
      %v2190 = vsub.f32 %v2178, %v2188
      %v2191 = vmul.f32 %v2189, %v2189
      %v2192 = vmul.f32 %v2190, %v2190
      %v2193 = vsel %vm652, %v2191, 0.0
      %2194 = vadd.xlane.f32.xlu0 %v2193
      %v2195 = vpop.xlane.xlu0 %2194
      %v2196 = vsel %vm652, %v2192, 0.0
      %2197 = vadd.xlane.f32.xlu0 %v2196
      %v2198 = vpop.xlane.xlu0 %2197
      %v2199 = vmul.f32 %v2195, %v659
      %v2200 = vmul.f32 %v2198, %v659
      %v2201 = vadd.f32 %v2199, 1e-12
      %v2202 = vadd.f32 %v2200, 1e-12
      %v2203 = vrsqrt.pop %v2201
      %v2204 = vrsqrt.pop %v2202
      %v2205 = vmul.f32 %v2189, %v2203
      %v2206 = vmul.f32 %v2190, %v2204
      %v2208 = vlaneseq
      %v2209 = vshrl.u32 %v2208, 7
      %v2210 = vsub.s32 0, %v2209
      %v2211 = vrot.slane %v2179, %v2210
      %v2213 = vmul.f32 %v2205, %v2211
      %v2214 = vmul.f32 %v2206, %v2211
      %v2216 = vlaneseq
      %v2217 = vshrl.u32 %v2216, 7
      %v2218 = vsub.s32 0, %v2217
      %v2219 = vrot.slane %v2180, %v2218
      %v2221 = vadd.f32 %v2213, %v2219
      %v2222 = vadd.f32 %v2214, %v2219
      %v2223 = vpack.c.bf16 %v2222, %v2221
      %s2224 = scalar_lea.vmem %s4, 16
      %v2225 = vld [vmem:[%s2224] sm:$0xf]
      %v2226 = vld [vmem:[%s2224 + $0x4] sm:$0xf]
      %v2227 = vld [vmem:[%s2224 + $0x8] sm:$0xf]
      %v2228 = vld [vmem:[%s2224 + $0xc] sm:$0xf]
      %s2229 = scalar_lea.vmem %s5, 1
      %v2230 = vld [vmem:[%s2229] sm:$0x1]
      %v2232 = vlaneseq
      %v2233 = vshrl.u32 %v2232, 7
      %v2234 = vsub.s32 0, %v2233
      %v2235 = vrot.slane %v2230, %v2234
      %v2241 = vunpack.c.l.b16 %v2225
      %v2242 = vunpack.c.l.b16 %v2226
      %v2243 = vunpack.c.l.b16 %v2227
      %v2244 = vunpack.c.l.b16 %v2228
      %v2245 = vpack.c.b16 %v2242, %v2241
      %v2246 = vpack.c.b16 %v2244, %v2243
      %v2250 = vsel %vm652, %v2223, 0
      %2252 = vmatprep.subr.bf16.mxu0 0
      %2253 = vmatpush1.bf16.msra.mxu0 %v2245
      %2254 = vmatprep.subr.bf16.mxu0 0
      %2255 = vmatpush1.bf16.msra.mxu0 %v2246
      %2256 = vmatprep.subr.bf16.mxu0 0
      %2257 = vmatpush1.bf16.msra.mxu0 0
      %2258 = vmatprep.subr.bf16.mxu0 0
      %2259 = vmatpush1.bf16.msra.mxu0 0
      %2260 = vmatprep.subr.bf16.mxu0 0
      %2261 = vmatpush1.bf16.msra.mxu0 0
      %2262 = vmatprep.subr.bf16.mxu0 0
      %2263 = vmatpush1.bf16.msra.mxu0 0
      %2264 = vmatprep.subr.bf16.mxu0 0
      %2265 = vmatpush1.bf16.msra.mxu0 0
      %2266 = vmatprep.subr.bf16.mxu0 0
      %2267 = vmatpush1.bf16.msra.mxu0 0
      %2268 = vmatprep.subr.bf16.mxu0 0
      %2269 = vmatpush1.bf16.msra.mxu0 0
      %2270 = vmatprep.subr.bf16.mxu0 0
      %2271 = vmatpush1.bf16.msra.mxu0 0
      %2272 = vmatprep.subr.bf16.mxu0 0
      %2273 = vmatpush1.bf16.msra.mxu0 0
      %2274 = vmatprep.subr.bf16.mxu0 0
      %2275 = vmatpush1.bf16.msra.mxu0 0
      %2276 = vmatprep.subr.bf16.mxu0 0
      %2277 = vmatpush1.bf16.msra.mxu0 0
      %2278 = vmatprep.subr.bf16.mxu0 0
      %2279 = vmatpush1.bf16.msra.mxu0 0
      %2280 = vmatprep.subr.bf16.mxu0 0
      %2281 = vmatpush1.bf16.msra.mxu0 0
      %2282 = vmatprep.subr.bf16.mxu0 0
      %2283 = vmatpush1.bf16.msra.mxu0 0
      %2284 = vmatprep.mubr.bf16.mxu0 0
      %2285 = vmatmul.mubr.bf16.gmra.mrb[0].mxu0 %v2250
      %v2286 = vpop.f32.mrb[0].mxu0
      %v2287 = vadd.f32 %v2235, %v2286
      %v2288 = vpop.f32.mrb[0].mxu0
      %v2289 = vpop.f32.mrb[0].mxu0
      %v2290 = vadd.f32 %v2235, %v2289
      %v2291 = vpop.f32.mrb[0].mxu0
      %2292 = vdwg.mxu0
      %s2293 = scalar_lea.vmem %s6, 16
      %v2294 = vld [vmem:[%s2293] sm:$0xf]
      %v2295 = vld [vmem:[%s2293 + $0x4] sm:$0xf]
      %v2296 = vld [vmem:[%s2293 + $0x8] sm:$0xf]
      %v2297 = vld [vmem:[%s2293 + $0xc] sm:$0xf]
      %s2298 = scalar_lea.vmem %s7, 1
      %v2299 = vld [vmem:[%s2298] sm:$0x1]
      %v2301 = vlaneseq
      %v2302 = vshrl.u32 %v2301, 7
      %v2303 = vsub.s32 0, %v2302
      %v2304 = vrot.slane %v2299, %v2303
      %v2310 = vunpack.c.l.b16 %v2294
      %v2311 = vunpack.c.l.b16 %v2295
      %v2312 = vunpack.c.l.b16 %v2296
      %v2313 = vunpack.c.l.b16 %v2297
      %v2314 = vpack.c.b16 %v2311, %v2310
      %v2315 = vpack.c.b16 %v2313, %v2312
      %2318 = vmatprep.subr.bf16.mxu0 0
      %2319 = vmatpush1.bf16.msra.mxu0 %v2314
      %2320 = vmatprep.subr.bf16.mxu0 0
      %2321 = vmatpush1.bf16.msra.mxu0 %v2315
      %2322 = vmatprep.subr.bf16.mxu0 0
      %2323 = vmatpush1.bf16.msra.mxu0 0
      %2324 = vmatprep.subr.bf16.mxu0 0
      %2325 = vmatpush1.bf16.msra.mxu0 0
      %2326 = vmatprep.subr.bf16.mxu0 0
      %2327 = vmatpush1.bf16.msra.mxu0 0
      %2328 = vmatprep.subr.bf16.mxu0 0
      %2329 = vmatpush1.bf16.msra.mxu0 0
      %2330 = vmatprep.subr.bf16.mxu0 0
      %2331 = vmatpush1.bf16.msra.mxu0 0
      %2332 = vmatprep.subr.bf16.mxu0 0
      %2333 = vmatpush1.bf16.msra.mxu0 0
      %2334 = vmatprep.subr.bf16.mxu0 0
      %2335 = vmatpush1.bf16.msra.mxu0 0
      %2336 = vmatprep.subr.bf16.mxu0 0
      %2337 = vmatpush1.bf16.msra.mxu0 0
      %2338 = vmatprep.subr.bf16.mxu0 0
      %2339 = vmatpush1.bf16.msra.mxu0 0
      %2340 = vmatprep.subr.bf16.mxu0 0
      %2341 = vmatpush1.bf16.msra.mxu0 0
      %2342 = vmatprep.subr.bf16.mxu0 0
      %2343 = vmatpush1.bf16.msra.mxu0 0
      %2344 = vmatprep.subr.bf16.mxu0 0
      %2345 = vmatpush1.bf16.msra.mxu0 0
      %2346 = vmatprep.subr.bf16.mxu0 0
      %2347 = vmatpush1.bf16.msra.mxu0 0
      %2348 = vmatprep.subr.bf16.mxu0 0
      %2349 = vmatpush1.bf16.msra.mxu0 0
      %2350 = vmatprep.mubr.bf16.mxu0 0
      %2351 = vmatmul.mubr.bf16.gmra.mrb[0].mxu0 %v2250
      %v2352 = vpop.f32.mrb[0].mxu0
      %v2353 = vadd.f32 %v2304, %v2352
      %v2354 = vpop.f32.mrb[0].mxu0
      %v2355 = vpop.f32.mrb[0].mxu0
      %v2356 = vadd.f32 %v2304, %v2355
      %v2357 = vpop.f32.mrb[0].mxu0
      %2358 = vdwg.mxu0
      %s2359 = scalar_lea.vmem %s8, 16
      %v2360 = vld [vmem:[%s2359] sm:$0xf]
      %v2361 = vld [vmem:[%s2359 + $0x4] sm:$0xf]
      %v2362 = vld [vmem:[%s2359 + $0x8] sm:$0xf]
      %v2363 = vld [vmem:[%s2359 + $0xc] sm:$0xf]
      %s2364 = scalar_lea.vmem %s9, 1
      %v2365 = vld [vmem:[%s2364] sm:$0x1]
      %v2367 = vlaneseq
      %v2368 = vshrl.u32 %v2367, 7
      %v2369 = vsub.s32 0, %v2368
      %v2370 = vrot.slane %v2365, %v2369
      %v2376 = vunpack.c.l.b16 %v2360
      %v2377 = vunpack.c.l.b16 %v2361
      %v2378 = vunpack.c.l.b16 %v2362
      %v2379 = vunpack.c.l.b16 %v2363
      %v2380 = vpack.c.b16 %v2377, %v2376
      %v2381 = vpack.c.b16 %v2379, %v2378
      %2384 = vmatprep.subr.bf16.mxu0 0
      %2385 = vmatpush1.bf16.msra.mxu0 %v2380
      %2386 = vmatprep.subr.bf16.mxu0 0
      %2387 = vmatpush1.bf16.msra.mxu0 %v2381
      %2388 = vmatprep.subr.bf16.mxu0 0
      %2389 = vmatpush1.bf16.msra.mxu0 0
      %2390 = vmatprep.subr.bf16.mxu0 0
      %2391 = vmatpush1.bf16.msra.mxu0 0
      %2392 = vmatprep.subr.bf16.mxu0 0
      %2393 = vmatpush1.bf16.msra.mxu0 0
      %2394 = vmatprep.subr.bf16.mxu0 0
      %2395 = vmatpush1.bf16.msra.mxu0 0
      %2396 = vmatprep.subr.bf16.mxu0 0
      %2397 = vmatpush1.bf16.msra.mxu0 0
      %2398 = vmatprep.subr.bf16.mxu0 0
      %2399 = vmatpush1.bf16.msra.mxu0 0
      %2400 = vmatprep.subr.bf16.mxu0 0
      %2401 = vmatpush1.bf16.msra.mxu0 0
      %2402 = vmatprep.subr.bf16.mxu0 0
      %2403 = vmatpush1.bf16.msra.mxu0 0
      %2404 = vmatprep.subr.bf16.mxu0 0
      %2405 = vmatpush1.bf16.msra.mxu0 0
      %2406 = vmatprep.subr.bf16.mxu0 0
      %2407 = vmatpush1.bf16.msra.mxu0 0
      %2408 = vmatprep.subr.bf16.mxu0 0
      %2409 = vmatpush1.bf16.msra.mxu0 0
      %2410 = vmatprep.subr.bf16.mxu0 0
      %2411 = vmatpush1.bf16.msra.mxu0 0
      %2412 = vmatprep.subr.bf16.mxu0 0
      %2413 = vmatpush1.bf16.msra.mxu0 0
      %2414 = vmatprep.subr.bf16.mxu0 0
      %2415 = vmatpush1.bf16.msra.mxu0 0
      %2416 = vmatprep.mubr.bf16.mxu0 0
      %2417 = vmatmul.mubr.bf16.gmra.mrb[0].mxu0 %v2250
      %v2418 = vpop.f32.mrb[0].mxu0
      %v2419 = vadd.f32 %v2370, %v2418
      %v2420 = vpop.f32.mrb[0].mxu0
      %v2421 = vpop.f32.mrb[0].mxu0
      %v2422 = vadd.f32 %v2370, %v2421
      %v2423 = vpop.f32.mrb[0].mxu0
      %2424 = vdwg.mxu0
      %2427 = vrot.lane.b32.xlu0 %v2287, 120
      %v2428 = vpop.permute.xlu0 %2427
      %2429 = vrot.lane.b32.xlu0 %v2290, 120
      %v2430 = vpop.permute.xlu0 %2429
      %2433 = vrot.lane.b32.xlu0 %v2287, 112
      %v2434 = vpop.permute.xlu0 %2433
      %2435 = vrot.lane.b32.xlu0 %v2290, 112
      %v2436 = vpop.permute.xlu0 %2435
      %2439 = vrot.lane.b32.xlu0 %v2287, 104
      %v2440 = vpop.permute.xlu0 %2439
      %2441 = vrot.lane.b32.xlu0 %v2290, 104
      %v2442 = vpop.permute.xlu0 %2441
      %v2445 = vpack.c.bf16 %v2287, %v2287
      %v2446 = vpack.c.bf16 %v2290, %v2290
      %v2447 = vpack.c.bf16 %v2428, %v2428
      %v2448 = vpack.c.bf16 %v2430, %v2430
      %v2449 = vpack.c.bf16 %v2434, %v2434
      %v2450 = vpack.c.bf16 %v2436, %v2436
      %v2451 = vpack.c.bf16 %v2440, %v2440
      %v2452 = vpack.c.bf16 %v2442, %v2442
      %2455 = vrot.lane.b32.xlu0 %v2353, 120
      %v2456 = vpop.permute.xlu0 %2455
      %2457 = vrot.lane.b32.xlu0 %v2356, 120
      %v2458 = vpop.permute.xlu0 %2457
      %2461 = vrot.lane.b32.xlu0 %v2353, 112
      %v2462 = vpop.permute.xlu0 %2461
      %2463 = vrot.lane.b32.xlu0 %v2356, 112
      %v2464 = vpop.permute.xlu0 %2463
      %2467 = vrot.lane.b32.xlu0 %v2353, 104
      %v2468 = vpop.permute.xlu0 %2467
      %2469 = vrot.lane.b32.xlu0 %v2356, 104
      %v2470 = vpop.permute.xlu0 %2469
      %v2473 = vpack.c.bf16 %v2353, %v2353
      %v2474 = vpack.c.bf16 %v2356, %v2356
      %v2475 = vpack.c.bf16 %v2456, %v2456
      %v2476 = vpack.c.bf16 %v2458, %v2458
      %v2477 = vpack.c.bf16 %v2462, %v2462
      %v2478 = vpack.c.bf16 %v2464, %v2464
      %v2479 = vpack.c.bf16 %v2468, %v2468
      %v2480 = vpack.c.bf16 %v2470, %v2470
      %2483 = vrot.lane.b32.xlu0 %v2419, 120
      %v2484 = vpop.permute.xlu0 %2483
      %2485 = vrot.lane.b32.xlu0 %v2422, 120
      %v2486 = vpop.permute.xlu0 %2485
      %2489 = vrot.lane.b32.xlu0 %v2419, 112
      %v2490 = vpop.permute.xlu0 %2489
      %2491 = vrot.lane.b32.xlu0 %v2422, 112
      %v2492 = vpop.permute.xlu0 %2491
      %2495 = vrot.lane.b32.xlu0 %v2419, 104
      %v2496 = vpop.permute.xlu0 %2495
      %2497 = vrot.lane.b32.xlu0 %v2422, 104
      %v2498 = vpop.permute.xlu0 %2497
      %v2501 = vpack.c.bf16 %v2419, %v2419
      %v2502 = vpack.c.bf16 %v2422, %v2422
      %v2503 = vpack.c.bf16 %v2484, %v2484
      %v2504 = vpack.c.bf16 %v2486, %v2486
      %v2505 = vpack.c.bf16 %v2490, %v2490
      %v2506 = vpack.c.bf16 %v2492, %v2492
      %v2507 = vpack.c.bf16 %v2496, %v2496
      %v2508 = vpack.c.bf16 %v2498, %v2498
      %v2510 = vsel %vm1000, %v2445, 0
      %v2513 = vsel %vm1000, %v2473, 0
      %2515 = vmatprep.subr.bf16.mxu0 0
      %2516 = vmatpush1.bf16.xpose.msra.mxu0 %v2513
      %2517 = vmatprep.subr.bf16.mxu0 0
      %2518 = vmatpush1.bf16.xpose.msra.mxu0 0
      %2519 = vmatprep.subr.bf16.mxu0 0
      %2520 = vmatpush1.bf16.xpose.msra.mxu0 0
      %2521 = vmatprep.subr.bf16.mxu0 0
      %2522 = vmatpush1.bf16.xpose.msra.mxu0 0
      %2523 = vmatprep.subr.bf16.mxu0 0
      %2524 = vmatpush1.bf16.xpose.msra.mxu0 0
      %2525 = vmatprep.subr.bf16.mxu0 0
      %2526 = vmatpush1.bf16.xpose.msra.mxu0 0
      %2527 = vmatprep.subr.bf16.mxu0 0
      %2528 = vmatpush1.bf16.xpose.msra.mxu0 0
      %2529 = vmatprep.subr.bf16.mxu0 0
      %2530 = vmatpush1.bf16.xpose.msra.mxu0 0
      %2531 = vmatprep.subr.bf16.mxu0 0
      %2532 = vmatpush1.bf16.xpose.msra.mxu0 0
      %2533 = vmatprep.subr.bf16.mxu0 0
      %2534 = vmatpush1.bf16.xpose.msra.mxu0 0
      %2535 = vmatprep.subr.bf16.mxu0 0
      %2536 = vmatpush1.bf16.xpose.msra.mxu0 0
      %2537 = vmatprep.subr.bf16.mxu0 0
      %2538 = vmatpush1.bf16.xpose.msra.mxu0 0
      %2539 = vmatprep.subr.bf16.mxu0 0
      %2540 = vmatpush1.bf16.xpose.msra.mxu0 0
      %2541 = vmatprep.subr.bf16.mxu0 0
      %2542 = vmatpush1.bf16.xpose.msra.mxu0 0
      %2543 = vmatprep.subr.bf16.mxu0 0
      %2544 = vmatpush1.bf16.xpose.msra.mxu0 0
      %2545 = vmatprep.subr.bf16.mxu0 0
      %2546 = vmatpush1.bf16.xpose.msra.mxu0 0
      %2547 = vmatprep.mubr.bf16.mxu0 0
      %2548 = vmatmul.mubr.bf16.gmra.mrb[0].mxu0 %v2510
      %v2549 = vpop.f32.mrb[0].mxu0
      %v2550 = vadd.f32 0.0, %v2549
      %v2551 = vpop.f32.mrb[0].mxu0
      %v2552 = vpop.f32.mrb[0].mxu0
      %v2553 = vpop.f32.mrb[0].mxu0
      %2554 = vdwg.mxu0
      %v2556 = vsel %vm1000, %v2446, 0
      %v2559 = vsel %vm1000, %v2474, 0
      %2561 = vmatprep.subr.bf16.mxu0 0
      %2562 = vmatpush1.bf16.xpose.msra.mxu0 %v2559
      %2563 = vmatprep.subr.bf16.mxu0 0
      %2564 = vmatpush1.bf16.xpose.msra.mxu0 0
      %2565 = vmatprep.subr.bf16.mxu0 0
      %2566 = vmatpush1.bf16.xpose.msra.mxu0 0
      %2567 = vmatprep.subr.bf16.mxu0 0
      %2568 = vmatpush1.bf16.xpose.msra.mxu0 0
      %2569 = vmatprep.subr.bf16.mxu0 0
      %2570 = vmatpush1.bf16.xpose.msra.mxu0 0
      %2571 = vmatprep.subr.bf16.mxu0 0
      %2572 = vmatpush1.bf16.xpose.msra.mxu0 0
      %2573 = vmatprep.subr.bf16.mxu0 0
      %2574 = vmatpush1.bf16.xpose.msra.mxu0 0
      %2575 = vmatprep.subr.bf16.mxu0 0
      %2576 = vmatpush1.bf16.xpose.msra.mxu0 0
      %2577 = vmatprep.subr.bf16.mxu0 0
      %2578 = vmatpush1.bf16.xpose.msra.mxu0 0
      %2579 = vmatprep.subr.bf16.mxu0 0
      %2580 = vmatpush1.bf16.xpose.msra.mxu0 0
      %2581 = vmatprep.subr.bf16.mxu0 0
      %2582 = vmatpush1.bf16.xpose.msra.mxu0 0
      %2583 = vmatprep.subr.bf16.mxu0 0
      %2584 = vmatpush1.bf16.xpose.msra.mxu0 0
      %2585 = vmatprep.subr.bf16.mxu0 0
      %2586 = vmatpush1.bf16.xpose.msra.mxu0 0
      %2587 = vmatprep.subr.bf16.mxu0 0
      %2588 = vmatpush1.bf16.xpose.msra.mxu0 0
      %2589 = vmatprep.subr.bf16.mxu0 0
      %2590 = vmatpush1.bf16.xpose.msra.mxu0 0
      %2591 = vmatprep.subr.bf16.mxu0 0
      %2592 = vmatpush1.bf16.xpose.msra.mxu0 0
      %2593 = vmatprep.mubr.bf16.mxu0 0
      %2594 = vmatmul.mubr.bf16.gmra.mrb[0].mxu0 %v2556
      %v2595 = vpop.f32.mrb[0].mxu0
      %v2596 = vadd.f32 0.0, %v2595
      %v2597 = vpop.f32.mrb[0].mxu0
      %v2598 = vpop.f32.mrb[0].mxu0
      %v2599 = vpop.f32.mrb[0].mxu0
      %2600 = vdwg.mxu0
      %v2602 = vsel %vm1000, %v2447, 0
      %v2605 = vsel %vm1000, %v2475, 0
      %2607 = vmatprep.subr.bf16.mxu0 0
      %2608 = vmatpush1.bf16.xpose.msra.mxu0 %v2605
      %2609 = vmatprep.subr.bf16.mxu0 0
      %2610 = vmatpush1.bf16.xpose.msra.mxu0 0
      %2611 = vmatprep.subr.bf16.mxu0 0
      %2612 = vmatpush1.bf16.xpose.msra.mxu0 0
      %2613 = vmatprep.subr.bf16.mxu0 0
      %2614 = vmatpush1.bf16.xpose.msra.mxu0 0
      %2615 = vmatprep.subr.bf16.mxu0 0
      %2616 = vmatpush1.bf16.xpose.msra.mxu0 0
      %2617 = vmatprep.subr.bf16.mxu0 0
      %2618 = vmatpush1.bf16.xpose.msra.mxu0 0
      %2619 = vmatprep.subr.bf16.mxu0 0
      %2620 = vmatpush1.bf16.xpose.msra.mxu0 0
      %2621 = vmatprep.subr.bf16.mxu0 0
      %2622 = vmatpush1.bf16.xpose.msra.mxu0 0
      %2623 = vmatprep.subr.bf16.mxu0 0
      %2624 = vmatpush1.bf16.xpose.msra.mxu0 0
      %2625 = vmatprep.subr.bf16.mxu0 0
      %2626 = vmatpush1.bf16.xpose.msra.mxu0 0
      %2627 = vmatprep.subr.bf16.mxu0 0
      %2628 = vmatpush1.bf16.xpose.msra.mxu0 0
      %2629 = vmatprep.subr.bf16.mxu0 0
      %2630 = vmatpush1.bf16.xpose.msra.mxu0 0
      %2631 = vmatprep.subr.bf16.mxu0 0
      %2632 = vmatpush1.bf16.xpose.msra.mxu0 0
      %2633 = vmatprep.subr.bf16.mxu0 0
      %2634 = vmatpush1.bf16.xpose.msra.mxu0 0
      %2635 = vmatprep.subr.bf16.mxu0 0
      %2636 = vmatpush1.bf16.xpose.msra.mxu0 0
      %2637 = vmatprep.subr.bf16.mxu0 0
      %2638 = vmatpush1.bf16.xpose.msra.mxu0 0
      %2639 = vmatprep.mubr.bf16.mxu0 0
      %2640 = vmatmul.mubr.bf16.gmra.mrb[0].mxu0 %v2602
      %v2641 = vpop.f32.mrb[0].mxu0
      %v2642 = vadd.f32 0.0, %v2641
      %v2643 = vpop.f32.mrb[0].mxu0
      %v2644 = vpop.f32.mrb[0].mxu0
      %v2645 = vpop.f32.mrb[0].mxu0
      %2646 = vdwg.mxu0
      %v2648 = vsel %vm1000, %v2448, 0
      %v2651 = vsel %vm1000, %v2476, 0
      %2653 = vmatprep.subr.bf16.mxu0 0
      %2654 = vmatpush1.bf16.xpose.msra.mxu0 %v2651
      %2655 = vmatprep.subr.bf16.mxu0 0
      %2656 = vmatpush1.bf16.xpose.msra.mxu0 0
      %2657 = vmatprep.subr.bf16.mxu0 0
      %2658 = vmatpush1.bf16.xpose.msra.mxu0 0
      %2659 = vmatprep.subr.bf16.mxu0 0
      %2660 = vmatpush1.bf16.xpose.msra.mxu0 0
      %2661 = vmatprep.subr.bf16.mxu0 0
      %2662 = vmatpush1.bf16.xpose.msra.mxu0 0
      %2663 = vmatprep.subr.bf16.mxu0 0
      %2664 = vmatpush1.bf16.xpose.msra.mxu0 0
      %2665 = vmatprep.subr.bf16.mxu0 0
      %2666 = vmatpush1.bf16.xpose.msra.mxu0 0
      %2667 = vmatprep.subr.bf16.mxu0 0
      %2668 = vmatpush1.bf16.xpose.msra.mxu0 0
      %2669 = vmatprep.subr.bf16.mxu0 0
      %2670 = vmatpush1.bf16.xpose.msra.mxu0 0
      %2671 = vmatprep.subr.bf16.mxu0 0
      %2672 = vmatpush1.bf16.xpose.msra.mxu0 0
      %2673 = vmatprep.subr.bf16.mxu0 0
      %2674 = vmatpush1.bf16.xpose.msra.mxu0 0
      %2675 = vmatprep.subr.bf16.mxu0 0
      %2676 = vmatpush1.bf16.xpose.msra.mxu0 0
      %2677 = vmatprep.subr.bf16.mxu0 0
      %2678 = vmatpush1.bf16.xpose.msra.mxu0 0
      %2679 = vmatprep.subr.bf16.mxu0 0
      %2680 = vmatpush1.bf16.xpose.msra.mxu0 0
      %2681 = vmatprep.subr.bf16.mxu0 0
      %2682 = vmatpush1.bf16.xpose.msra.mxu0 0
      %2683 = vmatprep.subr.bf16.mxu0 0
      %2684 = vmatpush1.bf16.xpose.msra.mxu0 0
      %2685 = vmatprep.mubr.bf16.mxu0 0
      %2686 = vmatmul.mubr.bf16.gmra.mrb[0].mxu0 %v2648
      %v2687 = vpop.f32.mrb[0].mxu0
      %v2688 = vadd.f32 0.0, %v2687
      %v2689 = vpop.f32.mrb[0].mxu0
      %v2690 = vpop.f32.mrb[0].mxu0
      %v2691 = vpop.f32.mrb[0].mxu0
      %2692 = vdwg.mxu0
      %v2694 = vsel %vm1000, %v2449, 0
      %v2697 = vsel %vm1000, %v2477, 0
      %2699 = vmatprep.subr.bf16.mxu0 0
      %2700 = vmatpush1.bf16.xpose.msra.mxu0 %v2697
      %2701 = vmatprep.subr.bf16.mxu0 0
      %2702 = vmatpush1.bf16.xpose.msra.mxu0 0
      %2703 = vmatprep.subr.bf16.mxu0 0
      %2704 = vmatpush1.bf16.xpose.msra.mxu0 0
      %2705 = vmatprep.subr.bf16.mxu0 0
      %2706 = vmatpush1.bf16.xpose.msra.mxu0 0
      %2707 = vmatprep.subr.bf16.mxu0 0
      %2708 = vmatpush1.bf16.xpose.msra.mxu0 0
      %2709 = vmatprep.subr.bf16.mxu0 0
      %2710 = vmatpush1.bf16.xpose.msra.mxu0 0
      %2711 = vmatprep.subr.bf16.mxu0 0
      %2712 = vmatpush1.bf16.xpose.msra.mxu0 0
      %2713 = vmatprep.subr.bf16.mxu0 0
      %2714 = vmatpush1.bf16.xpose.msra.mxu0 0
      %2715 = vmatprep.subr.bf16.mxu0 0
      %2716 = vmatpush1.bf16.xpose.msra.mxu0 0
      %2717 = vmatprep.subr.bf16.mxu0 0
      %2718 = vmatpush1.bf16.xpose.msra.mxu0 0
      %2719 = vmatprep.subr.bf16.mxu0 0
      %2720 = vmatpush1.bf16.xpose.msra.mxu0 0
      %2721 = vmatprep.subr.bf16.mxu0 0
      %2722 = vmatpush1.bf16.xpose.msra.mxu0 0
      %2723 = vmatprep.subr.bf16.mxu0 0
      %2724 = vmatpush1.bf16.xpose.msra.mxu0 0
      %2725 = vmatprep.subr.bf16.mxu0 0
      %2726 = vmatpush1.bf16.xpose.msra.mxu0 0
      %2727 = vmatprep.subr.bf16.mxu0 0
      %2728 = vmatpush1.bf16.xpose.msra.mxu0 0
      %2729 = vmatprep.subr.bf16.mxu0 0
      %2730 = vmatpush1.bf16.xpose.msra.mxu0 0
      %2731 = vmatprep.mubr.bf16.mxu0 0
      %2732 = vmatmul.mubr.bf16.gmra.mrb[0].mxu0 %v2694
      %v2733 = vpop.f32.mrb[0].mxu0
      %v2734 = vadd.f32 0.0, %v2733
      %v2735 = vpop.f32.mrb[0].mxu0
      %v2736 = vpop.f32.mrb[0].mxu0
      %v2737 = vpop.f32.mrb[0].mxu0
      %2738 = vdwg.mxu0
      %v2740 = vsel %vm1000, %v2450, 0
      %v2743 = vsel %vm1000, %v2478, 0
      %2745 = vmatprep.subr.bf16.mxu0 0
      %2746 = vmatpush1.bf16.xpose.msra.mxu0 %v2743
      %2747 = vmatprep.subr.bf16.mxu0 0
      %2748 = vmatpush1.bf16.xpose.msra.mxu0 0
      %2749 = vmatprep.subr.bf16.mxu0 0
      %2750 = vmatpush1.bf16.xpose.msra.mxu0 0
      %2751 = vmatprep.subr.bf16.mxu0 0
      %2752 = vmatpush1.bf16.xpose.msra.mxu0 0
      %2753 = vmatprep.subr.bf16.mxu0 0
      %2754 = vmatpush1.bf16.xpose.msra.mxu0 0
      %2755 = vmatprep.subr.bf16.mxu0 0
      %2756 = vmatpush1.bf16.xpose.msra.mxu0 0
      %2757 = vmatprep.subr.bf16.mxu0 0
      %2758 = vmatpush1.bf16.xpose.msra.mxu0 0
      %2759 = vmatprep.subr.bf16.mxu0 0
      %2760 = vmatpush1.bf16.xpose.msra.mxu0 0
      %2761 = vmatprep.subr.bf16.mxu0 0
      %2762 = vmatpush1.bf16.xpose.msra.mxu0 0
      %2763 = vmatprep.subr.bf16.mxu0 0
      %2764 = vmatpush1.bf16.xpose.msra.mxu0 0
      %2765 = vmatprep.subr.bf16.mxu0 0
      %2766 = vmatpush1.bf16.xpose.msra.mxu0 0
      %2767 = vmatprep.subr.bf16.mxu0 0
      %2768 = vmatpush1.bf16.xpose.msra.mxu0 0
      %2769 = vmatprep.subr.bf16.mxu0 0
      %2770 = vmatpush1.bf16.xpose.msra.mxu0 0
      %2771 = vmatprep.subr.bf16.mxu0 0
      %2772 = vmatpush1.bf16.xpose.msra.mxu0 0
      %2773 = vmatprep.subr.bf16.mxu0 0
      %2774 = vmatpush1.bf16.xpose.msra.mxu0 0
      %2775 = vmatprep.subr.bf16.mxu0 0
      %2776 = vmatpush1.bf16.xpose.msra.mxu0 0
      %2777 = vmatprep.mubr.bf16.mxu0 0
      %2778 = vmatmul.mubr.bf16.gmra.mrb[0].mxu0 %v2740
      %v2779 = vpop.f32.mrb[0].mxu0
      %v2780 = vadd.f32 0.0, %v2779
      %v2781 = vpop.f32.mrb[0].mxu0
      %v2782 = vpop.f32.mrb[0].mxu0
      %v2783 = vpop.f32.mrb[0].mxu0
      %2784 = vdwg.mxu0
      %v2786 = vsel %vm1000, %v2451, 0
      %v2789 = vsel %vm1000, %v2479, 0
      %2791 = vmatprep.subr.bf16.mxu0 0
      %2792 = vmatpush1.bf16.xpose.msra.mxu0 %v2789
      %2793 = vmatprep.subr.bf16.mxu0 0
      %2794 = vmatpush1.bf16.xpose.msra.mxu0 0
      %2795 = vmatprep.subr.bf16.mxu0 0
      %2796 = vmatpush1.bf16.xpose.msra.mxu0 0
      %2797 = vmatprep.subr.bf16.mxu0 0
      %2798 = vmatpush1.bf16.xpose.msra.mxu0 0
      %2799 = vmatprep.subr.bf16.mxu0 0
      %2800 = vmatpush1.bf16.xpose.msra.mxu0 0
      %2801 = vmatprep.subr.bf16.mxu0 0
      %2802 = vmatpush1.bf16.xpose.msra.mxu0 0
      %2803 = vmatprep.subr.bf16.mxu0 0
      %2804 = vmatpush1.bf16.xpose.msra.mxu0 0
      %2805 = vmatprep.subr.bf16.mxu0 0
      %2806 = vmatpush1.bf16.xpose.msra.mxu0 0
      %2807 = vmatprep.subr.bf16.mxu0 0
      %2808 = vmatpush1.bf16.xpose.msra.mxu0 0
      %2809 = vmatprep.subr.bf16.mxu0 0
      %2810 = vmatpush1.bf16.xpose.msra.mxu0 0
      %2811 = vmatprep.subr.bf16.mxu0 0
      %2812 = vmatpush1.bf16.xpose.msra.mxu0 0
      %2813 = vmatprep.subr.bf16.mxu0 0
      %2814 = vmatpush1.bf16.xpose.msra.mxu0 0
      %2815 = vmatprep.subr.bf16.mxu0 0
      %2816 = vmatpush1.bf16.xpose.msra.mxu0 0
      %2817 = vmatprep.subr.bf16.mxu0 0
      %2818 = vmatpush1.bf16.xpose.msra.mxu0 0
      %2819 = vmatprep.subr.bf16.mxu0 0
      %2820 = vmatpush1.bf16.xpose.msra.mxu0 0
      %2821 = vmatprep.subr.bf16.mxu0 0
      %2822 = vmatpush1.bf16.xpose.msra.mxu0 0
      %2823 = vmatprep.mubr.bf16.mxu0 0
      %2824 = vmatmul.mubr.bf16.gmra.mrb[0].mxu0 %v2786
      %v2825 = vpop.f32.mrb[0].mxu0
      %v2826 = vadd.f32 0.0, %v2825
      %v2827 = vpop.f32.mrb[0].mxu0
      %v2828 = vpop.f32.mrb[0].mxu0
      %v2829 = vpop.f32.mrb[0].mxu0
      %2830 = vdwg.mxu0
      %v2832 = vsel %vm1000, %v2452, 0
      %v2835 = vsel %vm1000, %v2480, 0
      %2837 = vmatprep.subr.bf16.mxu0 0
      %2838 = vmatpush1.bf16.xpose.msra.mxu0 %v2835
      %2839 = vmatprep.subr.bf16.mxu0 0
      %2840 = vmatpush1.bf16.xpose.msra.mxu0 0
      %2841 = vmatprep.subr.bf16.mxu0 0
      %2842 = vmatpush1.bf16.xpose.msra.mxu0 0
      %2843 = vmatprep.subr.bf16.mxu0 0
      %2844 = vmatpush1.bf16.xpose.msra.mxu0 0
      %2845 = vmatprep.subr.bf16.mxu0 0
      %2846 = vmatpush1.bf16.xpose.msra.mxu0 0
      %2847 = vmatprep.subr.bf16.mxu0 0
      %2848 = vmatpush1.bf16.xpose.msra.mxu0 0
      %2849 = vmatprep.subr.bf16.mxu0 0
      %2850 = vmatpush1.bf16.xpose.msra.mxu0 0
      %2851 = vmatprep.subr.bf16.mxu0 0
      %2852 = vmatpush1.bf16.xpose.msra.mxu0 0
      %2853 = vmatprep.subr.bf16.mxu0 0
      %2854 = vmatpush1.bf16.xpose.msra.mxu0 0
      %2855 = vmatprep.subr.bf16.mxu0 0
      %2856 = vmatpush1.bf16.xpose.msra.mxu0 0
      %2857 = vmatprep.subr.bf16.mxu0 0
      %2858 = vmatpush1.bf16.xpose.msra.mxu0 0
      %2859 = vmatprep.subr.bf16.mxu0 0
      %2860 = vmatpush1.bf16.xpose.msra.mxu0 0
      %2861 = vmatprep.subr.bf16.mxu0 0
      %2862 = vmatpush1.bf16.xpose.msra.mxu0 0
      %2863 = vmatprep.subr.bf16.mxu0 0
      %2864 = vmatpush1.bf16.xpose.msra.mxu0 0
      %2865 = vmatprep.subr.bf16.mxu0 0
      %2866 = vmatpush1.bf16.xpose.msra.mxu0 0
      %2867 = vmatprep.subr.bf16.mxu0 0
      %2868 = vmatpush1.bf16.xpose.msra.mxu0 0
      %2869 = vmatprep.mubr.bf16.mxu0 0
      %2870 = vmatmul.mubr.bf16.gmra.mrb[0].mxu0 %v2832
      %v2871 = vpop.f32.mrb[0].mxu0
      %v2872 = vadd.f32 0.0, %v2871
      %v2873 = vpop.f32.mrb[0].mxu0
      %v2874 = vpop.f32.mrb[0].mxu0
      %v2875 = vpop.f32.mrb[0].mxu0
      %2876 = vdwg.mxu0
      %v2877 = vmul.f32 %v2550, 0.35355338
      %v2878 = vmul.f32 %v2596, 0.35355338
      %v2879 = vmul.f32 %v2642, 0.35355338
      %v2880 = vmul.f32 %v2688, 0.35355338
      %v2881 = vmul.f32 %v2734, 0.35355338
      %v2882 = vmul.f32 %v2780, 0.35355338
      %v2883 = vmul.f32 %v2826, 0.35355338
      %v2884 = vmul.f32 %v2872, 0.35355338
      %v2885 = vadd.f32 %v2877, %v1380
      %v2886 = vadd.f32 %v2878, %v1384
      %v2887 = vadd.f32 %v2879, %v1380
      %v2888 = vadd.f32 %v2880, %v1384
      %v2889 = vadd.f32 %v2881, %v1380
      %v2890 = vadd.f32 %v2882, %v1384
      %v2891 = vadd.f32 %v2883, %v1380
      %v2892 = vadd.f32 %v2884, %v1384
      %v2893 = vsel %vm1000, %v2885, -inf
      %2894 = vmax.xlane.f32.xlu0 %v2893
      %v2895 = vpop.xlane.xlu0 %2894
      %v2896 = vsel %vm1000, %v2886, -inf
      %2897 = vmax.xlane.f32.xlu0 %v2896
      %v2898 = vpop.xlane.xlu0 %2897
      %v2899 = vsel %vm1000, %v2887, -inf
      %2900 = vmax.xlane.f32.xlu0 %v2899
      %v2901 = vpop.xlane.xlu0 %2900
      %v2902 = vsel %vm1000, %v2888, -inf
      %2903 = vmax.xlane.f32.xlu0 %v2902
      %v2904 = vpop.xlane.xlu0 %2903
      %v2905 = vsel %vm1000, %v2889, -inf
      %2906 = vmax.xlane.f32.xlu0 %v2905
      %v2907 = vpop.xlane.xlu0 %2906
      %v2908 = vsel %vm1000, %v2890, -inf
      %2909 = vmax.xlane.f32.xlu0 %v2908
      %v2910 = vpop.xlane.xlu0 %2909
      %v2911 = vsel %vm1000, %v2891, -inf
      %2912 = vmax.xlane.f32.xlu0 %v2911
      %v2913 = vpop.xlane.xlu0 %2912
      %v2914 = vsel %vm1000, %v2892, -inf
      %2915 = vmax.xlane.f32.xlu0 %v2914
      %v2916 = vpop.xlane.xlu0 %2915
      %v2917 = vsub.f32 %v2885, %v2895
      %v2918 = vsub.f32 %v2886, %v2898
      %v2919 = vsub.f32 %v2887, %v2901
      %v2920 = vsub.f32 %v2888, %v2904
      %v2921 = vsub.f32 %v2889, %v2907
      %v2922 = vsub.f32 %v2890, %v2910
      %v2923 = vsub.f32 %v2891, %v2913
      %v2924 = vsub.f32 %v2892, %v2916
      %v2925 = vmul.f32 %v2917, 1.442695
      %v2926 = vpow.pop %v2925
      %v2927 = vmul.f32 %v2918, 1.442695
      %v2928 = vpow.pop %v2927
      %v2929 = vmul.f32 %v2919, 1.442695
      %v2930 = vpow.pop %v2929
      %v2931 = vmul.f32 %v2920, 1.442695
      %v2932 = vpow.pop %v2931
      %v2933 = vmul.f32 %v2921, 1.442695
      %v2934 = vpow.pop %v2933
      %v2935 = vmul.f32 %v2922, 1.442695
      %v2936 = vpow.pop %v2935
      %v2937 = vmul.f32 %v2923, 1.442695
      %v2938 = vpow.pop %v2937
      %v2939 = vmul.f32 %v2924, 1.442695
      %v2940 = vpow.pop %v2939
      %v2941 = vsel %vm1000, %v2926, 0.0
      %2942 = vadd.xlane.f32.xlu0 %v2941
      %v2943 = vpop.xlane.xlu0 %2942
      %v2944 = vsel %vm1000, %v2928, 0.0
      %2945 = vadd.xlane.f32.xlu0 %v2944
      %v2946 = vpop.xlane.xlu0 %2945
      %v2947 = vsel %vm1000, %v2930, 0.0
      %2948 = vadd.xlane.f32.xlu0 %v2947
      %v2949 = vpop.xlane.xlu0 %2948
      %v2950 = vsel %vm1000, %v2932, 0.0
      %2951 = vadd.xlane.f32.xlu0 %v2950
      %v2952 = vpop.xlane.xlu0 %2951
      %v2953 = vsel %vm1000, %v2934, 0.0
      %2954 = vadd.xlane.f32.xlu0 %v2953
      %v2955 = vpop.xlane.xlu0 %2954
      %v2956 = vsel %vm1000, %v2936, 0.0
      %2957 = vadd.xlane.f32.xlu0 %v2956
      %v2958 = vpop.xlane.xlu0 %2957
      %v2959 = vsel %vm1000, %v2938, 0.0
      %2960 = vadd.xlane.f32.xlu0 %v2959
      %v2961 = vpop.xlane.xlu0 %2960
      %v2962 = vsel %vm1000, %v2940, 0.0
      %2963 = vadd.xlane.f32.xlu0 %v2962
      %v2964 = vpop.xlane.xlu0 %2963
      %v2965 = vrcp.pop %v2943
      %v2966 = vrcp.pop %v2946
      %v2967 = vrcp.pop %v2949
      %v2968 = vrcp.pop %v2952
      %v2969 = vrcp.pop %v2955
      %v2970 = vrcp.pop %v2958
      %v2971 = vrcp.pop %v2961
      %v2972 = vrcp.pop %v2964
      %v2973 = vmul.f32 %v2926, %v2965
      %v2974 = vmul.f32 %v2928, %v2966
      %v2975 = vmul.f32 %v2930, %v2967
      %v2976 = vmul.f32 %v2932, %v2968
      %v2977 = vmul.f32 %v2934, %v2969
      %v2978 = vmul.f32 %v2936, %v2970
      %v2979 = vmul.f32 %v2938, %v2971
      %v2980 = vmul.f32 %v2940, %v2972
      %v2981 = vpack.c.bf16 %v2973, %v2973
      %v2982 = vpack.c.bf16 %v2974, %v2974
      %v2983 = vpack.c.bf16 %v2975, %v2975
      %v2984 = vpack.c.bf16 %v2976, %v2976
      %v2985 = vpack.c.bf16 %v2977, %v2977
      %v2986 = vpack.c.bf16 %v2978, %v2978
      %v2987 = vpack.c.bf16 %v2979, %v2979
      %v2988 = vpack.c.bf16 %v2980, %v2980
      %v2990 = vsel %vm1000, %v2981, 0
      %v2993 = vsel %vm1494, %v2501, 0
      %2995 = vmatprep.subr.bf16.mxu0 0
      %2996 = vmatpush1.bf16.msra.mxu0 %v2993
      %2997 = vmatprep.subr.bf16.mxu0 0
      %2998 = vmatpush1.bf16.msra.mxu0 0
      %2999 = vmatprep.subr.bf16.mxu0 0
      %3000 = vmatpush1.bf16.msra.mxu0 0
      %3001 = vmatprep.subr.bf16.mxu0 0
      %3002 = vmatpush1.bf16.msra.mxu0 0
      %3003 = vmatprep.subr.bf16.mxu0 0
      %3004 = vmatpush1.bf16.msra.mxu0 0
      %3005 = vmatprep.subr.bf16.mxu0 0
      %3006 = vmatpush1.bf16.msra.mxu0 0
      %3007 = vmatprep.subr.bf16.mxu0 0
      %3008 = vmatpush1.bf16.msra.mxu0 0
      %3009 = vmatprep.subr.bf16.mxu0 0
      %3010 = vmatpush1.bf16.msra.mxu0 0
      %3011 = vmatprep.subr.bf16.mxu0 0
      %3012 = vmatpush1.bf16.msra.mxu0 0
      %3013 = vmatprep.subr.bf16.mxu0 0
      %3014 = vmatpush1.bf16.msra.mxu0 0
      %3015 = vmatprep.subr.bf16.mxu0 0
      %3016 = vmatpush1.bf16.msra.mxu0 0
      %3017 = vmatprep.subr.bf16.mxu0 0
      %3018 = vmatpush1.bf16.msra.mxu0 0
      %3019 = vmatprep.subr.bf16.mxu0 0
      %3020 = vmatpush1.bf16.msra.mxu0 0
      %3021 = vmatprep.subr.bf16.mxu0 0
      %3022 = vmatpush1.bf16.msra.mxu0 0
      %3023 = vmatprep.subr.bf16.mxu0 0
      %3024 = vmatpush1.bf16.msra.mxu0 0
      %3025 = vmatprep.subr.bf16.mxu0 0
      %3026 = vmatpush1.bf16.msra.mxu0 0
      %3027 = vmatprep.mubr.bf16.mxu0 0
      %3028 = vmatmul.mubr.bf16.gmra.mrb[0].mxu0 %v2990
      %v3029 = vpop.f32.mrb[0].mxu0
      %v3030 = vadd.f32 0.0, %v3029
      %v3031 = vpop.f32.mrb[0].mxu0
      %v3032 = vpop.f32.mrb[0].mxu0
      %v3033 = vpop.f32.mrb[0].mxu0
      %3034 = vdwg.mxu0
      %v3036 = vsel %vm1000, %v2982, 0
      %v3039 = vsel %vm1494, %v2502, 0
      %3041 = vmatprep.subr.bf16.mxu0 0
      %3042 = vmatpush1.bf16.msra.mxu0 %v3039
      %3043 = vmatprep.subr.bf16.mxu0 0
      %3044 = vmatpush1.bf16.msra.mxu0 0
      %3045 = vmatprep.subr.bf16.mxu0 0
      %3046 = vmatpush1.bf16.msra.mxu0 0
      %3047 = vmatprep.subr.bf16.mxu0 0
      %3048 = vmatpush1.bf16.msra.mxu0 0
      %3049 = vmatprep.subr.bf16.mxu0 0
      %3050 = vmatpush1.bf16.msra.mxu0 0
      %3051 = vmatprep.subr.bf16.mxu0 0
      %3052 = vmatpush1.bf16.msra.mxu0 0
      %3053 = vmatprep.subr.bf16.mxu0 0
      %3054 = vmatpush1.bf16.msra.mxu0 0
      %3055 = vmatprep.subr.bf16.mxu0 0
      %3056 = vmatpush1.bf16.msra.mxu0 0
      %3057 = vmatprep.subr.bf16.mxu0 0
      %3058 = vmatpush1.bf16.msra.mxu0 0
      %3059 = vmatprep.subr.bf16.mxu0 0
      %3060 = vmatpush1.bf16.msra.mxu0 0
      %3061 = vmatprep.subr.bf16.mxu0 0
      %3062 = vmatpush1.bf16.msra.mxu0 0
      %3063 = vmatprep.subr.bf16.mxu0 0
      %3064 = vmatpush1.bf16.msra.mxu0 0
      %3065 = vmatprep.subr.bf16.mxu0 0
      %3066 = vmatpush1.bf16.msra.mxu0 0
      %3067 = vmatprep.subr.bf16.mxu0 0
      %3068 = vmatpush1.bf16.msra.mxu0 0
      %3069 = vmatprep.subr.bf16.mxu0 0
      %3070 = vmatpush1.bf16.msra.mxu0 0
      %3071 = vmatprep.subr.bf16.mxu0 0
      %3072 = vmatpush1.bf16.msra.mxu0 0
      %3073 = vmatprep.mubr.bf16.mxu0 0
      %3074 = vmatmul.mubr.bf16.gmra.mrb[0].mxu0 %v3036
      %v3075 = vpop.f32.mrb[0].mxu0
      %v3076 = vadd.f32 0.0, %v3075
      %v3077 = vpop.f32.mrb[0].mxu0
      %v3078 = vpop.f32.mrb[0].mxu0
      %v3079 = vpop.f32.mrb[0].mxu0
      %3080 = vdwg.mxu0
      %v3082 = vsel %vm1000, %v2983, 0
      %v3085 = vsel %vm1494, %v2503, 0
      %3087 = vmatprep.subr.bf16.mxu0 0
      %3088 = vmatpush1.bf16.msra.mxu0 %v3085
      %3089 = vmatprep.subr.bf16.mxu0 0
      %3090 = vmatpush1.bf16.msra.mxu0 0
      %3091 = vmatprep.subr.bf16.mxu0 0
      %3092 = vmatpush1.bf16.msra.mxu0 0
      %3093 = vmatprep.subr.bf16.mxu0 0
      %3094 = vmatpush1.bf16.msra.mxu0 0
      %3095 = vmatprep.subr.bf16.mxu0 0
      %3096 = vmatpush1.bf16.msra.mxu0 0
      %3097 = vmatprep.subr.bf16.mxu0 0
      %3098 = vmatpush1.bf16.msra.mxu0 0
      %3099 = vmatprep.subr.bf16.mxu0 0
      %3100 = vmatpush1.bf16.msra.mxu0 0
      %3101 = vmatprep.subr.bf16.mxu0 0
      %3102 = vmatpush1.bf16.msra.mxu0 0
      %3103 = vmatprep.subr.bf16.mxu0 0
      %3104 = vmatpush1.bf16.msra.mxu0 0
      %3105 = vmatprep.subr.bf16.mxu0 0
      %3106 = vmatpush1.bf16.msra.mxu0 0
      %3107 = vmatprep.subr.bf16.mxu0 0
      %3108 = vmatpush1.bf16.msra.mxu0 0
      %3109 = vmatprep.subr.bf16.mxu0 0
      %3110 = vmatpush1.bf16.msra.mxu0 0
      %3111 = vmatprep.subr.bf16.mxu0 0
      %3112 = vmatpush1.bf16.msra.mxu0 0
      %3113 = vmatprep.subr.bf16.mxu0 0
      %3114 = vmatpush1.bf16.msra.mxu0 0
      %3115 = vmatprep.subr.bf16.mxu0 0
      %3116 = vmatpush1.bf16.msra.mxu0 0
      %3117 = vmatprep.subr.bf16.mxu0 0
      %3118 = vmatpush1.bf16.msra.mxu0 0
      %3119 = vmatprep.mubr.bf16.mxu0 0
      %3120 = vmatmul.mubr.bf16.gmra.mrb[0].mxu0 %v3082
      %v3121 = vpop.f32.mrb[0].mxu0
      %v3122 = vadd.f32 0.0, %v3121
      %v3123 = vpop.f32.mrb[0].mxu0
      %v3124 = vpop.f32.mrb[0].mxu0
      %v3125 = vpop.f32.mrb[0].mxu0
      %3126 = vdwg.mxu0
      %v3128 = vsel %vm1000, %v2984, 0
      %v3131 = vsel %vm1494, %v2504, 0
      %3133 = vmatprep.subr.bf16.mxu0 0
      %3134 = vmatpush1.bf16.msra.mxu0 %v3131
      %3135 = vmatprep.subr.bf16.mxu0 0
      %3136 = vmatpush1.bf16.msra.mxu0 0
      %3137 = vmatprep.subr.bf16.mxu0 0
      %3138 = vmatpush1.bf16.msra.mxu0 0
      %3139 = vmatprep.subr.bf16.mxu0 0
      %3140 = vmatpush1.bf16.msra.mxu0 0
      %3141 = vmatprep.subr.bf16.mxu0 0
      %3142 = vmatpush1.bf16.msra.mxu0 0
      %3143 = vmatprep.subr.bf16.mxu0 0
      %3144 = vmatpush1.bf16.msra.mxu0 0
      %3145 = vmatprep.subr.bf16.mxu0 0
      %3146 = vmatpush1.bf16.msra.mxu0 0
      %3147 = vmatprep.subr.bf16.mxu0 0
      %3148 = vmatpush1.bf16.msra.mxu0 0
      %3149 = vmatprep.subr.bf16.mxu0 0
      %3150 = vmatpush1.bf16.msra.mxu0 0
      %3151 = vmatprep.subr.bf16.mxu0 0
      %3152 = vmatpush1.bf16.msra.mxu0 0
      %3153 = vmatprep.subr.bf16.mxu0 0
      %3154 = vmatpush1.bf16.msra.mxu0 0
      %3155 = vmatprep.subr.bf16.mxu0 0
      %3156 = vmatpush1.bf16.msra.mxu0 0
      %3157 = vmatprep.subr.bf16.mxu0 0
      %3158 = vmatpush1.bf16.msra.mxu0 0
      %3159 = vmatprep.subr.bf16.mxu0 0
      %3160 = vmatpush1.bf16.msra.mxu0 0
      %3161 = vmatprep.subr.bf16.mxu0 0
      %3162 = vmatpush1.bf16.msra.mxu0 0
      %3163 = vmatprep.subr.bf16.mxu0 0
      %3164 = vmatpush1.bf16.msra.mxu0 0
      %3165 = vmatprep.mubr.bf16.mxu0 0
      %3166 = vmatmul.mubr.bf16.gmra.mrb[0].mxu0 %v3128
      %v3167 = vpop.f32.mrb[0].mxu0
      %v3168 = vadd.f32 0.0, %v3167
      %v3169 = vpop.f32.mrb[0].mxu0
      %v3170 = vpop.f32.mrb[0].mxu0
      %v3171 = vpop.f32.mrb[0].mxu0
      %3172 = vdwg.mxu0
      %v3174 = vsel %vm1000, %v2985, 0
      %v3177 = vsel %vm1494, %v2505, 0
      %3179 = vmatprep.subr.bf16.mxu0 0
      %3180 = vmatpush1.bf16.msra.mxu0 %v3177
      %3181 = vmatprep.subr.bf16.mxu0 0
      %3182 = vmatpush1.bf16.msra.mxu0 0
      %3183 = vmatprep.subr.bf16.mxu0 0
      %3184 = vmatpush1.bf16.msra.mxu0 0
      %3185 = vmatprep.subr.bf16.mxu0 0
      %3186 = vmatpush1.bf16.msra.mxu0 0
      %3187 = vmatprep.subr.bf16.mxu0 0
      %3188 = vmatpush1.bf16.msra.mxu0 0
      %3189 = vmatprep.subr.bf16.mxu0 0
      %3190 = vmatpush1.bf16.msra.mxu0 0
      %3191 = vmatprep.subr.bf16.mxu0 0
      %3192 = vmatpush1.bf16.msra.mxu0 0
      %3193 = vmatprep.subr.bf16.mxu0 0
      %3194 = vmatpush1.bf16.msra.mxu0 0
      %3195 = vmatprep.subr.bf16.mxu0 0
      %3196 = vmatpush1.bf16.msra.mxu0 0
      %3197 = vmatprep.subr.bf16.mxu0 0
      %3198 = vmatpush1.bf16.msra.mxu0 0
      %3199 = vmatprep.subr.bf16.mxu0 0
      %3200 = vmatpush1.bf16.msra.mxu0 0
      %3201 = vmatprep.subr.bf16.mxu0 0
      %3202 = vmatpush1.bf16.msra.mxu0 0
      %3203 = vmatprep.subr.bf16.mxu0 0
      %3204 = vmatpush1.bf16.msra.mxu0 0
      %3205 = vmatprep.subr.bf16.mxu0 0
      %3206 = vmatpush1.bf16.msra.mxu0 0
      %3207 = vmatprep.subr.bf16.mxu0 0
      %3208 = vmatpush1.bf16.msra.mxu0 0
      %3209 = vmatprep.subr.bf16.mxu0 0
      %3210 = vmatpush1.bf16.msra.mxu0 0
      %3211 = vmatprep.mubr.bf16.mxu0 0
      %3212 = vmatmul.mubr.bf16.gmra.mrb[0].mxu0 %v3174
      %v3213 = vpop.f32.mrb[0].mxu0
      %v3214 = vadd.f32 0.0, %v3213
      %v3215 = vpop.f32.mrb[0].mxu0
      %v3216 = vpop.f32.mrb[0].mxu0
      %v3217 = vpop.f32.mrb[0].mxu0
      %3218 = vdwg.mxu0
      %v3220 = vsel %vm1000, %v2986, 0
      %v3223 = vsel %vm1494, %v2506, 0
      %3225 = vmatprep.subr.bf16.mxu0 0
      %3226 = vmatpush1.bf16.msra.mxu0 %v3223
      %3227 = vmatprep.subr.bf16.mxu0 0
      %3228 = vmatpush1.bf16.msra.mxu0 0
      %3229 = vmatprep.subr.bf16.mxu0 0
      %3230 = vmatpush1.bf16.msra.mxu0 0
      %3231 = vmatprep.subr.bf16.mxu0 0
      %3232 = vmatpush1.bf16.msra.mxu0 0
      %3233 = vmatprep.subr.bf16.mxu0 0
      %3234 = vmatpush1.bf16.msra.mxu0 0
      %3235 = vmatprep.subr.bf16.mxu0 0
      %3236 = vmatpush1.bf16.msra.mxu0 0
      %3237 = vmatprep.subr.bf16.mxu0 0
      %3238 = vmatpush1.bf16.msra.mxu0 0
      %3239 = vmatprep.subr.bf16.mxu0 0
      %3240 = vmatpush1.bf16.msra.mxu0 0
      %3241 = vmatprep.subr.bf16.mxu0 0
      %3242 = vmatpush1.bf16.msra.mxu0 0
      %3243 = vmatprep.subr.bf16.mxu0 0
      %3244 = vmatpush1.bf16.msra.mxu0 0
      %3245 = vmatprep.subr.bf16.mxu0 0
      %3246 = vmatpush1.bf16.msra.mxu0 0
      %3247 = vmatprep.subr.bf16.mxu0 0
      %3248 = vmatpush1.bf16.msra.mxu0 0
      %3249 = vmatprep.subr.bf16.mxu0 0
      %3250 = vmatpush1.bf16.msra.mxu0 0
      %3251 = vmatprep.subr.bf16.mxu0 0
      %3252 = vmatpush1.bf16.msra.mxu0 0
      %3253 = vmatprep.subr.bf16.mxu0 0
      %3254 = vmatpush1.bf16.msra.mxu0 0
      %3255 = vmatprep.subr.bf16.mxu0 0
      %3256 = vmatpush1.bf16.msra.mxu0 0
      %3257 = vmatprep.mubr.bf16.mxu0 0
      %3258 = vmatmul.mubr.bf16.gmra.mrb[0].mxu0 %v3220
      %v3259 = vpop.f32.mrb[0].mxu0
      %v3260 = vadd.f32 0.0, %v3259
      %v3261 = vpop.f32.mrb[0].mxu0
      %v3262 = vpop.f32.mrb[0].mxu0
      %v3263 = vpop.f32.mrb[0].mxu0
      %3264 = vdwg.mxu0
      %v3266 = vsel %vm1000, %v2987, 0
      %v3269 = vsel %vm1494, %v2507, 0
      %3271 = vmatprep.subr.bf16.mxu0 0
      %3272 = vmatpush1.bf16.msra.mxu0 %v3269
      %3273 = vmatprep.subr.bf16.mxu0 0
      %3274 = vmatpush1.bf16.msra.mxu0 0
      %3275 = vmatprep.subr.bf16.mxu0 0
      %3276 = vmatpush1.bf16.msra.mxu0 0
      %3277 = vmatprep.subr.bf16.mxu0 0
      %3278 = vmatpush1.bf16.msra.mxu0 0
      %3279 = vmatprep.subr.bf16.mxu0 0
      %3280 = vmatpush1.bf16.msra.mxu0 0
      %3281 = vmatprep.subr.bf16.mxu0 0
      %3282 = vmatpush1.bf16.msra.mxu0 0
      %3283 = vmatprep.subr.bf16.mxu0 0
      %3284 = vmatpush1.bf16.msra.mxu0 0
      %3285 = vmatprep.subr.bf16.mxu0 0
      %3286 = vmatpush1.bf16.msra.mxu0 0
      %3287 = vmatprep.subr.bf16.mxu0 0
      %3288 = vmatpush1.bf16.msra.mxu0 0
      %3289 = vmatprep.subr.bf16.mxu0 0
      %3290 = vmatpush1.bf16.msra.mxu0 0
      %3291 = vmatprep.subr.bf16.mxu0 0
      %3292 = vmatpush1.bf16.msra.mxu0 0
      %3293 = vmatprep.subr.bf16.mxu0 0
      %3294 = vmatpush1.bf16.msra.mxu0 0
      %3295 = vmatprep.subr.bf16.mxu0 0
      %3296 = vmatpush1.bf16.msra.mxu0 0
      %3297 = vmatprep.subr.bf16.mxu0 0
      %3298 = vmatpush1.bf16.msra.mxu0 0
      %3299 = vmatprep.subr.bf16.mxu0 0
      %3300 = vmatpush1.bf16.msra.mxu0 0
      %3301 = vmatprep.subr.bf16.mxu0 0
      %3302 = vmatpush1.bf16.msra.mxu0 0
      %3303 = vmatprep.mubr.bf16.mxu0 0
      %3304 = vmatmul.mubr.bf16.gmra.mrb[0].mxu0 %v3266
      %v3305 = vpop.f32.mrb[0].mxu0
      %v3306 = vadd.f32 0.0, %v3305
      %v3307 = vpop.f32.mrb[0].mxu0
      %v3308 = vpop.f32.mrb[0].mxu0
      %v3309 = vpop.f32.mrb[0].mxu0
      %3310 = vdwg.mxu0
      %v3312 = vsel %vm1000, %v2988, 0
      %v3315 = vsel %vm1494, %v2508, 0
      %3317 = vmatprep.subr.bf16.mxu0 0
      %3318 = vmatpush1.bf16.msra.mxu0 %v3315
      %3319 = vmatprep.subr.bf16.mxu0 0
      %3320 = vmatpush1.bf16.msra.mxu0 0
      %3321 = vmatprep.subr.bf16.mxu0 0
      %3322 = vmatpush1.bf16.msra.mxu0 0
      %3323 = vmatprep.subr.bf16.mxu0 0
      %3324 = vmatpush1.bf16.msra.mxu0 0
      %3325 = vmatprep.subr.bf16.mxu0 0
      %3326 = vmatpush1.bf16.msra.mxu0 0
      %3327 = vmatprep.subr.bf16.mxu0 0
      %3328 = vmatpush1.bf16.msra.mxu0 0
      %3329 = vmatprep.subr.bf16.mxu0 0
      %3330 = vmatpush1.bf16.msra.mxu0 0
      %3331 = vmatprep.subr.bf16.mxu0 0
      %3332 = vmatpush1.bf16.msra.mxu0 0
      %3333 = vmatprep.subr.bf16.mxu0 0
      %3334 = vmatpush1.bf16.msra.mxu0 0
      %3335 = vmatprep.subr.bf16.mxu0 0
      %3336 = vmatpush1.bf16.msra.mxu0 0
      %3337 = vmatprep.subr.bf16.mxu0 0
      %3338 = vmatpush1.bf16.msra.mxu0 0
      %3339 = vmatprep.subr.bf16.mxu0 0
      %3340 = vmatpush1.bf16.msra.mxu0 0
      %3341 = vmatprep.subr.bf16.mxu0 0
      %3342 = vmatpush1.bf16.msra.mxu0 0
      %3343 = vmatprep.subr.bf16.mxu0 0
      %3344 = vmatpush1.bf16.msra.mxu0 0
      %3345 = vmatprep.subr.bf16.mxu0 0
      %3346 = vmatpush1.bf16.msra.mxu0 0
      %3347 = vmatprep.subr.bf16.mxu0 0
      %3348 = vmatpush1.bf16.msra.mxu0 0
      %3349 = vmatprep.mubr.bf16.mxu0 0
      %3350 = vmatmul.mubr.bf16.gmra.mrb[0].mxu0 %v3312
      %v3351 = vpop.f32.mrb[0].mxu0
      %v3352 = vadd.f32 0.0, %v3351
      %v3353 = vpop.f32.mrb[0].mxu0
      %v3354 = vpop.f32.mrb[0].mxu0
      %v3355 = vpop.f32.mrb[0].mxu0
      %3356 = vdwg.mxu0
      %3359 = vrot.lane.b32.xlu0 %v3122, 8
      %v3360 = vpop.permute.xlu0 %3359
      %3361 = vrot.lane.b32.xlu0 %v3168, 8
      %v3362 = vpop.permute.xlu0 %3361
      %3367 = vrot.lane.b32.xlu0 %v3214, 16
      %v3368 = vpop.permute.xlu0 %3367
      %3369 = vrot.lane.b32.xlu0 %v3260, 16
      %v3370 = vpop.permute.xlu0 %3369
      %3375 = vrot.lane.b32.xlu0 %v3306, 24
      %v3376 = vpop.permute.xlu0 %3375
      %3377 = vrot.lane.b32.xlu0 %v3352, 24
      %v3378 = vpop.permute.xlu0 %3377
      %v3381 = vsel %vm1000, %v3030, %v3360
      %v3382 = vsel %vm1000, %v3076, %v3362
      %v3383 = vsel %vm1886, %v3381, %v3368
      %v3384 = vsel %vm1886, %v3382, %v3370
      %v3385 = vsel %vm1889, %v3383, %v3376
      %v3386 = vsel %vm1889, %v3384, %v3378
      %v3387 = vpack.c.bf16 %v3386, %v3385
      %s3388 = scalar_lea.vmem %s10, 16
      %v3389 = vld [vmem:[%s3388] sm:$0xf]
      %v3390 = vld [vmem:[%s3388 + $0x4] sm:$0xf]
      %v3391 = vld [vmem:[%s3388 + $0x8] sm:$0xf]
      %v3392 = vld [vmem:[%s3388 + $0xc] sm:$0xf]
      %s3393 = scalar_lea.vmem %s11, 1
      %v3394 = vld [vmem:[%s3393] sm:$0x1]
      %v3396 = vlaneseq
      %v3397 = vshrl.u32 %v3396, 7
      %v3398 = vsub.s32 0, %v3397
      %v3399 = vrot.slane %v3394, %v3398
      %v3405 = vunpack.c.l.b16 %v3389
      %v3406 = vunpack.c.l.b16 %v3390
      %v3407 = vunpack.c.l.b16 %v3391
      %v3408 = vunpack.c.l.b16 %v3392
      %v3409 = vpack.c.b16 %v3406, %v3405
      %v3410 = vpack.c.b16 %v3408, %v3407
      %v3414 = vsel %vm652, %v3387, 0
      %3416 = vmatprep.subr.bf16.mxu0 0
      %3417 = vmatpush1.bf16.msra.mxu0 %v3409
      %3418 = vmatprep.subr.bf16.mxu0 0
      %3419 = vmatpush1.bf16.msra.mxu0 %v3410
      %3420 = vmatprep.subr.bf16.mxu0 0
      %3421 = vmatpush1.bf16.msra.mxu0 0
      %3422 = vmatprep.subr.bf16.mxu0 0
      %3423 = vmatpush1.bf16.msra.mxu0 0
      %3424 = vmatprep.subr.bf16.mxu0 0
      %3425 = vmatpush1.bf16.msra.mxu0 0
      %3426 = vmatprep.subr.bf16.mxu0 0
      %3427 = vmatpush1.bf16.msra.mxu0 0
      %3428 = vmatprep.subr.bf16.mxu0 0
      %3429 = vmatpush1.bf16.msra.mxu0 0
      %3430 = vmatprep.subr.bf16.mxu0 0
      %3431 = vmatpush1.bf16.msra.mxu0 0
      %3432 = vmatprep.subr.bf16.mxu0 0
      %3433 = vmatpush1.bf16.msra.mxu0 0
      %3434 = vmatprep.subr.bf16.mxu0 0
      %3435 = vmatpush1.bf16.msra.mxu0 0
      %3436 = vmatprep.subr.bf16.mxu0 0
      %3437 = vmatpush1.bf16.msra.mxu0 0
      %3438 = vmatprep.subr.bf16.mxu0 0
      %3439 = vmatpush1.bf16.msra.mxu0 0
      %3440 = vmatprep.subr.bf16.mxu0 0
      %3441 = vmatpush1.bf16.msra.mxu0 0
      %3442 = vmatprep.subr.bf16.mxu0 0
      %3443 = vmatpush1.bf16.msra.mxu0 0
      %3444 = vmatprep.subr.bf16.mxu0 0
      %3445 = vmatpush1.bf16.msra.mxu0 0
      %3446 = vmatprep.subr.bf16.mxu0 0
      %3447 = vmatpush1.bf16.msra.mxu0 0
      %3448 = vmatprep.mubr.bf16.mxu0 0
      %3449 = vmatmul.mubr.bf16.gmra.mrb[0].mxu0 %v3414
      %v3450 = vpop.f32.mrb[0].mxu0
      %v3451 = vadd.f32 %v3399, %v3450
      %v3452 = vpop.f32.mrb[0].mxu0
      %v3453 = vpop.f32.mrb[0].mxu0
      %v3454 = vadd.f32 %v3399, %v3453
      %v3455 = vpop.f32.mrb[0].mxu0
      %3456 = vdwg.mxu0
      %v3457 = vadd.f32 %v3451, %v2221
      %v3458 = vadd.f32 %v3454, %v2222
      %s3459 = scalar_lea.vmem %s12, 1
      %v3460 = vld [vmem:[%s3459] sm:$0x1]
      %s3461 = scalar_lea.vmem %s13, 1
      %v3462 = vld [vmem:[%s3461] sm:$0x1]
      %v3463 = vsel %vm652, %v3457, 0.0
      %3464 = vadd.xlane.f32.xlu0 %v3463
      %v3465 = vpop.xlane.xlu0 %3464
      %v3466 = vsel %vm652, %v3458, 0.0
      %3467 = vadd.xlane.f32.xlu0 %v3466
      %v3468 = vpop.xlane.xlu0 %3467
      %v3469 = vmul.f32 %v3465, %v659
      %v3470 = vmul.f32 %v3468, %v659
      %v3471 = vsub.f32 %v3457, %v3469
      %v3472 = vsub.f32 %v3458, %v3470
      %v3473 = vmul.f32 %v3471, %v3471
      %v3474 = vmul.f32 %v3472, %v3472
      %v3475 = vsel %vm652, %v3473, 0.0
      %3476 = vadd.xlane.f32.xlu0 %v3475
      %v3477 = vpop.xlane.xlu0 %3476
      %v3478 = vsel %vm652, %v3474, 0.0
      %3479 = vadd.xlane.f32.xlu0 %v3478
      %v3480 = vpop.xlane.xlu0 %3479
      %v3481 = vmul.f32 %v3477, %v659
      %v3482 = vmul.f32 %v3480, %v659
      %v3483 = vadd.f32 %v3481, 1e-12
      %v3484 = vadd.f32 %v3482, 1e-12
      %v3485 = vrsqrt.pop %v3483
      %v3486 = vrsqrt.pop %v3484
      %v3487 = vmul.f32 %v3471, %v3485
      %v3488 = vmul.f32 %v3472, %v3486
      %v3490 = vlaneseq
      %v3491 = vshrl.u32 %v3490, 7
      %v3492 = vsub.s32 0, %v3491
      %v3493 = vrot.slane %v3460, %v3492
      %v3495 = vmul.f32 %v3487, %v3493
      %v3496 = vmul.f32 %v3488, %v3493
      %v3498 = vlaneseq
      %v3499 = vshrl.u32 %v3498, 7
      %v3500 = vsub.s32 0, %v3499
      %v3501 = vrot.slane %v3462, %v3500
      %v3503 = vadd.f32 %v3495, %v3501
      %v3504 = vadd.f32 %v3496, %v3501
      %v3505 = vpack.c.bf16 %v3504, %v3503
      %s3506 = scalar_lea.vmem %s14, 16
      %v3507 = vld [vmem:[%s3506] sm:$0xf]
      %v3508 = vld [vmem:[%s3506 + $0x4] sm:$0xf]
      %v3509 = vld [vmem:[%s3506 + $0x8] sm:$0xf]
      %v3510 = vld [vmem:[%s3506 + $0xc] sm:$0xf]
      %s3511 = scalar_lea.vmem %s15, 1
      %v3512 = vld [vmem:[%s3511] sm:$0x1]
      %v3514 = vlaneseq
      %v3515 = vshrl.u32 %v3514, 7
      %v3516 = vsub.s32 0, %v3515
      %v3517 = vrot.slane %v3512, %v3516
      %v3523 = vunpack.c.l.b16 %v3507
      %v3524 = vunpack.c.l.b16 %v3508
      %v3525 = vunpack.c.l.b16 %v3509
      %v3526 = vunpack.c.l.b16 %v3510
      %v3527 = vpack.c.b16 %v3524, %v3523
      %v3528 = vpack.c.b16 %v3526, %v3525
      %v3532 = vsel %vm652, %v3505, 0
      %3534 = vmatprep.subr.bf16.mxu0 0
      %3535 = vmatpush1.bf16.msra.mxu0 %v3527
      %3536 = vmatprep.subr.bf16.mxu0 0
      %3537 = vmatpush1.bf16.msra.mxu0 %v3528
      %3538 = vmatprep.subr.bf16.mxu0 0
      %3539 = vmatpush1.bf16.msra.mxu0 0
      %3540 = vmatprep.subr.bf16.mxu0 0
      %3541 = vmatpush1.bf16.msra.mxu0 0
      %3542 = vmatprep.subr.bf16.mxu0 0
      %3543 = vmatpush1.bf16.msra.mxu0 0
      %3544 = vmatprep.subr.bf16.mxu0 0
      %3545 = vmatpush1.bf16.msra.mxu0 0
      %3546 = vmatprep.subr.bf16.mxu0 0
      %3547 = vmatpush1.bf16.msra.mxu0 0
      %3548 = vmatprep.subr.bf16.mxu0 0
      %3549 = vmatpush1.bf16.msra.mxu0 0
      %3550 = vmatprep.subr.bf16.mxu0 0
      %3551 = vmatpush1.bf16.msra.mxu0 0
      %3552 = vmatprep.subr.bf16.mxu0 0
      %3553 = vmatpush1.bf16.msra.mxu0 0
      %3554 = vmatprep.subr.bf16.mxu0 0
      %3555 = vmatpush1.bf16.msra.mxu0 0
      %3556 = vmatprep.subr.bf16.mxu0 0
      %3557 = vmatpush1.bf16.msra.mxu0 0
      %3558 = vmatprep.subr.bf16.mxu0 0
      %3559 = vmatpush1.bf16.msra.mxu0 0
      %3560 = vmatprep.subr.bf16.mxu0 0
      %3561 = vmatpush1.bf16.msra.mxu0 0
      %3562 = vmatprep.subr.bf16.mxu0 0
      %3563 = vmatpush1.bf16.msra.mxu0 0
      %3564 = vmatprep.subr.bf16.mxu0 0
      %3565 = vmatpush1.bf16.msra.mxu0 0
      %3566 = vmatprep.mubr.bf16.mxu0 0
      %3567 = vmatmul.mubr.bf16.gmra.mrb[0].mxu0 %v3532
      %v3568 = vpop.f32.mrb[0].mxu0
      %v3569 = vadd.f32 %v3517, %v3568
      %v3570 = vpop.f32.mrb[0].mxu0
      %v3571 = vpop.f32.mrb[0].mxu0
      %v3572 = vadd.f32 %v3517, %v3571
      %v3573 = vpop.f32.mrb[0].mxu0
      %3574 = vdwg.mxu0
      %v3575 = vmul.f32 %v3569, %v3569
      %v3576 = vmul.f32 %v3572, %v3572
      %v3577 = vmul.f32 %v3569, %v3575
      %v3578 = vmul.f32 %v3572, %v3576
      %v3579 = vmul.f32 %v3577, 0.044715
      %v3580 = vmul.f32 %v3578, 0.044715
      %v3581 = vadd.f32 %v3569, %v3579
      %v3582 = vadd.f32 %v3572, %v3580
      %v3583 = vmul.f32 %v3581, 0.7978846
      %v3584 = vmul.f32 %v3582, 0.7978846
      %v3585 = vtanh.pop %v3583
      %v3586 = vtanh.pop %v3584
      %v3587 = vadd.f32 %v3585, 1.0
      %v3588 = vadd.f32 %v3586, 1.0
      %v3589 = vmul.f32 %v3587, 0.5
      %v3590 = vmul.f32 %v3588, 0.5
      %v3591 = vmul.f32 %v3569, %v3589
      %v3592 = vmul.f32 %v3572, %v3590
      %v3593 = vpack.c.bf16 %v3592, %v3591
      %s3594 = scalar_lea.vmem %s16, 32
      %v3595 = vld [vmem:[%s3594] sm:$0xf]
      %v3596 = vld [vmem:[%s3594 + $0x4] sm:$0xf]
      %v3597 = vld [vmem:[%s3594 + $0x8] sm:$0xf]
      %v3598 = vld [vmem:[%s3594 + $0xc] sm:$0xf]
      %v3599 = vld [vmem:[%s3594 + $0x10] sm:$0xf]
      %v3600 = vld [vmem:[%s3594 + $0x14] sm:$0xf]
      %v3601 = vld [vmem:[%s3594 + $0x18] sm:$0xf]
      %v3602 = vld [vmem:[%s3594 + $0x1c] sm:$0xf]
      %s3603 = scalar_lea.vmem %s17, 1
      %v3604 = vld [vmem:[%s3603] sm:$0x1]
      %v3606 = vlaneseq
      %v3607 = vshrl.u32 %v3606, 7
      %v3608 = vsub.s32 0, %v3607
      %v3609 = vrot.slane %v3604, %v3608
      %v3619 = vunpack.c.l.b16 %v3595
      %v3620 = vunpack.c.l.b16 %v3596
      %v3621 = vunpack.c.l.b16 %v3597
      %v3622 = vunpack.c.l.b16 %v3598
      %v3623 = vunpack.c.l.b16 %v3599
      %v3624 = vunpack.c.l.b16 %v3600
      %v3625 = vunpack.c.l.b16 %v3601
      %v3626 = vunpack.c.l.b16 %v3602
      %v3627 = vpack.c.b16 %v3620, %v3619
      %v3628 = vpack.c.b16 %v3622, %v3621
      %v3629 = vpack.c.b16 %v3624, %v3623
      %v3630 = vpack.c.b16 %v3626, %v3625
      %v3636 = vsel %vm2132, %v3593, 0
      %3638 = vmatprep.subr.bf16.mxu0 0
      %3639 = vmatpush1.bf16.msra.mxu0 %v3627
      %3640 = vmatprep.subr.bf16.mxu0 0
      %3641 = vmatpush1.bf16.msra.mxu0 %v3628
      %3642 = vmatprep.subr.bf16.mxu0 0
      %3643 = vmatpush1.bf16.msra.mxu0 %v3629
      %3644 = vmatprep.subr.bf16.mxu0 0
      %3645 = vmatpush1.bf16.msra.mxu0 %v3630
      %3646 = vmatprep.subr.bf16.mxu0 0
      %3647 = vmatpush1.bf16.msra.mxu0 0
      %3648 = vmatprep.subr.bf16.mxu0 0
      %3649 = vmatpush1.bf16.msra.mxu0 0
      %3650 = vmatprep.subr.bf16.mxu0 0
      %3651 = vmatpush1.bf16.msra.mxu0 0
      %3652 = vmatprep.subr.bf16.mxu0 0
      %3653 = vmatpush1.bf16.msra.mxu0 0
      %3654 = vmatprep.subr.bf16.mxu0 0
      %3655 = vmatpush1.bf16.msra.mxu0 0
      %3656 = vmatprep.subr.bf16.mxu0 0
      %3657 = vmatpush1.bf16.msra.mxu0 0
      %3658 = vmatprep.subr.bf16.mxu0 0
      %3659 = vmatpush1.bf16.msra.mxu0 0
      %3660 = vmatprep.subr.bf16.mxu0 0
      %3661 = vmatpush1.bf16.msra.mxu0 0
      %3662 = vmatprep.subr.bf16.mxu0 0
      %3663 = vmatpush1.bf16.msra.mxu0 0
      %3664 = vmatprep.subr.bf16.mxu0 0
      %3665 = vmatpush1.bf16.msra.mxu0 0
      %3666 = vmatprep.subr.bf16.mxu0 0
      %3667 = vmatpush1.bf16.msra.mxu0 0
      %3668 = vmatprep.subr.bf16.mxu0 0
      %3669 = vmatpush1.bf16.msra.mxu0 0
      %3670 = vmatprep.mubr.bf16.mxu0 0
      %3671 = vmatmul.mubr.bf16.gmra.mrb[0].mxu0 %v3636
      %v3672 = vpop.f32.mrb[0].mxu0
      %v3673 = vadd.f32 %v3609, %v3672
      %v3674 = vpop.f32.mrb[0].mxu0
      %v3675 = vpop.f32.mrb[0].mxu0
      %v3676 = vadd.f32 %v3609, %v3675
      %v3677 = vpop.f32.mrb[0].mxu0
      %3678 = vdwg.mxu0
      %v3679 = vadd.f32 %v3673, %v3503
      %v3680 = vadd.f32 %v3676, %v3504
      %s3681 = scalar_lea.vmem %s18, 1
      %v3682 = vld [vmem:[%s3681] sm:$0x1]
      %s3683 = scalar_lea.vmem %s19, 1
      %v3684 = vld [vmem:[%s3683] sm:$0x1]
      %v3685 = vsel %vm652, %v3679, 0.0
      %3686 = vadd.xlane.f32.xlu0 %v3685
      %v3687 = vpop.xlane.xlu0 %3686
      %v3688 = vsel %vm652, %v3680, 0.0
      %3689 = vadd.xlane.f32.xlu0 %v3688
      %v3690 = vpop.xlane.xlu0 %3689
      %v3691 = vmul.f32 %v3687, %v659
      %v3692 = vmul.f32 %v3690, %v659
      %v3693 = vsub.f32 %v3679, %v3691
      %v3694 = vsub.f32 %v3680, %v3692
      %v3695 = vmul.f32 %v3693, %v3693
      %v3696 = vmul.f32 %v3694, %v3694
      %v3697 = vsel %vm652, %v3695, 0.0
      %3698 = vadd.xlane.f32.xlu0 %v3697
      %v3699 = vpop.xlane.xlu0 %3698
      %v3700 = vsel %vm652, %v3696, 0.0
      %3701 = vadd.xlane.f32.xlu0 %v3700
      %v3702 = vpop.xlane.xlu0 %3701
      %v3703 = vmul.f32 %v3699, %v659
      %v3704 = vmul.f32 %v3702, %v659
      %v3705 = vadd.f32 %v3703, 1e-12
      %v3706 = vadd.f32 %v3704, 1e-12
      %v3707 = vrsqrt.pop %v3705
      %v3708 = vrsqrt.pop %v3706
      %v3709 = vmul.f32 %v3693, %v3707
      %v3710 = vmul.f32 %v3694, %v3708
      %v3712 = vlaneseq
      %v3713 = vshrl.u32 %v3712, 7
      %v3714 = vsub.s32 0, %v3713
      %v3715 = vrot.slane %v3682, %v3714
      %v3717 = vmul.f32 %v3709, %v3715
      %v3718 = vmul.f32 %v3710, %v3715
      %v3720 = vlaneseq
      %v3721 = vshrl.u32 %v3720, 7
      %v3722 = vsub.s32 0, %v3721
      %v3723 = vrot.slane %v3684, %v3722
      %v3725 = vadd.f32 %v3717, %v3723
      %v3726 = vadd.f32 %v3718, %v3723
      %v3729 = vrot.slane %v3726, 7
      %vm3730 = vcmask 1041409
      %v3731 = vsel %vm3730, %v3729, %v3725
      %vm3733 = vcmask 254976
      %3734 = vst.msk [vmem:[%s644] sm:$0x3] %vm3733, %v3731
      %p3735 = scmp.lt.s32.totalorder %s31, 1
      %s3736 = scalar_select %p3735, %s31, 1
      %s3737 = smul.addr %s3736, 2
      %s3738 = scalar_lea.vmem %s20, %s3737
      // Predicated region
      $region101: #{chunkbert_forward.1} parent=99 // pred_check
        %p3739 = pneg %p479
      $region102: #{chunkbert_forward.1} parent=99 // pred_check_branch
        %3741 = sbr.rel (%p3739) target = $region104
      $region103: #{chunkbert_forward.1} parent=99 // pred_region
        _
      $region104: #{chunkbert_forward.1} parent=99 // pred_fallthru
        _
    $region100: #{chunkbert_forward.1} parent=5 // pred_fallthru
      _
    %p3742 = scmp.le.s32.totalorder 2, %s26
    // Predicated region
    $region105: #{chunkbert_forward.1} parent=5 // pred_check
      %p3743 = pneg %p3742
    $region106: #{chunkbert_forward.1} parent=5 // pred_check_branch
      %3745 = sbr.rel (%p3743) target = $region108
    $region107: #{chunkbert_forward.1} parent=5 // pred_region
      %s3746 = ssub.s32 %s26, 2
      // Predicated region
      $region109: #{chunkbert_forward.1} parent=107 // pred_check
        %p3747 = pneg %p485
      $region110: #{chunkbert_forward.1} parent=107 // pred_check_branch
        %3749 = sbr.rel (%p3747) target = $region112
      $region111: #{chunkbert_forward.1} parent=107 // pred_region
        %p3750 = scmp.lt.s32.totalorder %s32, 1
        %s3751 = scalar_select %p3750, %s32, 1
        %s3752 = smul.addr %s3751, 2
        %s3753 = scalar_lea.vmem %s20, %s3752
      $region112: #{chunkbert_forward.1} parent=107 // pred_fallthru
        _
    $region108: #{chunkbert_forward.1} parent=5 // pred_fallthru
      _
  $region6: #{chunkbert_forward.1} parent=0 // loop_footer
    %s30 = sadd.s32 1, %s26
  $region7: #{chunkbert_forward.1} parent=0 // loop_footer_branch
    %25 = sbr.rel target = $region3
  $region8: #{chunkbert_forward.1} parent=0 // loop_exit
    _

</llo_original>
